<compile_context>
chip_gen: v6e
topology: v6e:2x2x1
jax: 0.10.0
libtpu: 0.0.40
codegen_flags: <defaults>
</compile_context>

<pallas_src>
import functools

import jax
import jax.numpy as jnp
import numpy as np
from jax.experimental import pallas as pl
from jax.experimental.pallas import tpu as pltpu


def attention_kernel(img_ref, dec_ref, wf_ref, bf_ref, wd_ref, bd_ref, wa_ref,
                     awe_ref, alpha_ref, *, n_valid, matmul_dtype):
    # img_ref:   (BT, N_pad, F_pad)  batch tile of region features (f32)
    # dec_ref:   (BT, D)             batch tile of decoder hidden states
    # wf_ref:    (F_pad, A)          features_att weight (pre-transposed, F zero-padded)
    # bf_ref:    (1, A)
    # wd_ref:    (D, A)              decoder_att weight (pre-transposed)
    # bd_ref:    (1, A)
    # wa_ref:    (1, A)              full_att weight as a ROW (VPU reduce, not MXU)
    # awe_ref:   (BT, F_pad)         attention-weighted encoding (output)
    # alpha_ref: (BT, N_pad)         attention weights (output)
    BT, N_pad, F_pad = img_ref.shape
    A = wf_ref.shape[1]

    img = img_ref[...]                                                   # (BT, N_pad, F_pad)
    dec = dec_ref[...]                                                   # (BT, D)

    # --- att1: one MXU matmul with M = BT*N_pad ----------------------------
    # The reshape is a free view: wrapper guarantees N_pad % 8 == 0 and
    # F_pad % 128 == 0, so no relayout copy is materialized.
    img2d = img.reshape(BT * N_pad, F_pad)
    att1 = jnp.dot(img2d.astype(matmul_dtype), wf_ref[...].astype(matmul_dtype),
                   preferred_element_type=jnp.float32) + bf_ref[...]     # (BT*N_pad, A)
    att1 = att1.reshape(BT, N_pad, A)

    # --- att2: (BT, D) x (D, A), bias added once per block -----------------
    att2 = jnp.dot(dec.astype(matmul_dtype), wd_ref[...].astype(matmul_dtype),
                   preferred_element_type=jnp.float32) + bd_ref[...]     # (BT, A)

    # ReLU; att2 broadcast over regions once for the whole block.
    h = jnp.maximum(att1 + att2[:, None, :], 0.0)                        # (BT, N_pad, A)
    # TODO(synk): nn.Dropout(p=0.5) is identity here (eval mode); training-mode
    # dropout would need pltpu.prng_random_bits and cannot match torch RNG.

    # --- scores: VPU multiply + lane reduction (MXU stays free) ------------
    # full_att bias omitted: a uniform shift over the softmax axis cancels
    # exactly in alpha and never reaches awe.
    # TODO(synk): if a bundle dump shows an XLU relayout between this
    # lane-layout alpha and the sublane broadcast below, move scores onto the
    # MXU as (BT*N_pad, A) @ (A, 1) and keep alpha in sublane layout.
    wa = wa_ref[...].reshape(1, 1, A)                                    # (1, 1, A)
    scores = jnp.sum(h * wa, axis=-1)                                    # (BT, N_pad)

    if n_valid != N_pad:
        # Padded regions -> huge negative score -> alpha exactly 0.
        region = jax.lax.broadcasted_iota(jnp.int32, (BT, N_pad), 1)
        scores = jnp.where(region < n_valid, scores, jnp.float32(-1e30))

    # --- softmax over regions; EUP reciprocal + one Newton step ------------
    m = jnp.max(scores, axis=-1, keepdims=True)                          # (BT, 1)
    e = jnp.exp(scores - m)                                              # (BT, N_pad)
    denom = jnp.sum(e, axis=-1, keepdims=True)                           # (BT, 1)
    inv = pl.reciprocal(denom, approx=True)
    inv = inv * (2.0 - denom * inv)                                      # Newton: ~f32-exact
    alpha = e * inv                                                      # (BT, N_pad)

    # --- weighted encoding: broadcast-mul + sublane reduce (f32 img) -------
    awe = jnp.sum(img * alpha[:, :, None], axis=1)                       # (BT, F_pad)

    awe_ref[...] = awe.astype(awe_ref.dtype)
    alpha_ref[...] = alpha.astype(alpha_ref.dtype)


def _round_up(x, m):
    return ((x + m - 1) // m) * m


def _block_vmem_bytes(bt, n_pad, f_pad, d, a):
    """Rough per-grid-step VMEM model (f32), used to size the batch tile."""
    img = 2 * bt * n_pad * f_pad * 4            # input tile, double-buffered
    dec = 2 * bt * d * 4
    wts = (f_pad * a + d * a + 3 * a) * 4       # weights, single-buffered
    out = 2 * bt * (f_pad + n_pad) * 4          # outputs, double-buffered
    inter = (3 * bt * n_pad * a                 # att1 / h / h*wa temporaries
             + bt * n_pad * f_pad // 2          # optional bf16 copy of img tile
             + 2 * bt * (f_pad + n_pad)) * 4
    return img + dec + wts + out + inter


def _pick_b_tile(b, n_pad, f_pad, d, a, vmem_budget):
    """Largest multiple-of-8 batch tile whose block fits the VMEM budget."""
    max_bt = max(8, _round_up(b, 8))
    bt = 8                                      # floor (even if over budget)
    cand = 16
    while cand <= max_bt and _block_vmem_bytes(cand, n_pad, f_pad, d, a) <= vmem_budget:
        bt = cand
        cand += 8
    return bt


def attention_forward(image_features, decoder_hidden, wf, bf, wd, bd, wa, ba=None,
                      *, matmul_dtype=jnp.float32, b_tile=None):
    """image_features: (B, N, F) f32, decoder_hidden: (B, D) f32.

    wf: (F, A), wd: (D, A), wa: (A, 1) effective (weight-norm-folded) weights,
    already transposed to (in, out).  `ba` (full_att bias) is accepted for API
    parity but unused: it shifts every score uniformly, so alpha and awe are
    exactly unchanged.  matmul_dtype=jnp.bfloat16 enables the fast MXU path for
    the two dense layers (f32 accumulation; f32 weighted sum kept).
    """
    del ba  # softmax-shift no-op (see docstring)

    B, N, F = image_features.shape
    D = decoder_hidden.shape[1]
    A = wf.shape[1]

    # --- layout padding (wrapper-side, plain JAX) ---------------------------
    # N -> multiple of 8 : in-kernel (BT*N, F) reshape stays a free view.
    # F -> multiple of 128: lane-dense img tile + unmasked awe output stores.
    #   (TODO(synk): alpha keeps width N_pad (mult of 8, not 128); lane-padding
    #    it to 128 would add ~30% att1 FLOPs at real N=196 — not worth it.)
    N_pad = _round_up(N, 8)
    F_pad = _round_up(F, 128)
    if N_pad != N or F_pad != F:
        image_features = jnp.pad(image_features,
                                 ((0, 0), (0, N_pad - N), (0, F_pad - F)))
    if F_pad != F:
        wf = jnp.pad(wf, ((0, F_pad - F), (0, 0)))   # zero rows keep att1 exact

    # --- per-chip VMEM budget ------------------------------------------------
    try:
        vmem_cap = int(pltpu.get_tpu_info().vmem_capacity_bytes)
    except Exception:                                  # conservative fallback
        vmem_cap = 64 * 1024 * 1024                    # v7x per-core VMEM
    vmem_budget = min(int(vmem_cap) * 3 // 4, 100 * 1024 * 1024)

    # --- adaptive batch tile -------------------------------------------------
    if b_tile is None:
        b_tile = _pick_b_tile(B, N_pad, F_pad, D, A, vmem_budget)
    b_tile = max(8, (int(b_tile) // 8) * 8)
    B_pad = _round_up(B, b_tile)
    # Megacore: if one *large* block covers the whole batch, split into two
    # steps so ("parallel",) can shard across v7x's 2 TensorCores.  Tiny
    # problems stay at grid=(1,) (a second step would be pure overhead).
    if (B_pad // b_tile == 1 and b_tile >= 16
            and _block_vmem_bytes(b_tile, N_pad, F_pad, D, A) > (4 << 20)):
        b_tile = max(8, (b_tile // 2 // 8) * 8)
        B_pad = _round_up(B, b_tile)

    if B_pad != B:
        pad = B_pad - B
        image_features = jnp.pad(image_features, ((0, pad), (0, 0), (0, 0)))
        decoder_hidden = jnp.pad(decoder_hidden, ((0, pad), (0, 0)))

    bf2 = bf.reshape(1, A)
    bd2 = bd.reshape(1, A)
    wa_row = wa.reshape(1, A)          # full_att weight as a row (VPU reduce)

    grid = (B_pad // b_tile,)
    kernel = functools.partial(attention_kernel, n_valid=N,
                               matmul_dtype=matmul_dtype)

    # Advisory cost hint for XLA scheduling around the custom call.
    flops = (2 * B_pad * N_pad * F_pad * A      # att1
             + 2 * B_pad * D * A                # att2
             + 2 * B_pad * N_pad * A            # scores
             + 2 * B_pad * N_pad * F_pad)       # weighted sum
    bytes_accessed = 4 * (B_pad * N_pad * F_pad + B_pad * D
                          + F_pad * A + D * A + 3 * A
                          + B_pad * F_pad + B_pad * N_pad)
    cost = pl.CostEstimate(flops=flops, transcendentals=B_pad * N_pad,
                           bytes_accessed=bytes_accessed)

    def build(single_buffer_weights):
        if single_buffer_weights:
            # Constant operands never change across the grid -> one buffer.
            def const_spec(shape):
                return pl.BlockSpec(shape, lambda b: (0, 0),
                                    pipeline_mode=pl.Buffered(1))
        else:
            def const_spec(shape):
                return pl.BlockSpec(shape, lambda b: (0, 0))
        return pl.pallas_call(
            kernel,
            out_shape=(jax.ShapeDtypeStruct((B_pad, F_pad), jnp.float32),
                       jax.ShapeDtypeStruct((B_pad, N_pad), jnp.float32)),
            grid_spec=pltpu.PrefetchScalarGridSpec(
                num_scalar_prefetch=0,
                grid=grid,
                in_specs=[
                    pl.BlockSpec((b_tile, N_pad, F_pad), lambda b: (b, 0, 0)),  # img
                    pl.BlockSpec((b_tile, D), lambda b: (b, 0)),                # dec
                    const_spec((F_pad, A)),                                     # Wf
                    const_spec((1, A)),                                         # bf
                    const_spec((D, A)),                                         # Wd
                    const_spec((1, A)),                                         # bd
                    const_spec((1, A)),                                         # wa (row)
                ],
                out_specs=[
                    pl.BlockSpec((b_tile, F_pad), lambda b: (b, 0)),            # awe
                    pl.BlockSpec((b_tile, N_pad), lambda b: (b, 0)),            # alpha
                ],
            ),
            compiler_params=pltpu.CompilerParams(
                dimension_semantics=("parallel",),
                vmem_limit_bytes=int(vmem_budget)),
            cost_estimate=cost,
        )

    args = (image_features, decoder_hidden, wf, bf2, wd, bd2, wa_row)
    try:
        awe, alpha = build(single_buffer_weights=True)(*args)
    except Exception:
        # jax versions without BlockSpec pipeline_mode / pl.Buffered support:
        # fall back to default double-buffered constant operands.
        awe, alpha = build(single_buffer_weights=False)(*args)

    return awe[:B, :F], alpha[:B, :N]


def weight_norm_effective(v, g):
    """PyTorch nn.utils.weight_norm(dim=0): W[o,:] = g[o] * v[o,:] / ||v[o,:]||."""
    norm = jnp.sqrt(jnp.sum(v * v, axis=1, keepdims=True))
    return g.reshape(-1, 1) * v / norm


def reference_forward(image_features, decoder_hidden, wf, bf, wd, bd, wa, ba):
    att1 = image_features @ wf + bf                       # (B, N, A)
    att2 = decoder_hidden @ wd + bd                       # (B, A)
    h = jnp.maximum(att1 + att2[:, None, :], 0.0)
    att = (h @ wa).squeeze(-1) + ba                       # (B, N)
    alpha = jax.nn.softmax(att, axis=1)
    awe = (image_features * alpha[:, :, None]).sum(axis=1)
    return awe, alpha


if __name__ == "__main__":
    # batch, regions, features_dim, decoder_dim, attention_dim
    # B=12 exercises batch padding + grid collapse; F=32 exercises F->128 lane
    # padding of the awe output.
    B, N, F, D, A = 12, 16, 32, 32, 32

    key = jax.random.PRNGKey(0)
    keys = jax.random.split(key, 8)

    image_features = jax.random.normal(keys[0], (B, N, F), dtype=jnp.float32)
    decoder_hidden = jax.random.normal(keys[1], (B, D), dtype=jnp.float32)

    # weight_norm parameterization: v (direction) and g (magnitude)
    vf = jax.random.normal(keys[2], (A, F), dtype=jnp.float32) * 0.1
    gf = jnp.abs(jax.random.normal(keys[3], (A,), dtype=jnp.float32)) + 0.5
    vd = jax.random.normal(keys[4], (A, D), dtype=jnp.float32) * 0.1
    gd = jnp.abs(jax.random.normal(keys[5], (A,), dtype=jnp.float32)) + 0.5
    va = jax.random.normal(keys[6], (1, A), dtype=jnp.float32) * 0.1
    ga = jnp.abs(jax.random.normal(keys[7], (1,), dtype=jnp.float32)) + 0.5

    bf = jnp.linspace(-0.1, 0.1, A, dtype=jnp.float32)
    bd = jnp.linspace(0.1, -0.1, A, dtype=jnp.float32)
    ba = jnp.array([0.05], dtype=jnp.float32)

    # Fold weight-norm into effective dense weights; transpose to (in, out).
    Wf = weight_norm_effective(vf, gf).T   # (F, A)
    Wd = weight_norm_effective(vd, gd).T   # (D, A)
    Wa = weight_norm_effective(va, ga).T   # (A, 1)

    awe_ref, alpha_ref = reference_forward(image_features, decoder_hidden,
                                           Wf, bf, Wd, bd, Wa, ba)

    # Exact (f32 MXU) path.
    awe, alpha = attention_forward(image_features, decoder_hidden,
                                   Wf, bf, Wd, bd, Wa, ba)
    jax.block_until_ready((awe, alpha))
    np.testing.assert_allclose(np.asarray(awe), np.asarray(awe_ref),
                               rtol=1e-5, atol=1e-5)
    np.testing.assert_allclose(np.asarray(alpha), np.asarray(alpha_ref),
                               rtol=1e-5, atol=1e-5)

    # Fast bf16-MXU path (precision/speed trade; loose tolerance by design).
    awe16, alpha16 = attention_forward(image_features, decoder_hidden,
                                       Wf, bf, Wd, bd, Wa, ba,
                                       matmul_dtype=jnp.bfloat16)
    jax.block_until_ready((awe16, alpha16))
    np.testing.assert_allclose(np.asarray(awe16), np.asarray(awe_ref),
                               rtol=5e-2, atol=1e-1)
    np.testing.assert_allclose(np.asarray(alpha16), np.asarray(alpha_ref),
                               rtol=5e-2, atol=1e-1)

    print("KERNEL_OK")
</pallas_src>

<mosaic_0001>
module attributes {stable_mosaic.version = 11 : i64} {
  func.func @attention_kernel(%arg0: i32, %arg1: memref<16x16x128xf32, #tpu.memory_space<vmem>>, %arg2: memref<16x32xf32, #tpu.memory_space<vmem>>, %arg3: memref<128x32xf32, #tpu.memory_space<vmem>>, %arg4: memref<1x32xf32, #tpu.memory_space<vmem>>, %arg5: memref<32x32xf32, #tpu.memory_space<vmem>>, %arg6: memref<1x32xf32, #tpu.memory_space<vmem>>, %arg7: memref<1x32xf32, #tpu.memory_space<vmem>>, %arg8: memref<16x128xf32, #tpu.memory_space<vmem>>, %arg9: memref<16x16xf32, #tpu.memory_space<vmem>>) attributes {dimension_semantics = [#tpu.dimension_semantics<parallel>], iteration_bounds = array<i64: 1>, scalar_prefetch = 0 : i64, scratch_operands = 0 : i64, tpu.core_type = #tpu.core_type<tc>, window_params = [{transform_indices = @transform_0, window_bounds = array<i64: 16, 16, 128>}, {transform_indices = @transform_1, window_bounds = array<i64: 16, 32>}, {pipeline_mode = #tpu.pipeline_mode<synchronous>, transform_indices = @transform_2, window_bounds = array<i64: 128, 32>}, {pipeline_mode = #tpu.pipeline_mode<synchronous>, transform_indices = @transform_3, window_bounds = array<i64: 1, 32>}, {pipeline_mode = #tpu.pipeline_mode<synchronous>, transform_indices = @transform_4, window_bounds = array<i64: 32, 32>}, {pipeline_mode = #tpu.pipeline_mode<synchronous>, transform_indices = @transform_5, window_bounds = array<i64: 1, 32>}, {pipeline_mode = #tpu.pipeline_mode<synchronous>, transform_indices = @transform_6, window_bounds = array<i64: 1, 32>}, {transform_indices = @transform_7, window_bounds = array<i64: 16, 128>}, {transform_indices = @transform_8, window_bounds = array<i64: 16, 16>}]} {
    %c0 = arith.constant 0 : index
    %c0_0 = arith.constant 0 : index
    %c0_1 = arith.constant 0 : index
    %0 = vector.load %arg1[%c0, %c0_0, %c0_1] : memref<16x16x128xf32, #tpu.memory_space<vmem>>, vector<16x16x128xf32>
    %c0_2 = arith.constant 0 : index
    %c0_3 = arith.constant 0 : index
    %1 = vector.load %arg2[%c0_2, %c0_3] : memref<16x32xf32, #tpu.memory_space<vmem>>, vector<16x32xf32>
    %2 = vector.shape_cast %0 : vector<16x16x128xf32> to vector<256x128xf32>
    %c0_4 = arith.constant 0 : index
    %c0_5 = arith.constant 0 : index
    %3 = vector.load %arg3[%c0_4, %c0_5] : memref<128x32xf32, #tpu.memory_space<vmem>>, vector<128x32xf32>
    %cst = arith.constant dense<0.000000e+00> : vector<256x32xf32>
    %4 = tpu.matmul %2, %3, %cst {dimension_numbers = #tpu.dot_dimension_numbers<[1], [0], [0], [1], [0, 0, 1, 1], [], []>} : vector<256x128xf32>, vector<128x32xf32>, vector<256x32xf32> -> vector<256x32xf32>
    %c0_6 = arith.constant 0 : index
    %c0_7 = arith.constant 0 : index
    %5 = vector.load %arg4[%c0_6, %c0_7] : memref<1x32xf32, #tpu.memory_space<vmem>>, vector<1x32xf32>
    %6 = vector.broadcast %5 : vector<1x32xf32> to vector<256x32xf32>
    %7 = arith.addf %4, %6 : vector<256x32xf32>
    %8 = vector.shape_cast %7 : vector<256x32xf32> to vector<16x16x32xf32>
    %c0_8 = arith.constant 0 : index
    %c0_9 = arith.constant 0 : index
    %9 = vector.load %arg5[%c0_8, %c0_9] : memref<32x32xf32, #tpu.memory_space<vmem>>, vector<32x32xf32>
    %cst_10 = arith.constant dense<0.000000e+00> : vector<16x32xf32>
    %10 = tpu.matmul %1, %9, %cst_10 {dimension_numbers = #tpu.dot_dimension_numbers<[1], [0], [0], [1], [0, 0, 1, 1], [], []>} : vector<16x32xf32>, vector<32x32xf32>, vector<16x32xf32> -> vector<16x32xf32>
    %c0_11 = arith.constant 0 : index
    %c0_12 = arith.constant 0 : index
    %11 = vector.load %arg6[%c0_11, %c0_12] : memref<1x32xf32, #tpu.memory_space<vmem>>, vector<1x32xf32>
    %12 = vector.broadcast %11 : vector<1x32xf32> to vector<16x32xf32>
    %13 = arith.addf %10, %12 : vector<16x32xf32>
    %14 = vector.shape_cast %13 : vector<16x32xf32> to vector<16x1x32xf32>
    %15 = vector.broadcast %14 : vector<16x1x32xf32> to vector<16x16x32xf32>
    %16 = arith.addf %8, %15 : vector<16x16x32xf32>
    %cst_13 = arith.constant 0.000000e+00 : f32
    %17 = vector.broadcast %cst_13 : f32 to vector<16x16x32xf32>
    %18 = arith.maximumf %16, %17 : vector<16x16x32xf32>
    %c0_14 = arith.constant 0 : index
    %c0_15 = arith.constant 0 : index
    %19 = vector.load %arg7[%c0_14, %c0_15] : memref<1x32xf32, #tpu.memory_space<vmem>>, vector<1x32xf32>
    %20 = vector.shape_cast %19 : vector<1x32xf32> to vector<1x1x32xf32>
    %21 = vector.broadcast %20 : vector<1x1x32xf32> to vector<16x16x32xf32>
    %22 = arith.mulf %18, %21 : vector<16x16x32xf32>
    %cst_16 = arith.constant dense<0.000000e+00> : vector<16x16xf32>
    %23 = vector.multi_reduction <add>, %22, %cst_16 [2] : vector<16x16x32xf32> to vector<16x16xf32>
    %cst_17 = arith.constant dense<0xFF800000> : vector<16xf32>
    %24 = vector.multi_reduction <maximumf>, %23, %cst_17 [1] : vector<16x16xf32> to vector<16xf32>
    %25 = vector.shape_cast %24 : vector<16xf32> to vector<16x1xf32>
    %26 = vector.broadcast %25 : vector<16x1xf32> to vector<16x16xf32>
    %27 = arith.subf %23, %26 : vector<16x16xf32>
    %28 = math.exp %27 : vector<16x16xf32>
    %cst_18 = arith.constant dense<0.000000e+00> : vector<16xf32>
    %29 = vector.multi_reduction <add>, %28, %cst_18 [1] : vector<16x16xf32> to vector<16xf32>
    %30 = vector.shape_cast %29 : vector<16xf32> to vector<16x1xf32>
    %31 = tpu.reciprocal %30 {approx = true} : vector<16x1xf32> -> vector<16x1xf32>
    %32 = arith.mulf %30, %31 : vector<16x1xf32>
    %cst_19 = arith.constant 2.000000e+00 : f32
    %33 = vector.broadcast %cst_19 : f32 to vector<16x1xf32>
    %34 = arith.subf %33, %32 : vector<16x1xf32>
    %35 = arith.mulf %31, %34 : vector<16x1xf32>
    %36 = vector.broadcast %35 : vector<16x1xf32> to vector<16x16xf32>
    %37 = arith.mulf %28, %36 : vector<16x16xf32>
    %38 = vector.shape_cast %37 : vector<16x16xf32> to vector<16x16x1xf32>
    %39 = vector.broadcast %38 : vector<16x16x1xf32> to vector<16x16x128xf32>
    %40 = arith.mulf %0, %39 : vector<16x16x128xf32>
    %cst_20 = arith.constant dense<0.000000e+00> : vector<16x128xf32>
    %41 = vector.multi_reduction <add>, %40, %cst_20 [1] : vector<16x16x128xf32> to vector<16x128xf32>
    %c0_21 = arith.constant 0 : index
    %c0_22 = arith.constant 0 : index
    %42 = vector.load %arg8[%c0_21, %c0_22] : memref<16x128xf32, #tpu.memory_space<vmem>>, vector<16x128xf32>
    tpu.vector_store %arg8[%c0_21, %c0_22], %41 {strides = array<i32>} : memref<16x128xf32, #tpu.memory_space<vmem>>, vector<16x128xf32>,
    %c0_23 = arith.constant 0 : index
    %c0_24 = arith.constant 0 : index
    %43 = vector.load %arg9[%c0_23, %c0_24] : memref<16x16xf32, #tpu.memory_space<vmem>>, vector<16x16xf32>
    tpu.vector_store %arg9[%c0_23, %c0_24], %37 {strides = array<i32>} : memref<16x16xf32, #tpu.memory_space<vmem>>, vector<16x16xf32>,
    return
  }
  func.func @transform_0(%arg0: i32) -> (i32, i32, i32) {
    %c0_i32 = arith.constant 0 : i32
    %c0_i32_0 = arith.constant 0 : i32
    %c0_i32_1 = arith.constant 0 : i32
    return %arg0, %c0_i32, %c0_i32_0 : i32, i32, i32
  }
  func.func @transform_1(%arg0: i32) -> (i32, i32) {
    %c0_i32 = arith.constant 0 : i32
    %c0_i32_0 = arith.constant 0 : i32
    return %arg0, %c0_i32 : i32, i32
  }
  func.func @transform_2(%arg0: i32) -> (i32, i32) {
    %c0_i32 = arith.constant 0 : i32
    %c0_i32_0 = arith.constant 0 : i32
    %c0_i32_1 = arith.constant 0 : i32
    return %c0_i32, %c0_i32_0 : i32, i32
  }
  func.func @transform_3(%arg0: i32) -> (i32, i32) {
    %c0_i32 = arith.constant 0 : i32
    %c0_i32_0 = arith.constant 0 : i32
    %c0_i32_1 = arith.constant 0 : i32
    return %c0_i32, %c0_i32_0 : i32, i32
  }
  func.func @transform_4(%arg0: i32) -> (i32, i32) {
    %c0_i32 = arith.constant 0 : i32
    %c0_i32_0 = arith.constant 0 : i32
    %c0_i32_1 = arith.constant 0 : i32
    return %c0_i32, %c0_i32_0 : i32, i32
  }
  func.func @transform_5(%arg0: i32) -> (i32, i32) {
    %c0_i32 = arith.constant 0 : i32
    %c0_i32_0 = arith.constant 0 : i32
    %c0_i32_1 = arith.constant 0 : i32
    return %c0_i32, %c0_i32_0 : i32, i32
  }
  func.func @transform_6(%arg0: i32) -> (i32, i32) {
    %c0_i32 = arith.constant 0 : i32
    %c0_i32_0 = arith.constant 0 : i32
    %c0_i32_1 = arith.constant 0 : i32
    return %c0_i32, %c0_i32_0 : i32, i32
  }
  func.func @transform_7(%arg0: i32) -> (i32, i32) {
    %c0_i32 = arith.constant 0 : i32
    %c0_i32_0 = arith.constant 0 : i32
    return %arg0, %c0_i32 : i32, i32
  }
  func.func @transform_8(%arg0: i32) -> (i32, i32) {
    %c0_i32 = arith.constant 0 : i32
    %c0_i32_0 = arith.constant 0 : i32
    return %arg0, %c0_i32 : i32, i32
  }
}

module attributes {stable_mosaic.version = 11 : i64} {
  func.func @attention_kernel(%arg0: i32, %arg1: memref<16x16x128xf32, #tpu.memory_space<vmem>>, %arg2: memref<16x32xf32, #tpu.memory_space<vmem>>, %arg3: memref<128x32xf32, #tpu.memory_space<vmem>>, %arg4: memref<1x32xf32, #tpu.memory_space<vmem>>, %arg5: memref<32x32xf32, #tpu.memory_space<vmem>>, %arg6: memref<1x32xf32, #tpu.memory_space<vmem>>, %arg7: memref<1x32xf32, #tpu.memory_space<vmem>>, %arg8: memref<16x128xf32, #tpu.memory_space<vmem>>, %arg9: memref<16x16xf32, #tpu.memory_space<vmem>>) attributes {dimension_semantics = [#tpu.dimension_semantics<parallel>], iteration_bounds = array<i64: 1>, scalar_prefetch = 0 : i64, scratch_operands = 0 : i64, tpu.core_type = #tpu.core_type<tc>, window_params = [{transform_indices = @transform_0, window_bounds = array<i64: 16, 16, 128>}, {transform_indices = @transform_1, window_bounds = array<i64: 16, 32>}, {pipeline_mode = #tpu.pipeline_mode<synchronous>, transform_indices = @transform_2, window_bounds = array<i64: 128, 32>}, {pipeline_mode = #tpu.pipeline_mode<synchronous>, transform_indices = @transform_3, window_bounds = array<i64: 1, 32>}, {pipeline_mode = #tpu.pipeline_mode<synchronous>, transform_indices = @transform_4, window_bounds = array<i64: 32, 32>}, {pipeline_mode = #tpu.pipeline_mode<synchronous>, transform_indices = @transform_5, window_bounds = array<i64: 1, 32>}, {pipeline_mode = #tpu.pipeline_mode<synchronous>, transform_indices = @transform_6, window_bounds = array<i64: 1, 32>}, {transform_indices = @transform_7, window_bounds = array<i64: 16, 128>}, {transform_indices = @transform_8, window_bounds = array<i64: 16, 16>}]} {
    %c0 = arith.constant 0 : index
    %c0_0 = arith.constant 0 : index
    %c0_1 = arith.constant 0 : index
    %0 = vector.load %arg1[%c0, %c0_0, %c0_1] : memref<16x16x128xf32, #tpu.memory_space<vmem>>, vector<16x16x128xf32>
    %c0_2 = arith.constant 0 : index
    %c0_3 = arith.constant 0 : index
    %1 = vector.load %arg2[%c0_2, %c0_3] : memref<16x32xf32, #tpu.memory_space<vmem>>, vector<16x32xf32>
    %2 = vector.shape_cast %0 : vector<16x16x128xf32> to vector<256x128xf32>
    %c0_4 = arith.constant 0 : index
    %c0_5 = arith.constant 0 : index
    %3 = vector.load %arg3[%c0_4, %c0_5] : memref<128x32xf32, #tpu.memory_space<vmem>>, vector<128x32xf32>
    %cst = arith.constant dense<0.000000e+00> : vector<256x32xf32>
    %4 = tpu.matmul %2, %3, %cst {dimension_numbers = #tpu.dot_dimension_numbers<[1], [0], [0], [1], [0, 0, 1, 1], [], []>} : vector<256x128xf32>, vector<128x32xf32>, vector<256x32xf32> -> vector<256x32xf32>
    %c0_6 = arith.constant 0 : index
    %c0_7 = arith.constant 0 : index
    %5 = vector.load %arg4[%c0_6, %c0_7] : memref<1x32xf32, #tpu.memory_space<vmem>>, vector<1x32xf32>
    %6 = vector.broadcast %5 : vector<1x32xf32> to vector<256x32xf32>
    %7 = arith.addf %4, %6 : vector<256x32xf32>
    %8 = vector.shape_cast %7 : vector<256x32xf32> to vector<16x16x32xf32>
    %c0_8 = arith.constant 0 : index
    %c0_9 = arith.constant 0 : index
    %9 = vector.load %arg5[%c0_8, %c0_9] : memref<32x32xf32, #tpu.memory_space<vmem>>, vector<32x32xf32>
    %cst_10 = arith.constant dense<0.000000e+00> : vector<16x32xf32>
    %10 = tpu.matmul %1, %9, %cst_10 {dimension_numbers = #tpu.dot_dimension_numbers<[1], [0], [0], [1], [0, 0, 1, 1], [], []>} : vector<16x32xf32>, vector<32x32xf32>, vector<16x32xf32> -> vector<16x32xf32>
    %c0_11 = arith.constant 0 : index
    %c0_12 = arith.constant 0 : index
    %11 = vector.load %arg6[%c0_11, %c0_12] : memref<1x32xf32, #tpu.memory_space<vmem>>, vector<1x32xf32>
    %12 = vector.broadcast %11 : vector<1x32xf32> to vector<16x32xf32>
    %13 = arith.addf %10, %12 : vector<16x32xf32>
    %14 = vector.shape_cast %13 : vector<16x32xf32> to vector<16x1x32xf32>
    %15 = vector.broadcast %14 : vector<16x1x32xf32> to vector<16x16x32xf32>
    %16 = arith.addf %8, %15 : vector<16x16x32xf32>
    %cst_13 = arith.constant 0.000000e+00 : f32
    %17 = vector.broadcast %cst_13 : f32 to vector<16x16x32xf32>
    %18 = arith.maximumf %16, %17 : vector<16x16x32xf32>
    %c0_14 = arith.constant 0 : index
    %c0_15 = arith.constant 0 : index
    %19 = vector.load %arg7[%c0_14, %c0_15] : memref<1x32xf32, #tpu.memory_space<vmem>>, vector<1x32xf32>
    %20 = vector.shape_cast %19 : vector<1x32xf32> to vector<1x1x32xf32>
    %21 = vector.broadcast %20 : vector<1x1x32xf32> to vector<16x16x32xf32>
    %22 = arith.mulf %18, %21 : vector<16x16x32xf32>
    %cst_16 = arith.constant dense<0.000000e+00> : vector<16x16xf32>
    %23 = vector.multi_reduction <add>, %22, %cst_16 [2] : vector<16x16x32xf32> to vector<16x16xf32>
    %cst_17 = arith.constant dense<0xFF800000> : vector<16xf32>
    %24 = vector.multi_reduction <maximumf>, %23, %cst_17 [1] : vector<16x16xf32> to vector<16xf32>
    %25 = vector.shape_cast %24 : vector<16xf32> to vector<16x1xf32>
    %26 = vector.broadcast %25 : vector<16x1xf32> to vector<16x16xf32>
    %27 = arith.subf %23, %26 : vector<16x16xf32>
    %28 = math.exp %27 : vector<16x16xf32>
    %cst_18 = arith.constant dense<0.000000e+00> : vector<16xf32>
    %29 = vector.multi_reduction <add>, %28, %cst_18 [1] : vector<16x16xf32> to vector<16xf32>
    %30 = vector.shape_cast %29 : vector<16xf32> to vector<16x1xf32>
    %31 = tpu.reciprocal %30 {approx = true} : vector<16x1xf32> -> vector<16x1xf32>
    %32 = arith.mulf %30, %31 : vector<16x1xf32>
    %cst_19 = arith.constant 2.000000e+00 : f32
    %33 = vector.broadcast %cst_19 : f32 to vector<16x1xf32>
    %34 = arith.subf %33, %32 : vector<16x1xf32>
    %35 = arith.mulf %31, %34 : vector<16x1xf32>
    %36 = vector.broadcast %35 : vector<16x1xf32> to vector<16x16xf32>
    %37 = arith.mulf %28, %36 : vector<16x16xf32>
    %38 = vector.shape_cast %37 : vector<16x16xf32> to vector<16x16x1xf32>
    %39 = vector.broadcast %38 : vector<16x16x1xf32> to vector<16x16x128xf32>
    %40 = arith.mulf %0, %39 : vector<16x16x128xf32>
    %cst_20 = arith.constant dense<0.000000e+00> : vector<16x128xf32>
    %41 = vector.multi_reduction <add>, %40, %cst_20 [1] : vector<16x16x128xf32> to vector<16x128xf32>
    %c0_21 = arith.constant 0 : index
    %c0_22 = arith.constant 0 : index
    %42 = vector.load %arg8[%c0_21, %c0_22] : memref<16x128xf32, #tpu.memory_space<vmem>>, vector<16x128xf32>
    tpu.vector_store %arg8[%c0_21, %c0_22], %41 {strides = array<i32>} : memref<16x128xf32, #tpu.memory_space<vmem>>, vector<16x128xf32>,
    %c0_23 = arith.constant 0 : index
    %c0_24 = arith.constant 0 : index
    %43 = vector.load %arg9[%c0_23, %c0_24] : memref<16x16xf32, #tpu.memory_space<vmem>>, vector<16x16xf32>
    tpu.vector_store %arg9[%c0_23, %c0_24], %37 {strides = array<i32>} : memref<16x16xf32, #tpu.memory_space<vmem>>, vector<16x16xf32>,
    return
  }
  func.func @transform_0(%arg0: i32) -> (i32, i32, i32) {
    %c0_i32 = arith.constant 0 : i32
    %c0_i32_0 = arith.constant 0 : i32
    %c0_i32_1 = arith.constant 0 : i32
    return %arg0, %c0_i32, %c0_i32_0 : i32, i32, i32
  }
  func.func @transform_1(%arg0: i32) -> (i32, i32) {
    %c0_i32 = arith.constant 0 : i32
    %c0_i32_0 = arith.constant 0 : i32
    return %arg0, %c0_i32 : i32, i32
  }
  func.func @transform_2(%arg0: i32) -> (i32, i32) {
    %c0_i32 = arith.constant 0 : i32
    %c0_i32_0 = arith.constant 0 : i32
    %c0_i32_1 = arith.constant 0 : i32
    return %c0_i32, %c0_i32_0 : i32, i32
  }
  func.func @transform_3(%arg0: i32) -> (i32, i32) {
    %c0_i32 = arith.constant 0 : i32
    %c0_i32_0 = arith.constant 0 : i32
    %c0_i32_1 = arith.constant 0 : i32
    return %c0_i32, %c0_i32_0 : i32, i32
  }
  func.func @transform_4(%arg0: i32) -> (i32, i32) {
    %c0_i32 = arith.constant 0 : i32
    %c0_i32_0 = arith.constant 0 : i32
    %c0_i32_1 = arith.constant 0 : i32
    return %c0_i32, %c0_i32_0 : i32, i32
  }
  func.func @transform_5(%arg0: i32) -> (i32, i32) {
    %c0_i32 = arith.constant 0 : i32
    %c0_i32_0 = arith.constant 0 : i32
    %c0_i32_1 = arith.constant 0 : i32
    return %c0_i32, %c0_i32_0 : i32, i32
  }
  func.func @transform_6(%arg0: i32) -> (i32, i32) {
    %c0_i32 = arith.constant 0 : i32
    %c0_i32_0 = arith.constant 0 : i32
    %c0_i32_1 = arith.constant 0 : i32
    return %c0_i32, %c0_i32_0 : i32, i32
  }
  func.func @transform_7(%arg0: i32) -> (i32, i32) {
    %c0_i32 = arith.constant 0 : i32
    %c0_i32_0 = arith.constant 0 : i32
    return %arg0, %c0_i32 : i32, i32
  }
  func.func @transform_8(%arg0: i32) -> (i32, i32) {
    %c0_i32 = arith.constant 0 : i32
    %c0_i32_0 = arith.constant 0 : i32
    return %arg0, %c0_i32 : i32, i32
  }
}

</mosaic_0001>

<llo_original>
// kernel: tpu_custom_call.1
$region0: #{tpu_custom_call.1}
  #allocation0 [shape = 'u32[]', space=smem, size = 0x4, offset = 0x4, fixed_abs, tag = 'smem constant byte address 0x4 - core index']
  #allocation1 [shape = 'u32[144,128]{1,0:T(1,128)}', space=vmem, size = 0x12000, scoped, tag = 'internal scratch']
  %s0 = inlined_call_operand.hbm [shape: f32[16,16,128], index: 0, kind: input, shape index: {}]
  %s1 = inlined_call_operand.vmem [shape: f32[16,32], index: 1, kind: input, shape index: {}]
  %s2 = inlined_call_operand.vmem [shape: f32[128,32], index: 2, kind: input, shape index: {}]
  %s3 = inlined_call_operand.vmem [shape: f32[1,32], index: 3, kind: input, shape index: {}]
  %s4 = inlined_call_operand.vmem [shape: f32[32,32], index: 4, kind: input, shape index: {}]
  %s5 = inlined_call_operand.vmem [shape: f32[1,32], index: 5, kind: input, shape index: {}]
  %s6 = inlined_call_operand.vmem [shape: f32[1,32], index: 6, kind: input, shape index: {}]
  %s7 = inlined_call_operand.hbm [shape: f32[16,128], index: 7, kind: output, shape index: {0}]
  %s8 = inlined_call_operand.hbm [shape: f32[16,16], index: 8, kind: output, shape index: {1}]
  %9 = xla_tuple %s7, %s8
  %s10 = sld [smem:[#allocation0]]
  $region50: #{tpu_custom_call.1} parent=0
    _
  %s12 = ssub.s32 1, %s10
  %s13 = scalar_select 0, %s12, %s10
  $region1: #{tpu_custom_call.1} parent=0
    #allocation2 [shape = 'u8[131072]{0}', space=vmem, size = 0x20000, scoped, tag = 'input window, operand 0, single buffered']
    #allocation3 [shape = 's32[1]{0}', space=sflag, size = 0x4, scoped, tag = 'scoped memory for tpu_custom_call.1']
    #allocation4 [shape = 's32[1]{0}', space=sflag, size = 0x4, scoped, tag = 'scoped memory for tpu_custom_call.1']
    #allocation5 [shape = 'u8[8192]{0}', space=vmem, size = 0x2000, scoped, tag = 'output window, operand 0, single buffered']
    #allocation6 [shape = 'u8[8192]{0}', space=vmem, size = 0x2000, scoped, tag = 'output window, operand 1, single buffered']
    #allocation7 [shape = 's32[1]{0}', space=sflag, size = 0x4, scoped, tag = 'scoped memory for tpu_custom_call.1']
    %14 = vsyncpa [#allocation3], 0
    %15 = vsyncpa [#allocation4], 0
    %16 = vsyncpa [#allocation7], 0
    // Predicated region
    $region2: #{tpu_custom_call.1} parent=1 // pred_check
      _
    $region3: #{tpu_custom_call.1} parent=1 // pred_check_branch
      %18 = sbr.rel (0) target = $region5
    $region4: #{tpu_custom_call.1} parent=1 // pred_region
      %s20 = ssub.s32 4096, 4096
      %21 = vsyncadd [#allocation3], %s20
      %s22 = sshll.u32 [#allocation2], 4
      %s23 = int_to_ptr.vmem [resolvable:$true] %s22
      %28 = dma.hbm_to_vmem [thread:$0]  %s0, 4096, %s23, [#allocation3], 128, 128, 8
    $region5: #{tpu_custom_call.1} parent=1 // pred_fallthru
      _
    // Predicated region
    $region6: #{tpu_custom_call.1} parent=1 // pred_check
      _
    $region7: #{tpu_custom_call.1} parent=1 // pred_check_branch
      %30 = sbr.rel (0) target = $region9
    $region8: #{tpu_custom_call.1} parent=1 // pred_region
      _
    $region9: #{tpu_custom_call.1} parent=1 // pred_fallthru
      _
    // Predicated region
    $region10: #{tpu_custom_call.1} parent=1 // pred_check
      _
    $region11: #{tpu_custom_call.1} parent=1 // pred_check_branch
      %32 = sbr.rel (0) target = $region13
    $region12: #{tpu_custom_call.1} parent=1 // pred_region
      _
    $region13: #{tpu_custom_call.1} parent=1 // pred_fallthru
      _
    // Predicated region
    $region14: #{tpu_custom_call.1} parent=1 // pred_check
      _
    $region15: #{tpu_custom_call.1} parent=1 // pred_check_branch
      %34 = sbr.rel (0) target = $region17
    $region16: #{tpu_custom_call.1} parent=1 // pred_region
      _
    $region17: #{tpu_custom_call.1} parent=1 // pred_fallthru
      _
    // Predicated region
    $region18: #{tpu_custom_call.1} parent=1 // pred_check
      _
    $region19: #{tpu_custom_call.1} parent=1 // pred_check_branch
      %36 = sbr.rel (0) target = $region21
    $region20: #{tpu_custom_call.1} parent=1 // pred_region
      _
    $region21: #{tpu_custom_call.1} parent=1 // pred_fallthru
      _
    // Predicated region
    $region22: #{tpu_custom_call.1} parent=1 // pred_check
      _
    $region23: #{tpu_custom_call.1} parent=1 // pred_check_branch
      %38 = sbr.rel (0) target = $region25
    $region24: #{tpu_custom_call.1} parent=1 // pred_region
      _
    $region25: #{tpu_custom_call.1} parent=1 // pred_fallthru
      _
    // Predicated region
    $region26: #{tpu_custom_call.1} parent=1 // pred_check
      _
    $region27: #{tpu_custom_call.1} parent=1 // pred_check_branch
      %40 = sbr.rel (0) target = $region29
    $region28: #{tpu_custom_call.1} parent=1 // pred_region
      _
    $region29: #{tpu_custom_call.1} parent=1 // pred_fallthru
      _
    // Predicated region
    $region30: #{tpu_custom_call.1} parent=1 // pred_check
      _
    $region31: #{tpu_custom_call.1} parent=1 // pred_check_branch
      %42 = sbr.rel (0) target = $region33
    $region32: #{tpu_custom_call.1} parent=1 // pred_region
      %43 = dma.done [#allocation3], 4096
    $region33: #{tpu_custom_call.1} parent=1 // pred_fallthru
      _
    %v44 = vld [vmem:[#allocation2] sm:$0xff]
    %v45 = vld [vmem:[#allocation2 + $0x8] sm:$0xff]
    %v46 = vld [vmem:[#allocation2 + $0x10] sm:$0xff]
    %v47 = vld [vmem:[#allocation2 + $0x18] sm:$0xff]
    %v48 = vld [vmem:[#allocation2 + $0x20] sm:$0xff]
    %v49 = vld [vmem:[#allocation2 + $0x28] sm:$0xff]
    %v50 = vld [vmem:[#allocation2 + $0x30] sm:$0xff]
    %v51 = vld [vmem:[#allocation2 + $0x38] sm:$0xff]
    %v52 = vld [vmem:[#allocation2 + $0x40] sm:$0xff]
    %v53 = vld [vmem:[#allocation2 + $0x48] sm:$0xff]
    %v54 = vld [vmem:[#allocation2 + $0x50] sm:$0xff]
    %v55 = vld [vmem:[#allocation2 + $0x58] sm:$0xff]
    %v56 = vld [vmem:[#allocation2 + $0x60] sm:$0xff]
    %v57 = vld [vmem:[#allocation2 + $0x68] sm:$0xff]
    %v58 = vld [vmem:[#allocation2 + $0x70] sm:$0xff]
    %v59 = vld [vmem:[#allocation2 + $0x78] sm:$0xff]
    %v60 = vld [vmem:[#allocation2 + $0x80] sm:$0xff]
    %v61 = vld [vmem:[#allocation2 + $0x88] sm:$0xff]
    %v62 = vld [vmem:[#allocation2 + $0x90] sm:$0xff]
    %v63 = vld [vmem:[#allocation2 + $0x98] sm:$0xff]
    %v64 = vld [vmem:[#allocation2 + $0xa0] sm:$0xff]
    %v65 = vld [vmem:[#allocation2 + $0xa8] sm:$0xff]
    %v66 = vld [vmem:[#allocation2 + $0xb0] sm:$0xff]
    %v67 = vld [vmem:[#allocation2 + $0xb8] sm:$0xff]
    %v68 = vld [vmem:[#allocation2 + $0xc0] sm:$0xff]
    %v69 = vld [vmem:[#allocation2 + $0xc8] sm:$0xff]
    %v70 = vld [vmem:[#allocation2 + $0xd0] sm:$0xff]
    %v71 = vld [vmem:[#allocation2 + $0xd8] sm:$0xff]
    %v72 = vld [vmem:[#allocation2 + $0xe0] sm:$0xff]
    %v73 = vld [vmem:[#allocation2 + $0xe8] sm:$0xff]
    %v74 = vld [vmem:[#allocation2 + $0xf0] sm:$0xff]
    %v75 = vld [vmem:[#allocation2 + $0xf8] sm:$0xff]
    %v76 = vld [vmem:[%s1] sm:$0xff]
    %v77 = vld [vmem:[%s1 + $0x8] sm:$0xff]
    %v78 = vld [vmem:[%s2] sm:$0xff]
    %v79 = vld [vmem:[%s2 + $0x8] sm:$0xff]
    %v80 = vld [vmem:[%s2 + $0x10] sm:$0xff]
    %v81 = vld [vmem:[%s2 + $0x18] sm:$0xff]
    %v82 = vld [vmem:[%s2 + $0x20] sm:$0xff]
    %v83 = vld [vmem:[%s2 + $0x28] sm:$0xff]
    %v84 = vld [vmem:[%s2 + $0x30] sm:$0xff]
    %v85 = vld [vmem:[%s2 + $0x38] sm:$0xff]
    %v86 = vld [vmem:[%s2 + $0x40] sm:$0xff]
    %v87 = vld [vmem:[%s2 + $0x48] sm:$0xff]
    %v88 = vld [vmem:[%s2 + $0x50] sm:$0xff]
    %v89 = vld [vmem:[%s2 + $0x58] sm:$0xff]
    %v90 = vld [vmem:[%s2 + $0x60] sm:$0xff]
    %v91 = vld [vmem:[%s2 + $0x68] sm:$0xff]
    %v92 = vld [vmem:[%s2 + $0x70] sm:$0xff]
    %v93 = vld [vmem:[%s2 + $0x78] sm:$0xff]
    %v94 = vld [vmem:[%s3] sm:$0x1]
    %v96 = vlaneseq
    %v97 = vshrl.u32 %v96, 7
    %v98 = vsub.s32 0, %v97
    %v99 = vrot.slane %v94, %v98
    %101 = vmatprep.subr.mxu0 0.0
    %102 = vmatpush1.msra.mxu0 %v93
    %103 = vmatprep.subr.mxu0 0.0
    %104 = vmatpush1.msra.mxu0 %v92
    %105 = vmatprep.subr.mxu0 0.0
    %106 = vmatpush1.msra.mxu0 %v91
    %107 = vmatprep.subr.mxu0 0.0
    %108 = vmatpush1.msra.mxu0 %v90
    %109 = vmatprep.subr.mxu0 0.0
    %110 = vmatpush1.msra.mxu0 %v89
    %111 = vmatprep.subr.mxu0 0.0
    %112 = vmatpush1.msra.mxu0 %v88
    %113 = vmatprep.subr.mxu0 0.0
    %114 = vmatpush1.msra.mxu0 %v87
    %115 = vmatprep.subr.mxu0 0.0
    %116 = vmatpush1.msra.mxu0 %v86
    %117 = vmatprep.subr.mxu0 0.0
    %118 = vmatpush1.msra.mxu0 %v85
    %119 = vmatprep.subr.mxu0 0.0
    %120 = vmatpush1.msra.mxu0 %v84
    %121 = vmatprep.subr.mxu0 0.0
    %122 = vmatpush1.msra.mxu0 %v83
    %123 = vmatprep.subr.mxu0 0.0
    %124 = vmatpush1.msra.mxu0 %v82
    %125 = vmatprep.subr.mxu0 0.0
    %126 = vmatpush1.msra.mxu0 %v81
    %127 = vmatprep.subr.mxu0 0.0
    %128 = vmatpush1.msra.mxu0 %v80
    %129 = vmatprep.subr.mxu0 0.0
    %130 = vmatpush1.msra.mxu0 %v79
    %131 = vmatprep.subr.mxu0 0.0
    %132 = vmatpush1.msra.mxu0 %v78
    %133 = vmatprep.subr.mxu0 0.0
    %134 = vmatpush2.msra.mxu0 0.0
    %135 = vmatprep.subr.mxu0 0.0
    %136 = vmatpush2.msra.mxu0 0.0
    %137 = vmatprep.subr.mxu0 0.0
    %138 = vmatpush2.msra.mxu0 0.0
    %139 = vmatprep.subr.mxu0 0.0
    %140 = vmatpush2.msra.mxu0 0.0
    %141 = vmatprep.subr.mxu0 0.0
    %142 = vmatpush2.msra.mxu0 0.0
    %143 = vmatprep.subr.mxu0 0.0
    %144 = vmatpush2.msra.mxu0 0.0
    %145 = vmatprep.subr.mxu0 0.0
    %146 = vmatpush2.msra.mxu0 0.0
    %147 = vmatprep.subr.mxu0 0.0
    %148 = vmatpush2.msra.mxu0 0.0
    %149 = vmatprep.subr.mxu0 0.0
    %150 = vmatpush2.msra.mxu0 0.0
    %151 = vmatprep.subr.mxu0 0.0
    %152 = vmatpush2.msra.mxu0 0.0
    %153 = vmatprep.subr.mxu0 0.0
    %154 = vmatpush2.msra.mxu0 0.0
    %155 = vmatprep.subr.mxu0 0.0
    %156 = vmatpush2.msra.mxu0 0.0
    %157 = vmatprep.subr.mxu0 0.0
    %158 = vmatpush2.msra.mxu0 0.0
    %159 = vmatprep.subr.mxu0 0.0
    %160 = vmatpush2.msra.mxu0 0.0
    %161 = vmatprep.subr.mxu0 0.0
    %162 = vmatpush2.msra.mxu0 0.0
    %163 = vmatprep.subr.mxu0 0.0
    %164 = vmatpush2.msra.mxu0 0.0
    %165 = vmatprep.mubr.f32.mxu0 0.0
    %166 = vmatmul.mubr.f32.gmra.mxu0 %v44
    %v167 = vpop.f32.mrf.mxu0
    %v168 = vadd.f32 %v99, %v167
    %v169 = vpop.f32.mrf.mxu0
    %170 = vmatprep.mubr.f32.mxu0 0.0
    %171 = vmatmul.mubr.f32.gmra.mxu0 %v45
    %v172 = vpop.f32.mrf.mxu0
    %v173 = vadd.f32 %v99, %v172
    %v174 = vpop.f32.mrf.mxu0
    %175 = vmatprep.mubr.f32.mxu0 0.0
    %176 = vmatmul.mubr.f32.gmra.mxu0 %v46
    %v177 = vpop.f32.mrf.mxu0
    %v178 = vadd.f32 %v99, %v177
    %v179 = vpop.f32.mrf.mxu0
    %180 = vmatprep.mubr.f32.mxu0 0.0
    %181 = vmatmul.mubr.f32.gmra.mxu0 %v47
    %v182 = vpop.f32.mrf.mxu0
    %v183 = vadd.f32 %v99, %v182
    %v184 = vpop.f32.mrf.mxu0
    %185 = vmatprep.mubr.f32.mxu0 0.0
    %186 = vmatmul.mubr.f32.gmra.mxu0 %v48
    %v187 = vpop.f32.mrf.mxu0
    %v188 = vadd.f32 %v99, %v187
    %v189 = vpop.f32.mrf.mxu0
    %190 = vmatprep.mubr.f32.mxu0 0.0
    %191 = vmatmul.mubr.f32.gmra.mxu0 %v49
    %v192 = vpop.f32.mrf.mxu0
    %v193 = vadd.f32 %v99, %v192
    %v194 = vpop.f32.mrf.mxu0
    %195 = vmatprep.mubr.f32.mxu0 0.0
    %196 = vmatmul.mubr.f32.gmra.mxu0 %v50
    %v197 = vpop.f32.mrf.mxu0
    %v198 = vadd.f32 %v99, %v197
    %v199 = vpop.f32.mrf.mxu0
    %200 = vmatprep.mubr.f32.mxu0 0.0
    %201 = vmatmul.mubr.f32.gmra.mxu0 %v51
    %v202 = vpop.f32.mrf.mxu0
    %v203 = vadd.f32 %v99, %v202
    %v204 = vpop.f32.mrf.mxu0
    %205 = vmatprep.mubr.f32.mxu0 0.0
    %206 = vmatmul.mubr.f32.gmra.mxu0 %v52
    %v207 = vpop.f32.mrf.mxu0
    %v208 = vadd.f32 %v99, %v207
    %v209 = vpop.f32.mrf.mxu0
    %210 = vmatprep.mubr.f32.mxu0 0.0
    %211 = vmatmul.mubr.f32.gmra.mxu0 %v53
    %v212 = vpop.f32.mrf.mxu0
    %v213 = vadd.f32 %v99, %v212
    %v214 = vpop.f32.mrf.mxu0
    %215 = vmatprep.mubr.f32.mxu0 0.0
    %216 = vmatmul.mubr.f32.gmra.mxu0 %v54
    %v217 = vpop.f32.mrf.mxu0
    %v218 = vadd.f32 %v99, %v217
    %v219 = vpop.f32.mrf.mxu0
    %220 = vmatprep.mubr.f32.mxu0 0.0
    %221 = vmatmul.mubr.f32.gmra.mxu0 %v55
    %v222 = vpop.f32.mrf.mxu0
    %v223 = vadd.f32 %v99, %v222
    %v224 = vpop.f32.mrf.mxu0
    %225 = vmatprep.mubr.f32.mxu0 0.0
    %226 = vmatmul.mubr.f32.gmra.mxu0 %v56
    %v227 = vpop.f32.mrf.mxu0
    %v228 = vadd.f32 %v99, %v227
    %v229 = vpop.f32.mrf.mxu0
    %230 = vmatprep.mubr.f32.mxu0 0.0
    %231 = vmatmul.mubr.f32.gmra.mxu0 %v57
    %v232 = vpop.f32.mrf.mxu0
    %v233 = vadd.f32 %v99, %v232
    %v234 = vpop.f32.mrf.mxu0
    %235 = vmatprep.mubr.f32.mxu0 0.0
    %236 = vmatmul.mubr.f32.gmra.mxu0 %v58
    %v237 = vpop.f32.mrf.mxu0
    %v238 = vadd.f32 %v99, %v237
    %v239 = vpop.f32.mrf.mxu0
    %240 = vmatprep.mubr.f32.mxu0 0.0
    %241 = vmatmul.mubr.f32.gmra.mxu0 %v59
    %v242 = vpop.f32.mrf.mxu0
    %v243 = vadd.f32 %v99, %v242
    %v244 = vpop.f32.mrf.mxu0
    %245 = vmatprep.mubr.f32.mxu0 0.0
    %246 = vmatmul.mubr.f32.gmra.mxu0 %v60
    %v247 = vpop.f32.mrf.mxu0
    %v248 = vadd.f32 %v99, %v247
    %v249 = vpop.f32.mrf.mxu0
    %250 = vmatprep.mubr.f32.mxu0 0.0
    %251 = vmatmul.mubr.f32.gmra.mxu0 %v61
    %v252 = vpop.f32.mrf.mxu0
    %v253 = vadd.f32 %v99, %v252
    %v254 = vpop.f32.mrf.mxu0
    %255 = vmatprep.mubr.f32.mxu0 0.0
    %256 = vmatmul.mubr.f32.gmra.mxu0 %v62
    %v257 = vpop.f32.mrf.mxu0
    %v258 = vadd.f32 %v99, %v257
    %v259 = vpop.f32.mrf.mxu0
    %260 = vmatprep.mubr.f32.mxu0 0.0
    %261 = vmatmul.mubr.f32.gmra.mxu0 %v63
    %v262 = vpop.f32.mrf.mxu0
    %v263 = vadd.f32 %v99, %v262
    %v264 = vpop.f32.mrf.mxu0
    %265 = vmatprep.mubr.f32.mxu0 0.0
    %266 = vmatmul.mubr.f32.gmra.mxu0 %v64
    %v267 = vpop.f32.mrf.mxu0
    %v268 = vadd.f32 %v99, %v267
    %v269 = vpop.f32.mrf.mxu0
    %270 = vmatprep.mubr.f32.mxu0 0.0
    %271 = vmatmul.mubr.f32.gmra.mxu0 %v65
    %v272 = vpop.f32.mrf.mxu0
    %v273 = vadd.f32 %v99, %v272
    %v274 = vpop.f32.mrf.mxu0
    %275 = vmatprep.mubr.f32.mxu0 0.0
    %276 = vmatmul.mubr.f32.gmra.mxu0 %v66
    %v277 = vpop.f32.mrf.mxu0
    %v278 = vadd.f32 %v99, %v277
    %v279 = vpop.f32.mrf.mxu0
    %280 = vmatprep.mubr.f32.mxu0 0.0
    %281 = vmatmul.mubr.f32.gmra.mxu0 %v67
    %v282 = vpop.f32.mrf.mxu0
    %v283 = vadd.f32 %v99, %v282
    %v284 = vpop.f32.mrf.mxu0
    %285 = vmatprep.mubr.f32.mxu0 0.0
    %286 = vmatmul.mubr.f32.gmra.mxu0 %v68
    %v287 = vpop.f32.mrf.mxu0
    %v288 = vadd.f32 %v99, %v287
    %v289 = vpop.f32.mrf.mxu0
    %290 = vmatprep.mubr.f32.mxu0 0.0
    %291 = vmatmul.mubr.f32.gmra.mxu0 %v69
    %v292 = vpop.f32.mrf.mxu0
    %v293 = vadd.f32 %v99, %v292
    %v294 = vpop.f32.mrf.mxu0
    %295 = vmatprep.mubr.f32.mxu0 0.0
    %296 = vmatmul.mubr.f32.gmra.mxu0 %v70
    %v297 = vpop.f32.mrf.mxu0
    %v298 = vadd.f32 %v99, %v297
    %v299 = vpop.f32.mrf.mxu0
    %300 = vmatprep.mubr.f32.mxu0 0.0
    %301 = vmatmul.mubr.f32.gmra.mxu0 %v71
    %v302 = vpop.f32.mrf.mxu0
    %v303 = vadd.f32 %v99, %v302
    %v304 = vpop.f32.mrf.mxu0
    %305 = vmatprep.mubr.f32.mxu0 0.0
    %306 = vmatmul.mubr.f32.gmra.mxu0 %v72
    %v307 = vpop.f32.mrf.mxu0
    %v308 = vadd.f32 %v99, %v307
    %v309 = vpop.f32.mrf.mxu0
    %310 = vmatprep.mubr.f32.mxu0 0.0
    %311 = vmatmul.mubr.f32.gmra.mxu0 %v73
    %v312 = vpop.f32.mrf.mxu0
    %v313 = vadd.f32 %v99, %v312
    %v314 = vpop.f32.mrf.mxu0
    %315 = vmatprep.mubr.f32.mxu0 0.0
    %316 = vmatmul.mubr.f32.gmra.mxu0 %v74
    %v317 = vpop.f32.mrf.mxu0
    %v318 = vadd.f32 %v99, %v317
    %v319 = vpop.f32.mrf.mxu0
    %320 = vmatprep.mubr.f32.mxu0 0.0
    %321 = vmatmul.mubr.f32.gmra.mxu0 %v75
    %v322 = vpop.f32.mrf.mxu0
    %v323 = vadd.f32 %v99, %v322
    %v324 = vpop.f32.mrf.mxu0
    %325 = vdwg.mxu0
    %v326 = vld [vmem:[%s4] sm:$0xff]
    %v327 = vld [vmem:[%s4 + $0x8] sm:$0xff]
    %v328 = vld [vmem:[%s4 + $0x10] sm:$0xff]
    %v329 = vld [vmem:[%s4 + $0x18] sm:$0xff]
    %v330 = vld [vmem:[%s5] sm:$0x1]
    %v332 = vlaneseq
    %v333 = vshrl.u32 %v332, 7
    %v334 = vsub.s32 0, %v333
    %v335 = vrot.slane %v330, %v334
    %vm337 = vcmask 261120
    %v339 = vsel %vm337, %v76, 0
    %v342 = vsel %vm337, %v77, 0
    %344 = vmatprep.subr.mxu0 0.0
    %345 = vmatpush1.msra.mxu0 0.0
    %346 = vmatprep.subr.mxu0 0.0
    %347 = vmatpush1.msra.mxu0 0.0
    %348 = vmatprep.subr.mxu0 0.0
    %349 = vmatpush1.msra.mxu0 0.0
    %350 = vmatprep.subr.mxu0 0.0
    %351 = vmatpush1.msra.mxu0 0.0
    %352 = vmatprep.subr.mxu0 0.0
    %353 = vmatpush1.msra.mxu0 0.0
    %354 = vmatprep.subr.mxu0 0.0
    %355 = vmatpush1.msra.mxu0 0.0
    %356 = vmatprep.subr.mxu0 0.0
    %357 = vmatpush1.msra.mxu0 0.0
    %358 = vmatprep.subr.mxu0 0.0
    %359 = vmatpush1.msra.mxu0 0.0
    %360 = vmatprep.subr.mxu0 0.0
    %361 = vmatpush1.msra.mxu0 0.0
    %362 = vmatprep.subr.mxu0 0.0
    %363 = vmatpush1.msra.mxu0 0.0
    %364 = vmatprep.subr.mxu0 0.0
    %365 = vmatpush1.msra.mxu0 0.0
    %366 = vmatprep.subr.mxu0 0.0
    %367 = vmatpush1.msra.mxu0 0.0
    %368 = vmatprep.subr.mxu0 0.0
    %369 = vmatpush1.msra.mxu0 %v329
    %370 = vmatprep.subr.mxu0 0.0
    %371 = vmatpush1.msra.mxu0 %v328
    %372 = vmatprep.subr.mxu0 0.0
    %373 = vmatpush1.msra.mxu0 %v327
    %374 = vmatprep.subr.mxu0 0.0
    %375 = vmatpush1.msra.mxu0 %v326
    %376 = vmatprep.subr.mxu0 0.0
    %377 = vmatpush2.msra.mxu0 0.0
    %378 = vmatprep.subr.mxu0 0.0
    %379 = vmatpush2.msra.mxu0 0.0
    %380 = vmatprep.subr.mxu0 0.0
    %381 = vmatpush2.msra.mxu0 0.0
    %382 = vmatprep.subr.mxu0 0.0
    %383 = vmatpush2.msra.mxu0 0.0
    %384 = vmatprep.subr.mxu0 0.0
    %385 = vmatpush2.msra.mxu0 0.0
    %386 = vmatprep.subr.mxu0 0.0
    %387 = vmatpush2.msra.mxu0 0.0
    %388 = vmatprep.subr.mxu0 0.0
    %389 = vmatpush2.msra.mxu0 0.0
    %390 = vmatprep.subr.mxu0 0.0
    %391 = vmatpush2.msra.mxu0 0.0
    %392 = vmatprep.subr.mxu0 0.0
    %393 = vmatpush2.msra.mxu0 0.0
    %394 = vmatprep.subr.mxu0 0.0
    %395 = vmatpush2.msra.mxu0 0.0
    %396 = vmatprep.subr.mxu0 0.0
    %397 = vmatpush2.msra.mxu0 0.0
    %398 = vmatprep.subr.mxu0 0.0
    %399 = vmatpush2.msra.mxu0 0.0
    %400 = vmatprep.subr.mxu0 0.0
    %401 = vmatpush2.msra.mxu0 0.0
    %402 = vmatprep.subr.mxu0 0.0
    %403 = vmatpush2.msra.mxu0 0.0
    %404 = vmatprep.subr.mxu0 0.0
    %405 = vmatpush2.msra.mxu0 0.0
    %406 = vmatprep.subr.mxu0 0.0
    %407 = vmatpush2.msra.mxu0 0.0
    %408 = vmatprep.mubr.f32.mxu0 0.0
    %409 = vmatmul.mubr.f32.gmra.mxu0 %v339
    %v410 = vpop.f32.mrf.mxu0
    %v411 = vadd.f32 %v335, %v410
    %v412 = vpop.f32.mrf.mxu0
    %413 = vmatprep.mubr.f32.mxu0 0.0
    %414 = vmatmul.mubr.f32.gmra.mxu0 %v342
    %v415 = vpop.f32.mrf.mxu0
    %v416 = vadd.f32 %v335, %v415
    %v417 = vpop.f32.mrf.mxu0
    %418 = vdwg.mxu0
    %v421 = vcombine.high %v411, %v411
    %v423 = vunpack.c.l.s4 1966171168
    %v424 = vunpack.c.0.s8 %v423
    %v425 = vlaneseq
    %v426 = vshrl.u32 %v425, 7
    %v427 = vsub.s32 %v424, %v426
    %v428 = vrot.slane %v411, %v427
    %v430 = vunpack.c.l.s4 1966171168
    %v431 = vunpack.c.0.s8 %v430
    %v432 = vlaneseq
    %v433 = vshrl.u32 %v432, 7
    %v434 = vsub.s32 %v431, %v433
    %v435 = vrot.slane %v421, %v434
    %v436 = vcombine.high %v428, %v428
    %v437 = vcombine.high %v435, %v435
    %v439 = vunpack.c.l.s4 1966171168
    %v440 = vunpack.c.0.s8 %v439
    %v441 = vlaneseq
    %v442 = vshrl.u32 %v441, 7
    %v443 = vsub.s32 %v440, %v442
    %v444 = vrot.slane %v428, %v443
    %v446 = vunpack.c.l.s4 1966171168
    %v447 = vunpack.c.0.s8 %v446
    %v448 = vlaneseq
    %v449 = vshrl.u32 %v448, 7
    %v450 = vsub.s32 %v447, %v449
    %v451 = vrot.slane %v435, %v450
    %v453 = vunpack.c.l.s4 1966171168
    %v454 = vunpack.c.0.s8 %v453
    %v455 = vlaneseq
    %v456 = vshrl.u32 %v455, 7
    %v457 = vsub.s32 %v454, %v456
    %v458 = vrot.slane %v436, %v457
    %v460 = vunpack.c.l.s4 1966171168
    %v461 = vunpack.c.0.s8 %v460
    %v462 = vlaneseq
    %v463 = vshrl.u32 %v462, 7
    %v464 = vsub.s32 %v461, %v463
    %v465 = vrot.slane %v437, %v464
    %v466 = vcombine.high %v444, %v444
    %v467 = vcombine.high %v451, %v451
    %v468 = vcombine.high %v458, %v458
    %v469 = vcombine.high %v465, %v465
    %v470 = vcombine.high %v416, %v416
    %v472 = vunpack.c.l.s4 1966171168
    %v473 = vunpack.c.0.s8 %v472
    %v474 = vlaneseq
    %v475 = vshrl.u32 %v474, 7
    %v476 = vsub.s32 %v473, %v475
    %v477 = vrot.slane %v416, %v476
    %v479 = vunpack.c.l.s4 1966171168
    %v480 = vunpack.c.0.s8 %v479
    %v481 = vlaneseq
    %v482 = vshrl.u32 %v481, 7
    %v483 = vsub.s32 %v480, %v482
    %v484 = vrot.slane %v470, %v483
    %v485 = vcombine.high %v477, %v477
    %v486 = vcombine.high %v484, %v484
    %v488 = vunpack.c.l.s4 1966171168
    %v489 = vunpack.c.0.s8 %v488
    %v490 = vlaneseq
    %v491 = vshrl.u32 %v490, 7
    %v492 = vsub.s32 %v489, %v491
    %v493 = vrot.slane %v477, %v492
    %v495 = vunpack.c.l.s4 1966171168
    %v496 = vunpack.c.0.s8 %v495
    %v497 = vlaneseq
    %v498 = vshrl.u32 %v497, 7
    %v499 = vsub.s32 %v496, %v498
    %v500 = vrot.slane %v484, %v499
    %v502 = vunpack.c.l.s4 1966171168
    %v503 = vunpack.c.0.s8 %v502
    %v504 = vlaneseq
    %v505 = vshrl.u32 %v504, 7
    %v506 = vsub.s32 %v503, %v505
    %v507 = vrot.slane %v485, %v506
    %v509 = vunpack.c.l.s4 1966171168
    %v510 = vunpack.c.0.s8 %v509
    %v511 = vlaneseq
    %v512 = vshrl.u32 %v511, 7
    %v513 = vsub.s32 %v510, %v512
    %v514 = vrot.slane %v486, %v513
    %v515 = vcombine.high %v493, %v493
    %v516 = vcombine.high %v500, %v500
    %v517 = vcombine.high %v507, %v507
    %v518 = vcombine.high %v514, %v514
    %v519 = vlaneseq
    %v520 = vshrl.u32 %v519, 7
    %v521 = vsub.s32 0, %v520
    %v522 = vrot.slane %v444, %v521
    %v523 = vlaneseq
    %v524 = vshrl.u32 %v523, 7
    %v525 = vsub.s32 0, %v524
    %v526 = vrot.slane %v458, %v525
    %v527 = vlaneseq
    %v528 = vshrl.u32 %v527, 7
    %v529 = vsub.s32 0, %v528
    %v530 = vrot.slane %v466, %v529
    %v531 = vlaneseq
    %v532 = vshrl.u32 %v531, 7
    %v533 = vsub.s32 0, %v532
    %v534 = vrot.slane %v468, %v533
    %v535 = vlaneseq
    %v536 = vshrl.u32 %v535, 7
    %v537 = vsub.s32 0, %v536
    %v538 = vrot.slane %v451, %v537
    %v539 = vlaneseq
    %v540 = vshrl.u32 %v539, 7
    %v541 = vsub.s32 0, %v540
    %v542 = vrot.slane %v465, %v541
    %v543 = vlaneseq
    %v544 = vshrl.u32 %v543, 7
    %v545 = vsub.s32 0, %v544
    %v546 = vrot.slane %v467, %v545
    %v547 = vlaneseq
    %v548 = vshrl.u32 %v547, 7
    %v549 = vsub.s32 0, %v548
    %v550 = vrot.slane %v469, %v549
    %v551 = vlaneseq
    %v552 = vshrl.u32 %v551, 7
    %v553 = vsub.s32 0, %v552
    %v554 = vrot.slane %v493, %v553
    %v555 = vlaneseq
    %v556 = vshrl.u32 %v555, 7
    %v557 = vsub.s32 0, %v556
    %v558 = vrot.slane %v507, %v557
    %v559 = vlaneseq
    %v560 = vshrl.u32 %v559, 7
    %v561 = vsub.s32 0, %v560
    %v562 = vrot.slane %v515, %v561
    %v563 = vlaneseq
    %v564 = vshrl.u32 %v563, 7
    %v565 = vsub.s32 0, %v564
    %v566 = vrot.slane %v517, %v565
    %v567 = vlaneseq
    %v568 = vshrl.u32 %v567, 7
    %v569 = vsub.s32 0, %v568
    %v570 = vrot.slane %v500, %v569
    %v571 = vlaneseq
    %v572 = vshrl.u32 %v571, 7
    %v573 = vsub.s32 0, %v572
    %v574 = vrot.slane %v514, %v573
    %v575 = vlaneseq
    %v576 = vshrl.u32 %v575, 7
    %v577 = vsub.s32 0, %v576
    %v578 = vrot.slane %v516, %v577
    %v579 = vlaneseq
    %v580 = vshrl.u32 %v579, 7
    %v581 = vsub.s32 0, %v580
    %v582 = vrot.slane %v518, %v581
    %v599 = vadd.f32 %v168, %v522
    %v600 = vadd.f32 %v173, %v522
    %v601 = vadd.f32 %v178, %v526
    %v602 = vadd.f32 %v183, %v526
    %v603 = vadd.f32 %v188, %v530
    %v604 = vadd.f32 %v193, %v530
    %v605 = vadd.f32 %v198, %v534
    %v606 = vadd.f32 %v203, %v534
    %v607 = vadd.f32 %v208, %v538
    %v608 = vadd.f32 %v213, %v538
    %v609 = vadd.f32 %v218, %v542
    %v610 = vadd.f32 %v223, %v542
    %v611 = vadd.f32 %v228, %v546
    %v612 = vadd.f32 %v233, %v546
    %v613 = vadd.f32 %v238, %v550
    %v614 = vadd.f32 %v243, %v550
    %v615 = vadd.f32 %v248, %v554
    %v616 = vadd.f32 %v253, %v554
    %v617 = vadd.f32 %v258, %v558
    %v618 = vadd.f32 %v263, %v558
    %v619 = vadd.f32 %v268, %v562
    %v620 = vadd.f32 %v273, %v562
    %v621 = vadd.f32 %v278, %v566
    %v622 = vadd.f32 %v283, %v566
    %v623 = vadd.f32 %v288, %v570
    %v624 = vadd.f32 %v293, %v570
    %v625 = vadd.f32 %v298, %v574
    %v626 = vadd.f32 %v303, %v574
    %v627 = vadd.f32 %v308, %v578
    %v628 = vadd.f32 %v313, %v578
    %v629 = vadd.f32 %v318, %v582
    %v630 = vadd.f32 %v323, %v582
    %v631 = vmax.f32 %v599, 0.0
    %v632 = vmax.f32 %v600, 0.0
    %v633 = vmax.f32 %v601, 0.0
    %v634 = vmax.f32 %v602, 0.0
    %v635 = vmax.f32 %v603, 0.0
    %v636 = vmax.f32 %v604, 0.0
    %v637 = vmax.f32 %v605, 0.0
    %v638 = vmax.f32 %v606, 0.0
    %v639 = vmax.f32 %v607, 0.0
    %v640 = vmax.f32 %v608, 0.0
    %v641 = vmax.f32 %v609, 0.0
    %v642 = vmax.f32 %v610, 0.0
    %v643 = vmax.f32 %v611, 0.0
    %v644 = vmax.f32 %v612, 0.0
    %v645 = vmax.f32 %v613, 0.0
    %v646 = vmax.f32 %v614, 0.0
    %v647 = vmax.f32 %v615, 0.0
    %v648 = vmax.f32 %v616, 0.0
    %v649 = vmax.f32 %v617, 0.0
    %v650 = vmax.f32 %v618, 0.0
    %v651 = vmax.f32 %v619, 0.0
    %v652 = vmax.f32 %v620, 0.0
    %v653 = vmax.f32 %v621, 0.0
    %v654 = vmax.f32 %v622, 0.0
    %v655 = vmax.f32 %v623, 0.0
    %v656 = vmax.f32 %v624, 0.0
    %v657 = vmax.f32 %v625, 0.0
    %v658 = vmax.f32 %v626, 0.0
    %v659 = vmax.f32 %v627, 0.0
    %v660 = vmax.f32 %v628, 0.0
    %v661 = vmax.f32 %v629, 0.0
    %v662 = vmax.f32 %v630, 0.0
    %v663 = vld [vmem:[%s6] sm:$0x1]
    %v665 = vlaneseq
    %v666 = vshrl.u32 %v665, 7
    %v667 = vsub.s32 0, %v666
    %v668 = vrot.slane %v663, %v667
    %v670 = vmul.f32 %v631, %v668
    %v671 = vmul.f32 %v632, %v668
    %v672 = vmul.f32 %v633, %v668
    %v673 = vmul.f32 %v634, %v668
    %v674 = vmul.f32 %v635, %v668
    %v675 = vmul.f32 %v636, %v668
    %v676 = vmul.f32 %v637, %v668
    %v677 = vmul.f32 %v638, %v668
    %v678 = vmul.f32 %v639, %v668
    %v679 = vmul.f32 %v640, %v668
    %v680 = vmul.f32 %v641, %v668
    %v681 = vmul.f32 %v642, %v668
    %v682 = vmul.f32 %v643, %v668
    %v683 = vmul.f32 %v644, %v668
    %v684 = vmul.f32 %v645, %v668
    %v685 = vmul.f32 %v646, %v668
    %v686 = vmul.f32 %v647, %v668
    %v687 = vmul.f32 %v648, %v668
    %v688 = vmul.f32 %v649, %v668
    %v689 = vmul.f32 %v650, %v668
    %v690 = vmul.f32 %v651, %v668
    %v691 = vmul.f32 %v652, %v668
    %v692 = vmul.f32 %v653, %v668
    %v693 = vmul.f32 %v654, %v668
    %v694 = vmul.f32 %v655, %v668
    %v695 = vmul.f32 %v656, %v668
    %v696 = vmul.f32 %v657, %v668
    %v697 = vmul.f32 %v658, %v668
    %v698 = vmul.f32 %v659, %v668
    %v699 = vmul.f32 %v660, %v668
    %v700 = vmul.f32 %v661, %v668
    %v701 = vmul.f32 %v662, %v668
    %v702 = vsel %vm337, %v670, 0.0
    %703 = vadd.xlane.f32.xlu0 %v702
    %v704 = vpop.xlane.xlu0 %703
    %v705 = vsel %vm337, %v671, 0.0
    %706 = vadd.xlane.f32.xlu0 %v705
    %v707 = vpop.xlane.xlu0 %706
    %v708 = vsel %vm337, %v672, 0.0
    %709 = vadd.xlane.f32.xlu0 %v708
    %v710 = vpop.xlane.xlu0 %709
    %v711 = vsel %vm337, %v673, 0.0
    %712 = vadd.xlane.f32.xlu0 %v711
    %v713 = vpop.xlane.xlu0 %712
    %v714 = vsel %vm337, %v674, 0.0
    %715 = vadd.xlane.f32.xlu0 %v714
    %v716 = vpop.xlane.xlu0 %715
    %v717 = vsel %vm337, %v675, 0.0
    %718 = vadd.xlane.f32.xlu0 %v717
    %v719 = vpop.xlane.xlu0 %718
    %v720 = vsel %vm337, %v676, 0.0
    %721 = vadd.xlane.f32.xlu0 %v720
    %v722 = vpop.xlane.xlu0 %721
    %v723 = vsel %vm337, %v677, 0.0
    %724 = vadd.xlane.f32.xlu0 %v723
    %v725 = vpop.xlane.xlu0 %724
    %v726 = vsel %vm337, %v678, 0.0
    %727 = vadd.xlane.f32.xlu0 %v726
    %v728 = vpop.xlane.xlu0 %727
    %v729 = vsel %vm337, %v679, 0.0
    %730 = vadd.xlane.f32.xlu0 %v729
    %v731 = vpop.xlane.xlu0 %730
    %v732 = vsel %vm337, %v680, 0.0
    %733 = vadd.xlane.f32.xlu0 %v732
    %v734 = vpop.xlane.xlu0 %733
    %v735 = vsel %vm337, %v681, 0.0
    %736 = vadd.xlane.f32.xlu0 %v735
    %v737 = vpop.xlane.xlu0 %736
    %v738 = vsel %vm337, %v682, 0.0
    %739 = vadd.xlane.f32.xlu0 %v738
    %v740 = vpop.xlane.xlu0 %739
    %v741 = vsel %vm337, %v683, 0.0
    %742 = vadd.xlane.f32.xlu0 %v741
    %v743 = vpop.xlane.xlu0 %742
    %v744 = vsel %vm337, %v684, 0.0
    %745 = vadd.xlane.f32.xlu0 %v744
    %v746 = vpop.xlane.xlu0 %745
    %v747 = vsel %vm337, %v685, 0.0
    %748 = vadd.xlane.f32.xlu0 %v747
    %v749 = vpop.xlane.xlu0 %748
    %v750 = vsel %vm337, %v686, 0.0
    %751 = vadd.xlane.f32.xlu0 %v750
    %v752 = vpop.xlane.xlu0 %751
    %v753 = vsel %vm337, %v687, 0.0
    %754 = vadd.xlane.f32.xlu0 %v753
    %v755 = vpop.xlane.xlu0 %754
    %v756 = vsel %vm337, %v688, 0.0
    %757 = vadd.xlane.f32.xlu0 %v756
    %v758 = vpop.xlane.xlu0 %757
    %v759 = vsel %vm337, %v689, 0.0
    %760 = vadd.xlane.f32.xlu0 %v759
    %v761 = vpop.xlane.xlu0 %760
    %v762 = vsel %vm337, %v690, 0.0
    %763 = vadd.xlane.f32.xlu0 %v762
    %v764 = vpop.xlane.xlu0 %763
    %v765 = vsel %vm337, %v691, 0.0
    %766 = vadd.xlane.f32.xlu0 %v765
    %v767 = vpop.xlane.xlu0 %766
    %v768 = vsel %vm337, %v692, 0.0
    %769 = vadd.xlane.f32.xlu0 %v768
    %v770 = vpop.xlane.xlu0 %769
    %v771 = vsel %vm337, %v693, 0.0
    %772 = vadd.xlane.f32.xlu0 %v771
    %v773 = vpop.xlane.xlu0 %772
    %v774 = vsel %vm337, %v694, 0.0
    %775 = vadd.xlane.f32.xlu0 %v774
    %v776 = vpop.xlane.xlu0 %775
    %v777 = vsel %vm337, %v695, 0.0
    %778 = vadd.xlane.f32.xlu0 %v777
    %v779 = vpop.xlane.xlu0 %778
    %v780 = vsel %vm337, %v696, 0.0
    %781 = vadd.xlane.f32.xlu0 %v780
    %v782 = vpop.xlane.xlu0 %781
    %v783 = vsel %vm337, %v697, 0.0
    %784 = vadd.xlane.f32.xlu0 %v783
    %v785 = vpop.xlane.xlu0 %784
    %v786 = vsel %vm337, %v698, 0.0
    %787 = vadd.xlane.f32.xlu0 %v786
    %v788 = vpop.xlane.xlu0 %787
    %v789 = vsel %vm337, %v699, 0.0
    %790 = vadd.xlane.f32.xlu0 %v789
    %v791 = vpop.xlane.xlu0 %790
    %v792 = vsel %vm337, %v700, 0.0
    %793 = vadd.xlane.f32.xlu0 %v792
    %v794 = vpop.xlane.xlu0 %793
    %v795 = vsel %vm337, %v701, 0.0
    %796 = vadd.xlane.f32.xlu0 %v795
    %v797 = vpop.xlane.xlu0 %796
    %v830 = vlaneseq
    %v831 = vand.u32 %v830, 127
    %v832 = vlaneseq
    %v833 = vshrl.u32 %v832, 7
    %v834 = vsub.s32 %v831, %v833
    %v835 = vrot.slane %v704, %v834
    %v836 = vadd.s32 %v831, 4294967288
    %v837 = vlaneseq
    %v838 = vshrl.u32 %v837, 7
    %v839 = vsub.s32 %v836, %v838
    %v840 = vrot.slane %v707, %v839
    %vm841 = vcmask 130112
    %v842 = vsel %vm841, %v840, %v835
    %v843 = vlaneseq
    %v844 = vshrl.u32 %v843, 7
    %v845 = vsub.s32 %v831, %v844
    %v846 = vrot.slane %v710, %v845
    %v847 = vlaneseq
    %v848 = vshrl.u32 %v847, 7
    %v849 = vsub.s32 %v836, %v848
    %v850 = vrot.slane %v713, %v849
    %v851 = vsel %vm841, %v850, %v846
    %v852 = vlaneseq
    %v853 = vshrl.u32 %v852, 7
    %v854 = vsub.s32 %v831, %v853
    %v855 = vrot.slane %v716, %v854
    %v856 = vlaneseq
    %v857 = vshrl.u32 %v856, 7
    %v858 = vsub.s32 %v836, %v857
    %v859 = vrot.slane %v719, %v858
    %v860 = vsel %vm841, %v859, %v855
    %v861 = vlaneseq
    %v862 = vshrl.u32 %v861, 7
    %v863 = vsub.s32 %v831, %v862
    %v864 = vrot.slane %v722, %v863
    %v865 = vlaneseq
    %v866 = vshrl.u32 %v865, 7
    %v867 = vsub.s32 %v836, %v866
    %v868 = vrot.slane %v725, %v867
    %v869 = vsel %vm841, %v868, %v864
    %v870 = vlaneseq
    %v871 = vshrl.u32 %v870, 7
    %v872 = vsub.s32 %v831, %v871
    %v873 = vrot.slane %v728, %v872
    %v874 = vlaneseq
    %v875 = vshrl.u32 %v874, 7
    %v876 = vsub.s32 %v836, %v875
    %v877 = vrot.slane %v731, %v876
    %v878 = vsel %vm841, %v877, %v873
    %v879 = vlaneseq
    %v880 = vshrl.u32 %v879, 7
    %v881 = vsub.s32 %v831, %v880
    %v882 = vrot.slane %v734, %v881
    %v883 = vlaneseq
    %v884 = vshrl.u32 %v883, 7
    %v885 = vsub.s32 %v836, %v884
    %v886 = vrot.slane %v737, %v885
    %v887 = vsel %vm841, %v886, %v882
    %v888 = vlaneseq
    %v889 = vshrl.u32 %v888, 7
    %v890 = vsub.s32 %v831, %v889
    %v891 = vrot.slane %v740, %v890
    %v892 = vlaneseq
    %v893 = vshrl.u32 %v892, 7
    %v894 = vsub.s32 %v836, %v893
    %v895 = vrot.slane %v743, %v894
    %v896 = vsel %vm841, %v895, %v891
    %v897 = vlaneseq
    %v898 = vshrl.u32 %v897, 7
    %v899 = vsub.s32 %v831, %v898
    %v900 = vrot.slane %v746, %v899
    %v901 = vlaneseq
    %v902 = vshrl.u32 %v901, 7
    %v903 = vsub.s32 %v836, %v902
    %v904 = vrot.slane %v749, %v903
    %v905 = vsel %vm841, %v904, %v900
    %v906 = vlaneseq
    %v907 = vshrl.u32 %v906, 7
    %v908 = vsub.s32 %v831, %v907
    %v909 = vrot.slane %v752, %v908
    %v910 = vlaneseq
    %v911 = vshrl.u32 %v910, 7
    %v912 = vsub.s32 %v836, %v911
    %v913 = vrot.slane %v755, %v912
    %v914 = vsel %vm841, %v913, %v909
    %v915 = vlaneseq
    %v916 = vshrl.u32 %v915, 7
    %v917 = vsub.s32 %v831, %v916
    %v918 = vrot.slane %v758, %v917
    %v919 = vlaneseq
    %v920 = vshrl.u32 %v919, 7
    %v921 = vsub.s32 %v836, %v920
    %v922 = vrot.slane %v761, %v921
    %v923 = vsel %vm841, %v922, %v918
    %v924 = vlaneseq
    %v925 = vshrl.u32 %v924, 7
    %v926 = vsub.s32 %v831, %v925
    %v927 = vrot.slane %v764, %v926
    %v928 = vlaneseq
    %v929 = vshrl.u32 %v928, 7
    %v930 = vsub.s32 %v836, %v929
    %v931 = vrot.slane %v767, %v930
    %v932 = vsel %vm841, %v931, %v927
    %v933 = vlaneseq
    %v934 = vshrl.u32 %v933, 7
    %v935 = vsub.s32 %v831, %v934
    %v936 = vrot.slane %v770, %v935
    %v937 = vlaneseq
    %v938 = vshrl.u32 %v937, 7
    %v939 = vsub.s32 %v836, %v938
    %v940 = vrot.slane %v773, %v939
    %v941 = vsel %vm841, %v940, %v936
    %v942 = vlaneseq
    %v943 = vshrl.u32 %v942, 7
    %v944 = vsub.s32 %v831, %v943
    %v945 = vrot.slane %v776, %v944
    %v946 = vlaneseq
    %v947 = vshrl.u32 %v946, 7
    %v948 = vsub.s32 %v836, %v947
    %v949 = vrot.slane %v779, %v948
    %v950 = vsel %vm841, %v949, %v945
    %v951 = vlaneseq
    %v952 = vshrl.u32 %v951, 7
    %v953 = vsub.s32 %v831, %v952
    %v954 = vrot.slane %v782, %v953
    %v955 = vlaneseq
    %v956 = vshrl.u32 %v955, 7
    %v957 = vsub.s32 %v836, %v956
    %v958 = vrot.slane %v785, %v957
    %v959 = vsel %vm841, %v958, %v954
    %v960 = vlaneseq
    %v961 = vshrl.u32 %v960, 7
    %v962 = vsub.s32 %v831, %v961
    %v963 = vrot.slane %v788, %v962
    %v964 = vlaneseq
    %v965 = vshrl.u32 %v964, 7
    %v966 = vsub.s32 %v836, %v965
    %v967 = vrot.slane %v791, %v966
    %v968 = vsel %vm841, %v967, %v963
    %v969 = vlaneseq
    %v970 = vshrl.u32 %v969, 7
    %v971 = vsub.s32 %v831, %v970
    %v972 = vrot.slane %v794, %v971
    %v973 = vlaneseq
    %v974 = vshrl.u32 %v973, 7
    %v975 = vsub.s32 %v836, %v974
    %v976 = vrot.slane %v797, %v975
    %v977 = vsel %vm841, %v976, %v972
    %vm978 = vcmask 1041409
    %v979 = vsel %vm978, %v851, %v842
    %vm980 = vcmask 1042434
    %v981 = vsel %vm980, %v860, %v979
    %vm982 = vcmask 1043459
    %v983 = vsel %vm982, %v869, %v981
    %vm984 = vcmask 1044484
    %v985 = vsel %vm984, %v878, %v983
    %vm986 = vcmask 1045509
    %v987 = vsel %vm986, %v887, %v985
    %vm988 = vcmask 1046534
    %v989 = vsel %vm988, %v896, %v987
    %vm990 = vcmask 1047559
    %v991 = vsel %vm990, %v905, %v989
    %v992 = vsel %vm978, %v923, %v914
    %v993 = vsel %vm980, %v932, %v992
    %v994 = vsel %vm982, %v941, %v993
    %v995 = vsel %vm984, %v950, %v994
    %v996 = vsel %vm986, %v959, %v995
    %v997 = vsel %vm988, %v968, %v996
    %v998 = vsel %vm990, %v977, %v997
    %vm1001 = vcmask 130048
    %v1002 = vsel %vm1001, %v991, -inf
    %1003 = vmax.xlane.f32.xlu0 %v1002
    %v1004 = vpop.xlane.xlu0 %1003
    %v1005 = vsel %vm1001, %v998, -inf
    %1006 = vmax.xlane.f32.xlu0 %v1005
    %v1007 = vpop.xlane.xlu0 %1006
    %v1010 = vlaneseq
    %v1011 = vshrl.u32 %v1010, 7
    %v1012 = vsub.s32 0, %v1011
    %v1013 = vrot.slane %v1004, %v1012
    %v1014 = vlaneseq
    %v1015 = vshrl.u32 %v1014, 7
    %v1016 = vsub.s32 1, %v1015
    %v1017 = vrot.slane %v1004, %v1016
    %v1018 = vlaneseq
    %v1019 = vshrl.u32 %v1018, 7
    %v1020 = vsub.s32 2, %v1019
    %v1021 = vrot.slane %v1004, %v1020
    %v1022 = vlaneseq
    %v1023 = vshrl.u32 %v1022, 7
    %v1024 = vsub.s32 3, %v1023
    %v1025 = vrot.slane %v1004, %v1024
    %v1026 = vlaneseq
    %v1027 = vshrl.u32 %v1026, 7
    %v1028 = vsub.s32 4, %v1027
    %v1029 = vrot.slane %v1004, %v1028
    %v1030 = vlaneseq
    %v1031 = vshrl.u32 %v1030, 7
    %v1032 = vsub.s32 5, %v1031
    %v1033 = vrot.slane %v1004, %v1032
    %v1034 = vlaneseq
    %v1035 = vshrl.u32 %v1034, 7
    %v1036 = vsub.s32 6, %v1035
    %v1037 = vrot.slane %v1004, %v1036
    %v1038 = vlaneseq
    %v1039 = vshrl.u32 %v1038, 7
    %v1040 = vsub.s32 7, %v1039
    %v1041 = vrot.slane %v1004, %v1040
    %v1042 = vlaneseq
    %v1043 = vshrl.u32 %v1042, 7
    %v1044 = vsub.s32 0, %v1043
    %v1045 = vrot.slane %v1007, %v1044
    %v1046 = vlaneseq
    %v1047 = vshrl.u32 %v1046, 7
    %v1048 = vsub.s32 1, %v1047
    %v1049 = vrot.slane %v1007, %v1048
    %v1050 = vlaneseq
    %v1051 = vshrl.u32 %v1050, 7
    %v1052 = vsub.s32 2, %v1051
    %v1053 = vrot.slane %v1007, %v1052
    %v1054 = vlaneseq
    %v1055 = vshrl.u32 %v1054, 7
    %v1056 = vsub.s32 3, %v1055
    %v1057 = vrot.slane %v1007, %v1056
    %v1058 = vlaneseq
    %v1059 = vshrl.u32 %v1058, 7
    %v1060 = vsub.s32 4, %v1059
    %v1061 = vrot.slane %v1007, %v1060
    %v1062 = vlaneseq
    %v1063 = vshrl.u32 %v1062, 7
    %v1064 = vsub.s32 5, %v1063
    %v1065 = vrot.slane %v1007, %v1064
    %v1066 = vlaneseq
    %v1067 = vshrl.u32 %v1066, 7
    %v1068 = vsub.s32 6, %v1067
    %v1069 = vrot.slane %v1007, %v1068
    %v1070 = vlaneseq
    %v1071 = vshrl.u32 %v1070, 7
    %v1072 = vsub.s32 7, %v1071
    %v1073 = vrot.slane %v1007, %v1072
    %v1090 = vsub.f32 %v704, %v1013
    %v1091 = vsub.f32 %v707, %v1013
    %v1092 = vsub.f32 %v710, %v1017
    %v1093 = vsub.f32 %v713, %v1017
    %v1094 = vsub.f32 %v716, %v1021
    %v1095 = vsub.f32 %v719, %v1021
    %v1096 = vsub.f32 %v722, %v1025
    %v1097 = vsub.f32 %v725, %v1025
    %v1098 = vsub.f32 %v728, %v1029
    %v1099 = vsub.f32 %v731, %v1029
    %v1100 = vsub.f32 %v734, %v1033
    %v1101 = vsub.f32 %v737, %v1033
    %v1102 = vsub.f32 %v740, %v1037
    %v1103 = vsub.f32 %v743, %v1037
    %v1104 = vsub.f32 %v746, %v1041
    %v1105 = vsub.f32 %v749, %v1041
    %v1106 = vsub.f32 %v752, %v1045
    %v1107 = vsub.f32 %v755, %v1045
    %v1108 = vsub.f32 %v758, %v1049
    %v1109 = vsub.f32 %v761, %v1049
    %v1110 = vsub.f32 %v764, %v1053
    %v1111 = vsub.f32 %v767, %v1053
    %v1112 = vsub.f32 %v770, %v1057
    %v1113 = vsub.f32 %v773, %v1057
    %v1114 = vsub.f32 %v776, %v1061
    %v1115 = vsub.f32 %v779, %v1061
    %v1116 = vsub.f32 %v782, %v1065
    %v1117 = vsub.f32 %v785, %v1065
    %v1118 = vsub.f32 %v788, %v1069
    %v1119 = vsub.f32 %v791, %v1069
    %v1120 = vsub.f32 %v794, %v1073
    %v1121 = vsub.f32 %v797, %v1073
    %v1122 = vmul.f32 %v1090, 1.442695
    %v1123 = vpow.pop %v1122
    %v1124 = vmul.f32 %v1091, 1.442695
    %v1125 = vpow.pop %v1124
    %v1126 = vmul.f32 %v1092, 1.442695
    %v1127 = vpow.pop %v1126
    %v1128 = vmul.f32 %v1093, 1.442695
    %v1129 = vpow.pop %v1128
    %v1130 = vmul.f32 %v1094, 1.442695
    %v1131 = vpow.pop %v1130
    %v1132 = vmul.f32 %v1095, 1.442695
    %v1133 = vpow.pop %v1132
    %v1134 = vmul.f32 %v1096, 1.442695
    %v1135 = vpow.pop %v1134
    %v1136 = vmul.f32 %v1097, 1.442695
    %v1137 = vpow.pop %v1136
    %v1138 = vmul.f32 %v1098, 1.442695
    %v1139 = vpow.pop %v1138
    %v1140 = vmul.f32 %v1099, 1.442695
    %v1141 = vpow.pop %v1140
    %v1142 = vmul.f32 %v1100, 1.442695
    %v1143 = vpow.pop %v1142
    %v1144 = vmul.f32 %v1101, 1.442695
    %v1145 = vpow.pop %v1144
    %v1146 = vmul.f32 %v1102, 1.442695
    %v1147 = vpow.pop %v1146
    %v1148 = vmul.f32 %v1103, 1.442695
    %v1149 = vpow.pop %v1148
    %v1150 = vmul.f32 %v1104, 1.442695
    %v1151 = vpow.pop %v1150
    %v1152 = vmul.f32 %v1105, 1.442695
    %v1153 = vpow.pop %v1152
    %v1154 = vmul.f32 %v1106, 1.442695
    %v1155 = vpow.pop %v1154
    %v1156 = vmul.f32 %v1107, 1.442695
    %v1157 = vpow.pop %v1156
    %v1158 = vmul.f32 %v1108, 1.442695
    %v1159 = vpow.pop %v1158
    %v1160 = vmul.f32 %v1109, 1.442695
    %v1161 = vpow.pop %v1160
    %v1162 = vmul.f32 %v1110, 1.442695
    %v1163 = vpow.pop %v1162
    %v1164 = vmul.f32 %v1111, 1.442695
    %v1165 = vpow.pop %v1164
    %v1166 = vmul.f32 %v1112, 1.442695
    %v1167 = vpow.pop %v1166
    %v1168 = vmul.f32 %v1113, 1.442695
    %v1169 = vpow.pop %v1168
    %v1170 = vmul.f32 %v1114, 1.442695
    %v1171 = vpow.pop %v1170
    %v1172 = vmul.f32 %v1115, 1.442695
    %v1173 = vpow.pop %v1172
    %v1174 = vmul.f32 %v1116, 1.442695
    %v1175 = vpow.pop %v1174
    %v1176 = vmul.f32 %v1117, 1.442695
    %v1177 = vpow.pop %v1176
    %v1178 = vmul.f32 %v1118, 1.442695
    %v1179 = vpow.pop %v1178
    %v1180 = vmul.f32 %v1119, 1.442695
    %v1181 = vpow.pop %v1180
    %v1182 = vmul.f32 %v1120, 1.442695
    %v1183 = vpow.pop %v1182
    %v1184 = vmul.f32 %v1121, 1.442695
    %v1185 = vpow.pop %v1184
    %1218 = vset.pattern.permute.xlu0 0
    %1219 = vperm.xlu0 %1218, %v1123
    %v1220 = vpop.permute.xlu0 %1219
    %1221 = vset.pattern.permute.xlu0 0
    %1222 = vperm.xlu0 %1221, %v1125
    %v1223 = vpop.permute.xlu0 %1222
    %1224 = vset.pattern.permute.xlu0 0
    %1225 = vperm.xlu0 %1224, %v1127
    %v1226 = vpop.permute.xlu0 %1225
    %1227 = vset.pattern.permute.xlu0 0
    %1228 = vperm.xlu0 %1227, %v1129
    %v1229 = vpop.permute.xlu0 %1228
    %1230 = vset.pattern.permute.xlu0 0
    %1231 = vperm.xlu0 %1230, %v1131
    %v1232 = vpop.permute.xlu0 %1231
    %1233 = vset.pattern.permute.xlu0 0
    %1234 = vperm.xlu0 %1233, %v1133
    %v1235 = vpop.permute.xlu0 %1234
    %1236 = vset.pattern.permute.xlu0 0
    %1237 = vperm.xlu0 %1236, %v1135
    %v1238 = vpop.permute.xlu0 %1237
    %1239 = vset.pattern.permute.xlu0 0
    %1240 = vperm.xlu0 %1239, %v1137
    %v1241 = vpop.permute.xlu0 %1240
    %1242 = vset.pattern.permute.xlu0 0
    %1243 = vperm.xlu0 %1242, %v1139
    %v1244 = vpop.permute.xlu0 %1243
    %1245 = vset.pattern.permute.xlu0 0
    %1246 = vperm.xlu0 %1245, %v1141
    %v1247 = vpop.permute.xlu0 %1246
    %1248 = vset.pattern.permute.xlu0 0
    %1249 = vperm.xlu0 %1248, %v1143
    %v1250 = vpop.permute.xlu0 %1249
    %1251 = vset.pattern.permute.xlu0 0
    %1252 = vperm.xlu0 %1251, %v1145
    %v1253 = vpop.permute.xlu0 %1252
    %1254 = vset.pattern.permute.xlu0 0
    %1255 = vperm.xlu0 %1254, %v1147
    %v1256 = vpop.permute.xlu0 %1255
    %1257 = vset.pattern.permute.xlu0 0
    %1258 = vperm.xlu0 %1257, %v1149
    %v1259 = vpop.permute.xlu0 %1258
    %1260 = vset.pattern.permute.xlu0 0
    %1261 = vperm.xlu0 %1260, %v1151
    %v1262 = vpop.permute.xlu0 %1261
    %1263 = vset.pattern.permute.xlu0 0
    %1264 = vperm.xlu0 %1263, %v1153
    %v1265 = vpop.permute.xlu0 %1264
    %1266 = vset.pattern.permute.xlu0 0
    %1267 = vperm.xlu0 %1266, %v1155
    %v1268 = vpop.permute.xlu0 %1267
    %1269 = vset.pattern.permute.xlu0 0
    %1270 = vperm.xlu0 %1269, %v1157
    %v1271 = vpop.permute.xlu0 %1270
    %1272 = vset.pattern.permute.xlu0 0
    %1273 = vperm.xlu0 %1272, %v1159
    %v1274 = vpop.permute.xlu0 %1273
    %1275 = vset.pattern.permute.xlu0 0
    %1276 = vperm.xlu0 %1275, %v1161
    %v1277 = vpop.permute.xlu0 %1276
    %1278 = vset.pattern.permute.xlu0 0
    %1279 = vperm.xlu0 %1278, %v1163
    %v1280 = vpop.permute.xlu0 %1279
    %1281 = vset.pattern.permute.xlu0 0
    %1282 = vperm.xlu0 %1281, %v1165
    %v1283 = vpop.permute.xlu0 %1282
    %1284 = vset.pattern.permute.xlu0 0
    %1285 = vperm.xlu0 %1284, %v1167
    %v1286 = vpop.permute.xlu0 %1285
    %1287 = vset.pattern.permute.xlu0 0
    %1288 = vperm.xlu0 %1287, %v1169
    %v1289 = vpop.permute.xlu0 %1288
    %1290 = vset.pattern.permute.xlu0 0
    %1291 = vperm.xlu0 %1290, %v1171
    %v1292 = vpop.permute.xlu0 %1291
    %1293 = vset.pattern.permute.xlu0 0
    %1294 = vperm.xlu0 %1293, %v1173
    %v1295 = vpop.permute.xlu0 %1294
    %1296 = vset.pattern.permute.xlu0 0
    %1297 = vperm.xlu0 %1296, %v1175
    %v1298 = vpop.permute.xlu0 %1297
    %1299 = vset.pattern.permute.xlu0 0
    %1300 = vperm.xlu0 %1299, %v1177
    %v1301 = vpop.permute.xlu0 %1300
    %1302 = vset.pattern.permute.xlu0 0
    %1303 = vperm.xlu0 %1302, %v1179
    %v1304 = vpop.permute.xlu0 %1303
    %1305 = vset.pattern.permute.xlu0 0
    %1306 = vperm.xlu0 %1305, %v1181
    %v1307 = vpop.permute.xlu0 %1306
    %1308 = vset.pattern.permute.xlu0 0
    %1309 = vperm.xlu0 %1308, %v1183
    %v1310 = vpop.permute.xlu0 %1309
    %1311 = vset.pattern.permute.xlu0 0
    %1312 = vperm.xlu0 %1311, %v1185
    %v1313 = vpop.permute.xlu0 %1312
    %v1314 = vlaneseq
    %v1315 = vshrl.u32 %v1314, 7
    %v1316 = vsub.s32 %v831, %v1315
    %v1317 = vrot.slane %v1220, %v1316
    %v1318 = vlaneseq
    %v1319 = vshrl.u32 %v1318, 7
    %v1320 = vsub.s32 %v836, %v1319
    %v1321 = vrot.slane %v1223, %v1320
    %v1322 = vsel %vm841, %v1321, %v1317
    %v1323 = vlaneseq
    %v1324 = vshrl.u32 %v1323, 7
    %v1325 = vsub.s32 %v831, %v1324
    %v1326 = vrot.slane %v1226, %v1325
    %v1327 = vlaneseq
    %v1328 = vshrl.u32 %v1327, 7
    %v1329 = vsub.s32 %v836, %v1328
    %v1330 = vrot.slane %v1229, %v1329
    %v1331 = vsel %vm841, %v1330, %v1326
    %v1332 = vlaneseq
    %v1333 = vshrl.u32 %v1332, 7
    %v1334 = vsub.s32 %v831, %v1333
    %v1335 = vrot.slane %v1232, %v1334
    %v1336 = vlaneseq
    %v1337 = vshrl.u32 %v1336, 7
    %v1338 = vsub.s32 %v836, %v1337
    %v1339 = vrot.slane %v1235, %v1338
    %v1340 = vsel %vm841, %v1339, %v1335
    %v1341 = vlaneseq
    %v1342 = vshrl.u32 %v1341, 7
    %v1343 = vsub.s32 %v831, %v1342
    %v1344 = vrot.slane %v1238, %v1343
    %v1345 = vlaneseq
    %v1346 = vshrl.u32 %v1345, 7
    %v1347 = vsub.s32 %v836, %v1346
    %v1348 = vrot.slane %v1241, %v1347
    %v1349 = vsel %vm841, %v1348, %v1344
    %v1350 = vlaneseq
    %v1351 = vshrl.u32 %v1350, 7
    %v1352 = vsub.s32 %v831, %v1351
    %v1353 = vrot.slane %v1244, %v1352
    %v1354 = vlaneseq
    %v1355 = vshrl.u32 %v1354, 7
    %v1356 = vsub.s32 %v836, %v1355
    %v1357 = vrot.slane %v1247, %v1356
    %v1358 = vsel %vm841, %v1357, %v1353
    %v1359 = vlaneseq
    %v1360 = vshrl.u32 %v1359, 7
    %v1361 = vsub.s32 %v831, %v1360
    %v1362 = vrot.slane %v1250, %v1361
    %v1363 = vlaneseq
    %v1364 = vshrl.u32 %v1363, 7
    %v1365 = vsub.s32 %v836, %v1364
    %v1366 = vrot.slane %v1253, %v1365
    %v1367 = vsel %vm841, %v1366, %v1362
    %v1368 = vlaneseq
    %v1369 = vshrl.u32 %v1368, 7
    %v1370 = vsub.s32 %v831, %v1369
    %v1371 = vrot.slane %v1256, %v1370
    %v1372 = vlaneseq
    %v1373 = vshrl.u32 %v1372, 7
    %v1374 = vsub.s32 %v836, %v1373
    %v1375 = vrot.slane %v1259, %v1374
    %v1376 = vsel %vm841, %v1375, %v1371
    %v1377 = vlaneseq
    %v1378 = vshrl.u32 %v1377, 7
    %v1379 = vsub.s32 %v831, %v1378
    %v1380 = vrot.slane %v1262, %v1379
    %v1381 = vlaneseq
    %v1382 = vshrl.u32 %v1381, 7
    %v1383 = vsub.s32 %v836, %v1382
    %v1384 = vrot.slane %v1265, %v1383
    %v1385 = vsel %vm841, %v1384, %v1380
    %v1386 = vlaneseq
    %v1387 = vshrl.u32 %v1386, 7
    %v1388 = vsub.s32 %v831, %v1387
    %v1389 = vrot.slane %v1268, %v1388
    %v1390 = vlaneseq
    %v1391 = vshrl.u32 %v1390, 7
    %v1392 = vsub.s32 %v836, %v1391
    %v1393 = vrot.slane %v1271, %v1392
    %v1394 = vsel %vm841, %v1393, %v1389
    %v1395 = vlaneseq
    %v1396 = vshrl.u32 %v1395, 7
    %v1397 = vsub.s32 %v831, %v1396
    %v1398 = vrot.slane %v1274, %v1397
    %v1399 = vlaneseq
    %v1400 = vshrl.u32 %v1399, 7
    %v1401 = vsub.s32 %v836, %v1400
    %v1402 = vrot.slane %v1277, %v1401
    %v1403 = vsel %vm841, %v1402, %v1398
    %v1404 = vlaneseq
    %v1405 = vshrl.u32 %v1404, 7
    %v1406 = vsub.s32 %v831, %v1405
    %v1407 = vrot.slane %v1280, %v1406
    %v1408 = vlaneseq
    %v1409 = vshrl.u32 %v1408, 7
    %v1410 = vsub.s32 %v836, %v1409
    %v1411 = vrot.slane %v1283, %v1410
    %v1412 = vsel %vm841, %v1411, %v1407
    %v1413 = vlaneseq
    %v1414 = vshrl.u32 %v1413, 7
    %v1415 = vsub.s32 %v831, %v1414
    %v1416 = vrot.slane %v1286, %v1415
    %v1417 = vlaneseq
    %v1418 = vshrl.u32 %v1417, 7
    %v1419 = vsub.s32 %v836, %v1418
    %v1420 = vrot.slane %v1289, %v1419
    %v1421 = vsel %vm841, %v1420, %v1416
    %v1422 = vlaneseq
    %v1423 = vshrl.u32 %v1422, 7
    %v1424 = vsub.s32 %v831, %v1423
    %v1425 = vrot.slane %v1292, %v1424
    %v1426 = vlaneseq
    %v1427 = vshrl.u32 %v1426, 7
    %v1428 = vsub.s32 %v836, %v1427
    %v1429 = vrot.slane %v1295, %v1428
    %v1430 = vsel %vm841, %v1429, %v1425
    %v1431 = vlaneseq
    %v1432 = vshrl.u32 %v1431, 7
    %v1433 = vsub.s32 %v831, %v1432
    %v1434 = vrot.slane %v1298, %v1433
    %v1435 = vlaneseq
    %v1436 = vshrl.u32 %v1435, 7
    %v1437 = vsub.s32 %v836, %v1436
    %v1438 = vrot.slane %v1301, %v1437
    %v1439 = vsel %vm841, %v1438, %v1434
    %v1440 = vlaneseq
    %v1441 = vshrl.u32 %v1440, 7
    %v1442 = vsub.s32 %v831, %v1441
    %v1443 = vrot.slane %v1304, %v1442
    %v1444 = vlaneseq
    %v1445 = vshrl.u32 %v1444, 7
    %v1446 = vsub.s32 %v836, %v1445
    %v1447 = vrot.slane %v1307, %v1446
    %v1448 = vsel %vm841, %v1447, %v1443
    %v1449 = vlaneseq
    %v1450 = vshrl.u32 %v1449, 7
    %v1451 = vsub.s32 %v831, %v1450
    %v1452 = vrot.slane %v1310, %v1451
    %v1453 = vlaneseq
    %v1454 = vshrl.u32 %v1453, 7
    %v1455 = vsub.s32 %v836, %v1454
    %v1456 = vrot.slane %v1313, %v1455
    %v1457 = vsel %vm841, %v1456, %v1452
    %v1458 = vsel %vm978, %v1331, %v1322
    %v1459 = vsel %vm980, %v1340, %v1458
    %v1460 = vsel %vm982, %v1349, %v1459
    %v1461 = vsel %vm984, %v1358, %v1460
    %v1462 = vsel %vm986, %v1367, %v1461
    %v1463 = vsel %vm988, %v1376, %v1462
    %v1464 = vsel %vm990, %v1385, %v1463
    %v1465 = vsel %vm978, %v1403, %v1394
    %v1466 = vsel %vm980, %v1412, %v1465
    %v1467 = vsel %vm982, %v1421, %v1466
    %v1468 = vsel %vm984, %v1430, %v1467
    %v1469 = vsel %vm986, %v1439, %v1468
    %v1470 = vsel %vm988, %v1448, %v1469
    %v1471 = vsel %vm990, %v1457, %v1470
    %v1474 = vsel %vm1001, %v1464, 0.0
    %1475 = vadd.xlane.f32.xlu0 %v1474
    %v1476 = vpop.xlane.xlu0 %1475
    %v1477 = vsel %vm1001, %v1471, 0.0
    %1478 = vadd.xlane.f32.xlu0 %v1477
    %v1479 = vpop.xlane.xlu0 %1478
    %v1480 = vrcp.pop %v1476
    %v1481 = vrcp.pop %v1479
    %v1482 = vmul.f32 %v1476, %v1480
    %v1483 = vmul.f32 %v1479, %v1481
    %v1484 = vsub.f32 2.0, %v1482
    %v1485 = vsub.f32 2.0, %v1483
    %v1486 = vmul.f32 %v1480, %v1484
    %v1487 = vmul.f32 %v1481, %v1485
    %v1490 = vlaneseq
    %v1491 = vshrl.u32 %v1490, 7
    %v1492 = vsub.s32 0, %v1491
    %v1493 = vrot.slane %v1486, %v1492
    %v1494 = vlaneseq
    %v1495 = vshrl.u32 %v1494, 7
    %v1496 = vsub.s32 1, %v1495
    %v1497 = vrot.slane %v1486, %v1496
    %v1498 = vlaneseq
    %v1499 = vshrl.u32 %v1498, 7
    %v1500 = vsub.s32 2, %v1499
    %v1501 = vrot.slane %v1486, %v1500
    %v1502 = vlaneseq
    %v1503 = vshrl.u32 %v1502, 7
    %v1504 = vsub.s32 3, %v1503
    %v1505 = vrot.slane %v1486, %v1504
    %v1506 = vlaneseq
    %v1507 = vshrl.u32 %v1506, 7
    %v1508 = vsub.s32 4, %v1507
    %v1509 = vrot.slane %v1486, %v1508
    %v1510 = vlaneseq
    %v1511 = vshrl.u32 %v1510, 7
    %v1512 = vsub.s32 5, %v1511
    %v1513 = vrot.slane %v1486, %v1512
    %v1514 = vlaneseq
    %v1515 = vshrl.u32 %v1514, 7
    %v1516 = vsub.s32 6, %v1515
    %v1517 = vrot.slane %v1486, %v1516
    %v1518 = vlaneseq
    %v1519 = vshrl.u32 %v1518, 7
    %v1520 = vsub.s32 7, %v1519
    %v1521 = vrot.slane %v1486, %v1520
    %v1522 = vlaneseq
    %v1523 = vshrl.u32 %v1522, 7
    %v1524 = vsub.s32 0, %v1523
    %v1525 = vrot.slane %v1487, %v1524
    %v1526 = vlaneseq
    %v1527 = vshrl.u32 %v1526, 7
    %v1528 = vsub.s32 1, %v1527
    %v1529 = vrot.slane %v1487, %v1528
    %v1530 = vlaneseq
    %v1531 = vshrl.u32 %v1530, 7
    %v1532 = vsub.s32 2, %v1531
    %v1533 = vrot.slane %v1487, %v1532
    %v1534 = vlaneseq
    %v1535 = vshrl.u32 %v1534, 7
    %v1536 = vsub.s32 3, %v1535
    %v1537 = vrot.slane %v1487, %v1536
    %v1538 = vlaneseq
    %v1539 = vshrl.u32 %v1538, 7
    %v1540 = vsub.s32 4, %v1539
    %v1541 = vrot.slane %v1487, %v1540
    %v1542 = vlaneseq
    %v1543 = vshrl.u32 %v1542, 7
    %v1544 = vsub.s32 5, %v1543
    %v1545 = vrot.slane %v1487, %v1544
    %v1546 = vlaneseq
    %v1547 = vshrl.u32 %v1546, 7
    %v1548 = vsub.s32 6, %v1547
    %v1549 = vrot.slane %v1487, %v1548
    %v1550 = vlaneseq
    %v1551 = vshrl.u32 %v1550, 7
    %v1552 = vsub.s32 7, %v1551
    %v1553 = vrot.slane %v1487, %v1552
    %v1570 = vmul.f32 %v1123, %v1493
    %v1571 = vmul.f32 %v1125, %v1493
    %v1572 = vmul.f32 %v1127, %v1497
    %v1573 = vmul.f32 %v1129, %v1497
    %v1574 = vmul.f32 %v1131, %v1501
    %v1575 = vmul.f32 %v1133, %v1501
    %v1576 = vmul.f32 %v1135, %v1505
    %v1577 = vmul.f32 %v1137, %v1505
    %v1578 = vmul.f32 %v1139, %v1509
    %v1579 = vmul.f32 %v1141, %v1509
    %v1580 = vmul.f32 %v1143, %v1513
    %v1581 = vmul.f32 %v1145, %v1513
    %v1582 = vmul.f32 %v1147, %v1517
    %v1583 = vmul.f32 %v1149, %v1517
    %v1584 = vmul.f32 %v1151, %v1521
    %v1585 = vmul.f32 %v1153, %v1521
    %v1586 = vmul.f32 %v1155, %v1525
    %v1587 = vmul.f32 %v1157, %v1525
    %v1588 = vmul.f32 %v1159, %v1529
    %v1589 = vmul.f32 %v1161, %v1529
    %v1590 = vmul.f32 %v1163, %v1533
    %v1591 = vmul.f32 %v1165, %v1533
    %v1592 = vmul.f32 %v1167, %v1537
    %v1593 = vmul.f32 %v1169, %v1537
    %v1594 = vmul.f32 %v1171, %v1541
    %v1595 = vmul.f32 %v1173, %v1541
    %v1596 = vmul.f32 %v1175, %v1545
    %v1597 = vmul.f32 %v1177, %v1545
    %v1598 = vmul.f32 %v1179, %v1549
    %v1599 = vmul.f32 %v1181, %v1549
    %v1600 = vmul.f32 %v1183, %v1553
    %v1601 = vmul.f32 %v1185, %v1553
    %1603 = vset.pattern.permute.xlu0 0
    %1604 = vperm.xlu0 %1603, %v1570
    %v1605 = vpop.permute.xlu0 %1604
    %1608 = vset.pattern.permute.xlu0 0
    %1609 = vperm.xlu0 %1608, %v1571
    %v1610 = vpop.permute.xlu0 %1609
    %1613 = vset.pattern.permute.xlu0 0
    %1614 = vperm.xlu0 %1613, %v1572
    %v1615 = vpop.permute.xlu0 %1614
    %1618 = vset.pattern.permute.xlu0 0
    %1619 = vperm.xlu0 %1618, %v1573
    %v1620 = vpop.permute.xlu0 %1619
    %1623 = vset.pattern.permute.xlu0 0
    %1624 = vperm.xlu0 %1623, %v1574
    %v1625 = vpop.permute.xlu0 %1624
    %1628 = vset.pattern.permute.xlu0 0
    %1629 = vperm.xlu0 %1628, %v1575
    %v1630 = vpop.permute.xlu0 %1629
    %1633 = vset.pattern.permute.xlu0 0
    %1634 = vperm.xlu0 %1633, %v1576
    %v1635 = vpop.permute.xlu0 %1634
    %1638 = vset.pattern.permute.xlu0 0
    %1639 = vperm.xlu0 %1638, %v1577
    %v1640 = vpop.permute.xlu0 %1639
    %1643 = vset.pattern.permute.xlu0 0
    %1644 = vperm.xlu0 %1643, %v1578
    %v1645 = vpop.permute.xlu0 %1644
    %1648 = vset.pattern.permute.xlu0 0
    %1649 = vperm.xlu0 %1648, %v1579
    %v1650 = vpop.permute.xlu0 %1649
    %1653 = vset.pattern.permute.xlu0 0
    %1654 = vperm.xlu0 %1653, %v1580
    %v1655 = vpop.permute.xlu0 %1654
    %1658 = vset.pattern.permute.xlu0 0
    %1659 = vperm.xlu0 %1658, %v1581
    %v1660 = vpop.permute.xlu0 %1659
    %1663 = vset.pattern.permute.xlu0 0
    %1664 = vperm.xlu0 %1663, %v1582
    %v1665 = vpop.permute.xlu0 %1664
    %1668 = vset.pattern.permute.xlu0 0
    %1669 = vperm.xlu0 %1668, %v1583
    %v1670 = vpop.permute.xlu0 %1669
    %1673 = vset.pattern.permute.xlu0 0
    %1674 = vperm.xlu0 %1673, %v1584
    %v1675 = vpop.permute.xlu0 %1674
    %1678 = vset.pattern.permute.xlu0 0
    %1679 = vperm.xlu0 %1678, %v1585
    %v1680 = vpop.permute.xlu0 %1679
    %1683 = vset.pattern.permute.xlu0 0
    %1684 = vperm.xlu0 %1683, %v1586
    %v1685 = vpop.permute.xlu0 %1684
    %1688 = vset.pattern.permute.xlu0 0
    %1689 = vperm.xlu0 %1688, %v1587
    %v1690 = vpop.permute.xlu0 %1689
    %1693 = vset.pattern.permute.xlu0 0
    %1694 = vperm.xlu0 %1693, %v1588
    %v1695 = vpop.permute.xlu0 %1694
    %1698 = vset.pattern.permute.xlu0 0
    %1699 = vperm.xlu0 %1698, %v1589
    %v1700 = vpop.permute.xlu0 %1699
    %1703 = vset.pattern.permute.xlu0 0
    %1704 = vperm.xlu0 %1703, %v1590
    %v1705 = vpop.permute.xlu0 %1704
    %1708 = vset.pattern.permute.xlu0 0
    %1709 = vperm.xlu0 %1708, %v1591
    %v1710 = vpop.permute.xlu0 %1709
    %1713 = vset.pattern.permute.xlu0 0
    %1714 = vperm.xlu0 %1713, %v1592
    %v1715 = vpop.permute.xlu0 %1714
    %1718 = vset.pattern.permute.xlu0 0
    %1719 = vperm.xlu0 %1718, %v1593
    %v1720 = vpop.permute.xlu0 %1719
    %1723 = vset.pattern.permute.xlu0 0
    %1724 = vperm.xlu0 %1723, %v1594
    %v1725 = vpop.permute.xlu0 %1724
    %1728 = vset.pattern.permute.xlu0 0
    %1729 = vperm.xlu0 %1728, %v1595
    %v1730 = vpop.permute.xlu0 %1729
    %1733 = vset.pattern.permute.xlu0 0
    %1734 = vperm.xlu0 %1733, %v1596
    %v1735 = vpop.permute.xlu0 %1734
    %1738 = vset.pattern.permute.xlu0 0
    %1739 = vperm.xlu0 %1738, %v1597
    %v1740 = vpop.permute.xlu0 %1739
    %1743 = vset.pattern.permute.xlu0 0
    %1744 = vperm.xlu0 %1743, %v1598
    %v1745 = vpop.permute.xlu0 %1744
    %1748 = vset.pattern.permute.xlu0 0
    %1749 = vperm.xlu0 %1748, %v1599
    %v1750 = vpop.permute.xlu0 %1749
    %1753 = vset.pattern.permute.xlu0 0
    %1754 = vperm.xlu0 %1753, %v1600
    %v1755 = vpop.permute.xlu0 %1754
    %1758 = vset.pattern.permute.xlu0 0
    %1759 = vperm.xlu0 %1758, %v1601
    %v1760 = vpop.permute.xlu0 %1759
    %v1762 = vmul.f32 %v44, %v1605
    %v1763 = vmul.f32 %v45, %v1610
    %v1764 = vmul.f32 %v46, %v1615
    %v1765 = vmul.f32 %v47, %v1620
    %v1766 = vmul.f32 %v48, %v1625
    %v1767 = vmul.f32 %v49, %v1630
    %v1768 = vmul.f32 %v50, %v1635
    %v1769 = vmul.f32 %v51, %v1640
    %v1770 = vmul.f32 %v52, %v1645
    %v1771 = vmul.f32 %v53, %v1650
    %v1772 = vmul.f32 %v54, %v1655
    %v1773 = vmul.f32 %v55, %v1660
    %v1774 = vmul.f32 %v56, %v1665
    %v1775 = vmul.f32 %v57, %v1670
    %v1776 = vmul.f32 %v58, %v1675
    %v1777 = vmul.f32 %v59, %v1680
    %v1778 = vmul.f32 %v60, %v1685
    %v1779 = vmul.f32 %v61, %v1690
    %v1780 = vmul.f32 %v62, %v1695
    %v1781 = vmul.f32 %v63, %v1700
    %v1782 = vmul.f32 %v64, %v1705
    %v1783 = vmul.f32 %v65, %v1710
    %v1784 = vmul.f32 %v66, %v1715
    %v1785 = vmul.f32 %v67, %v1720
    %v1786 = vmul.f32 %v68, %v1725
    %v1787 = vmul.f32 %v69, %v1730
    %v1788 = vmul.f32 %v70, %v1735
    %v1789 = vmul.f32 %v71, %v1740
    %v1790 = vmul.f32 %v72, %v1745
    %v1791 = vmul.f32 %v73, %v1750
    %v1792 = vmul.f32 %v74, %v1755
    %v1793 = vmul.f32 %v75, %v1760
    %v1794 = vadd.f32 %v1762, %v1763
    %v1795 = vrot.slane %v1794, 4
    %v1796 = vadd.f32 %v1794, %v1795
    %v1797 = vrot.slane %v1796, 2
    %v1798 = vadd.f32 %v1796, %v1797
    %v1799 = vrot.slane %v1798, 1
    %v1800 = vadd.f32 %v1798, %v1799
    %v1801 = vadd.f32 %v1764, %v1765
    %v1802 = vrot.slane %v1801, 4
    %v1803 = vadd.f32 %v1801, %v1802
    %v1804 = vrot.slane %v1803, 2
    %v1805 = vadd.f32 %v1803, %v1804
    %v1806 = vrot.slane %v1805, 1
    %v1807 = vadd.f32 %v1805, %v1806
    %v1808 = vadd.f32 %v1766, %v1767
    %v1809 = vrot.slane %v1808, 4
    %v1810 = vadd.f32 %v1808, %v1809
    %v1811 = vrot.slane %v1810, 2
    %v1812 = vadd.f32 %v1810, %v1811
    %v1813 = vrot.slane %v1812, 1
    %v1814 = vadd.f32 %v1812, %v1813
    %v1815 = vadd.f32 %v1768, %v1769
    %v1816 = vrot.slane %v1815, 4
    %v1817 = vadd.f32 %v1815, %v1816
    %v1818 = vrot.slane %v1817, 2
    %v1819 = vadd.f32 %v1817, %v1818
    %v1820 = vrot.slane %v1819, 1
    %v1821 = vadd.f32 %v1819, %v1820
    %v1822 = vadd.f32 %v1770, %v1771
    %v1823 = vrot.slane %v1822, 4
    %v1824 = vadd.f32 %v1822, %v1823
    %v1825 = vrot.slane %v1824, 2
    %v1826 = vadd.f32 %v1824, %v1825
    %v1827 = vrot.slane %v1826, 1
    %v1828 = vadd.f32 %v1826, %v1827
    %v1829 = vadd.f32 %v1772, %v1773
    %v1830 = vrot.slane %v1829, 4
    %v1831 = vadd.f32 %v1829, %v1830
    %v1832 = vrot.slane %v1831, 2
    %v1833 = vadd.f32 %v1831, %v1832
    %v1834 = vrot.slane %v1833, 1
    %v1835 = vadd.f32 %v1833, %v1834
    %v1836 = vadd.f32 %v1774, %v1775
    %v1837 = vrot.slane %v1836, 4
    %v1838 = vadd.f32 %v1836, %v1837
    %v1839 = vrot.slane %v1838, 2
    %v1840 = vadd.f32 %v1838, %v1839
    %v1841 = vrot.slane %v1840, 1
    %v1842 = vadd.f32 %v1840, %v1841
    %v1843 = vadd.f32 %v1776, %v1777
    %v1844 = vrot.slane %v1843, 4
    %v1845 = vadd.f32 %v1843, %v1844
    %v1846 = vrot.slane %v1845, 2
    %v1847 = vadd.f32 %v1845, %v1846
    %v1848 = vrot.slane %v1847, 1
    %v1849 = vadd.f32 %v1847, %v1848
    %v1850 = vadd.f32 %v1778, %v1779
    %v1851 = vrot.slane %v1850, 4
    %v1852 = vadd.f32 %v1850, %v1851
    %v1853 = vrot.slane %v1852, 2
    %v1854 = vadd.f32 %v1852, %v1853
    %v1855 = vrot.slane %v1854, 1
    %v1856 = vadd.f32 %v1854, %v1855
    %v1857 = vadd.f32 %v1780, %v1781
    %v1858 = vrot.slane %v1857, 4
    %v1859 = vadd.f32 %v1857, %v1858
    %v1860 = vrot.slane %v1859, 2
    %v1861 = vadd.f32 %v1859, %v1860
    %v1862 = vrot.slane %v1861, 1
    %v1863 = vadd.f32 %v1861, %v1862
    %v1864 = vadd.f32 %v1782, %v1783
    %v1865 = vrot.slane %v1864, 4
    %v1866 = vadd.f32 %v1864, %v1865
    %v1867 = vrot.slane %v1866, 2
    %v1868 = vadd.f32 %v1866, %v1867
    %v1869 = vrot.slane %v1868, 1
    %v1870 = vadd.f32 %v1868, %v1869
    %v1871 = vadd.f32 %v1784, %v1785
    %v1872 = vrot.slane %v1871, 4
    %v1873 = vadd.f32 %v1871, %v1872
    %v1874 = vrot.slane %v1873, 2
    %v1875 = vadd.f32 %v1873, %v1874
    %v1876 = vrot.slane %v1875, 1
    %v1877 = vadd.f32 %v1875, %v1876
    %v1878 = vadd.f32 %v1786, %v1787
    %v1879 = vrot.slane %v1878, 4
    %v1880 = vadd.f32 %v1878, %v1879
    %v1881 = vrot.slane %v1880, 2
    %v1882 = vadd.f32 %v1880, %v1881
    %v1883 = vrot.slane %v1882, 1
    %v1884 = vadd.f32 %v1882, %v1883
    %v1885 = vadd.f32 %v1788, %v1789
    %v1886 = vrot.slane %v1885, 4
    %v1887 = vadd.f32 %v1885, %v1886
    %v1888 = vrot.slane %v1887, 2
    %v1889 = vadd.f32 %v1887, %v1888
    %v1890 = vrot.slane %v1889, 1
    %v1891 = vadd.f32 %v1889, %v1890
    %v1892 = vadd.f32 %v1790, %v1791
    %v1893 = vrot.slane %v1892, 4
    %v1894 = vadd.f32 %v1892, %v1893
    %v1895 = vrot.slane %v1894, 2
    %v1896 = vadd.f32 %v1894, %v1895
    %v1897 = vrot.slane %v1896, 1
    %v1898 = vadd.f32 %v1896, %v1897
    %v1899 = vadd.f32 %v1792, %v1793
    %v1900 = vrot.slane %v1899, 4
    %v1901 = vadd.f32 %v1899, %v1900
    %v1902 = vrot.slane %v1901, 2
    %v1903 = vadd.f32 %v1901, %v1902
    %v1904 = vrot.slane %v1903, 1
    %v1905 = vadd.f32 %v1903, %v1904
    %v1922 = vsel %vm978, %v1807, %v1800
    %v1923 = vsel %vm980, %v1814, %v1922
    %v1924 = vsel %vm982, %v1821, %v1923
    %v1925 = vsel %vm984, %v1828, %v1924
    %v1926 = vsel %vm986, %v1835, %v1925
    %v1927 = vsel %vm988, %v1842, %v1926
    %v1928 = vsel %vm990, %v1849, %v1927
    %v1929 = vsel %vm978, %v1863, %v1856
    %v1930 = vsel %vm980, %v1870, %v1929
    %v1931 = vsel %vm982, %v1877, %v1930
    %v1932 = vsel %vm984, %v1884, %v1931
    %v1933 = vsel %vm986, %v1891, %v1932
    %v1934 = vsel %vm988, %v1898, %v1933
    %v1935 = vsel %vm990, %v1905, %v1934
    %1938 = vst [vmem:[#allocation5] sm:$0xff] %v1928
    %1939 = vst [vmem:[#allocation5 + $0x8] sm:$0xff] %v1935
    %v1940 = vlaneseq
    %v1941 = vshrl.u32 %v1940, 7
    %v1942 = vsub.s32 %v831, %v1941
    %v1943 = vrot.slane %v1605, %v1942
    %v1944 = vlaneseq
    %v1945 = vshrl.u32 %v1944, 7
    %v1946 = vsub.s32 %v836, %v1945
    %v1947 = vrot.slane %v1610, %v1946
    %v1948 = vsel %vm841, %v1947, %v1943
    %v1949 = vlaneseq
    %v1950 = vshrl.u32 %v1949, 7
    %v1951 = vsub.s32 %v831, %v1950
    %v1952 = vrot.slane %v1615, %v1951
    %v1953 = vlaneseq
    %v1954 = vshrl.u32 %v1953, 7
    %v1955 = vsub.s32 %v836, %v1954
    %v1956 = vrot.slane %v1620, %v1955
    %v1957 = vsel %vm841, %v1956, %v1952
    %v1958 = vlaneseq
    %v1959 = vshrl.u32 %v1958, 7
    %v1960 = vsub.s32 %v831, %v1959
    %v1961 = vrot.slane %v1625, %v1960
    %v1962 = vlaneseq
    %v1963 = vshrl.u32 %v1962, 7
    %v1964 = vsub.s32 %v836, %v1963
    %v1965 = vrot.slane %v1630, %v1964
    %v1966 = vsel %vm841, %v1965, %v1961
    %v1967 = vlaneseq
    %v1968 = vshrl.u32 %v1967, 7
    %v1969 = vsub.s32 %v831, %v1968
    %v1970 = vrot.slane %v1635, %v1969
    %v1971 = vlaneseq
    %v1972 = vshrl.u32 %v1971, 7
    %v1973 = vsub.s32 %v836, %v1972
    %v1974 = vrot.slane %v1640, %v1973
    %v1975 = vsel %vm841, %v1974, %v1970
    %v1976 = vlaneseq
    %v1977 = vshrl.u32 %v1976, 7
    %v1978 = vsub.s32 %v831, %v1977
    %v1979 = vrot.slane %v1645, %v1978
    %v1980 = vlaneseq
    %v1981 = vshrl.u32 %v1980, 7
    %v1982 = vsub.s32 %v836, %v1981
    %v1983 = vrot.slane %v1650, %v1982
    %v1984 = vsel %vm841, %v1983, %v1979
    %v1985 = vlaneseq
    %v1986 = vshrl.u32 %v1985, 7
    %v1987 = vsub.s32 %v831, %v1986
    %v1988 = vrot.slane %v1655, %v1987
    %v1989 = vlaneseq
    %v1990 = vshrl.u32 %v1989, 7
    %v1991 = vsub.s32 %v836, %v1990
    %v1992 = vrot.slane %v1660, %v1991
    %v1993 = vsel %vm841, %v1992, %v1988
    %v1994 = vlaneseq
    %v1995 = vshrl.u32 %v1994, 7
    %v1996 = vsub.s32 %v831, %v1995
    %v1997 = vrot.slane %v1665, %v1996
    %v1998 = vlaneseq
    %v1999 = vshrl.u32 %v1998, 7
    %v2000 = vsub.s32 %v836, %v1999
    %v2001 = vrot.slane %v1670, %v2000
    %v2002 = vsel %vm841, %v2001, %v1997
    %v2003 = vlaneseq
    %v2004 = vshrl.u32 %v2003, 7
    %v2005 = vsub.s32 %v831, %v2004
    %v2006 = vrot.slane %v1675, %v2005
    %v2007 = vlaneseq
    %v2008 = vshrl.u32 %v2007, 7
    %v2009 = vsub.s32 %v836, %v2008
    %v2010 = vrot.slane %v1680, %v2009
    %v2011 = vsel %vm841, %v2010, %v2006
    %v2012 = vlaneseq
    %v2013 = vshrl.u32 %v2012, 7
    %v2014 = vsub.s32 %v831, %v2013
    %v2015 = vrot.slane %v1685, %v2014
    %v2016 = vlaneseq
    %v2017 = vshrl.u32 %v2016, 7
    %v2018 = vsub.s32 %v836, %v2017
    %v2019 = vrot.slane %v1690, %v2018
    %v2020 = vsel %vm841, %v2019, %v2015
    %v2021 = vlaneseq
    %v2022 = vshrl.u32 %v2021, 7
    %v2023 = vsub.s32 %v831, %v2022
    %v2024 = vrot.slane %v1695, %v2023
    %v2025 = vlaneseq
    %v2026 = vshrl.u32 %v2025, 7
    %v2027 = vsub.s32 %v836, %v2026
    %v2028 = vrot.slane %v1700, %v2027
    %v2029 = vsel %vm841, %v2028, %v2024
    %v2030 = vlaneseq
    %v2031 = vshrl.u32 %v2030, 7
    %v2032 = vsub.s32 %v831, %v2031
    %v2033 = vrot.slane %v1705, %v2032
    %v2034 = vlaneseq
    %v2035 = vshrl.u32 %v2034, 7
    %v2036 = vsub.s32 %v836, %v2035
    %v2037 = vrot.slane %v1710, %v2036
    %v2038 = vsel %vm841, %v2037, %v2033
    %v2039 = vlaneseq
    %v2040 = vshrl.u32 %v2039, 7
    %v2041 = vsub.s32 %v831, %v2040
    %v2042 = vrot.slane %v1715, %v2041
    %v2043 = vlaneseq
    %v2044 = vshrl.u32 %v2043, 7
    %v2045 = vsub.s32 %v836, %v2044
    %v2046 = vrot.slane %v1720, %v2045
    %v2047 = vsel %vm841, %v2046, %v2042
    %v2048 = vlaneseq
    %v2049 = vshrl.u32 %v2048, 7
    %v2050 = vsub.s32 %v831, %v2049
    %v2051 = vrot.slane %v1725, %v2050
    %v2052 = vlaneseq
    %v2053 = vshrl.u32 %v2052, 7
    %v2054 = vsub.s32 %v836, %v2053
    %v2055 = vrot.slane %v1730, %v2054
    %v2056 = vsel %vm841, %v2055, %v2051
    %v2057 = vlaneseq
    %v2058 = vshrl.u32 %v2057, 7
    %v2059 = vsub.s32 %v831, %v2058
    %v2060 = vrot.slane %v1735, %v2059
    %v2061 = vlaneseq
    %v2062 = vshrl.u32 %v2061, 7
    %v2063 = vsub.s32 %v836, %v2062
    %v2064 = vrot.slane %v1740, %v2063
    %v2065 = vsel %vm841, %v2064, %v2060
    %v2066 = vlaneseq
    %v2067 = vshrl.u32 %v2066, 7
    %v2068 = vsub.s32 %v831, %v2067
    %v2069 = vrot.slane %v1745, %v2068
    %v2070 = vlaneseq
    %v2071 = vshrl.u32 %v2070, 7
    %v2072 = vsub.s32 %v836, %v2071
    %v2073 = vrot.slane %v1750, %v2072
    %v2074 = vsel %vm841, %v2073, %v2069
    %v2075 = vlaneseq
    %v2076 = vshrl.u32 %v2075, 7
    %v2077 = vsub.s32 %v831, %v2076
    %v2078 = vrot.slane %v1755, %v2077
    %v2079 = vlaneseq
    %v2080 = vshrl.u32 %v2079, 7
    %v2081 = vsub.s32 %v836, %v2080
    %v2082 = vrot.slane %v1760, %v2081
    %v2083 = vsel %vm841, %v2082, %v2078
    %v2084 = vsel %vm978, %v1957, %v1948
    %v2085 = vsel %vm980, %v1966, %v2084
    %v2086 = vsel %vm982, %v1975, %v2085
    %v2087 = vsel %vm984, %v1984, %v2086
    %v2088 = vsel %vm986, %v1993, %v2087
    %v2089 = vsel %vm988, %v2002, %v2088
    %v2090 = vsel %vm990, %v2011, %v2089
    %v2091 = vsel %vm978, %v2029, %v2020
    %v2092 = vsel %vm980, %v2038, %v2091
    %v2093 = vsel %vm982, %v2047, %v2092
    %v2094 = vsel %vm984, %v2056, %v2093
    %v2095 = vsel %vm986, %v2065, %v2094
    %v2096 = vsel %vm988, %v2074, %v2095
    %v2097 = vsel %vm990, %v2083, %v2096
    %2100 = vst.msk [vmem:[#allocation6] sm:$0xff] %vm1001, %v2090
    %2101 = vst.msk [vmem:[#allocation6 + $0x8] sm:$0xff] %vm1001, %v2097
    // Predicated region
    $region34: #{tpu_custom_call.1} parent=1 // pred_check
      _
    $region35: #{tpu_custom_call.1} parent=1 // pred_check_branch
      %2103 = sbr.rel (0) target = $region37
    $region36: #{tpu_custom_call.1} parent=1 // pred_region
      %s2105 = ssub.s32 256, 256
      %2106 = vsyncadd [#allocation4], %s2105
      %s2107 = sshll.u32 [#allocation5], 4
      %s2108 = int_to_ptr.vmem [resolvable:$true] %s2107
      %2113 = dma.vmem_to_hbm [thread:$0]  %s2108, 256, %s7, [#allocation4], 128, 128, 8
    $region37: #{tpu_custom_call.1} parent=1 // pred_fallthru
      _
    // Predicated region
    $region38: #{tpu_custom_call.1} parent=1 // pred_check
      _
    $region39: #{tpu_custom_call.1} parent=1 // pred_check_branch
      %2115 = sbr.rel (0) target = $region41
    $region40: #{tpu_custom_call.1} parent=1 // pred_region
      %s2117 = ssub.s32 256, 256
      %2118 = vsyncadd [#allocation7], %s2117
      %s2119 = sshll.u32 [#allocation6], 4
      %s2120 = int_to_ptr.vmem [resolvable:$true] %s2119
      %2125 = dma.vmem_to_hbm [thread:$0]  %s2120, 256, %s8, [#allocation7], 128, 128, 8
    $region41: #{tpu_custom_call.1} parent=1 // pred_fallthru
      _
    // Predicated region
    $region42: #{tpu_custom_call.1} parent=1 // pred_check
      _
    $region43: #{tpu_custom_call.1} parent=1 // pred_check_branch
      %2127 = sbr.rel (0) target = $region45
    $region44: #{tpu_custom_call.1} parent=1 // pred_region
      %2128 = dma.done [#allocation4], 256
    $region45: #{tpu_custom_call.1} parent=1 // pred_fallthru
      _
    // Predicated region
    $region46: #{tpu_custom_call.1} parent=1 // pred_check
      _
    $region47: #{tpu_custom_call.1} parent=1 // pred_check_branch
      %2130 = sbr.rel (0) target = $region49
    $region48: #{tpu_custom_call.1} parent=1 // pred_region
      %2131 = dma.done [#allocation7], 256
    $region49: #{tpu_custom_call.1} parent=1 // pred_fallthru
      _
    %2132 = vsyncpa [#allocation3], 1
    %2133 = vsyncpa [#allocation4], 1
    %2134 = vsyncpa [#allocation7], 1

// kernel: tpu_custom_call.1
$region0: #{tpu_custom_call.1}
  #allocation0 [shape = 'u32[]', space=smem, size = 0x4, offset = 0x4, fixed_abs, tag = 'smem constant byte address 0x4 - core index']
  #allocation1 [shape = 'u32[144,128]{1,0:T(1,128)}', space=vmem, size = 0x12000, scoped, tag = 'internal scratch']
  %s0 = inlined_call_operand.hbm [shape: f32[16,16,128], index: 0, kind: input, shape index: {}]
  %s1 = inlined_call_operand.vmem [shape: f32[16,32], index: 1, kind: input, shape index: {}]
  %s2 = inlined_call_operand.vmem [shape: f32[128,32], index: 2, kind: input, shape index: {}]
  %s3 = inlined_call_operand.vmem [shape: f32[1,32], index: 3, kind: input, shape index: {}]
  %s4 = inlined_call_operand.vmem [shape: f32[32,32], index: 4, kind: input, shape index: {}]
  %s5 = inlined_call_operand.vmem [shape: f32[1,32], index: 5, kind: input, shape index: {}]
  %s6 = inlined_call_operand.vmem [shape: f32[1,32], index: 6, kind: input, shape index: {}]
  %s7 = inlined_call_operand.hbm [shape: f32[16,128], index: 7, kind: output, shape index: {0}]
  %s8 = inlined_call_operand.hbm [shape: f32[16,16], index: 8, kind: output, shape index: {1}]
  %9 = xla_tuple %s7, %s8
  %s10 = sld [smem:[#allocation0]]
  $region50: #{tpu_custom_call.1} parent=0
    _
  %s12 = ssub.s32 1, %s10
  %s13 = scalar_select 0, %s12, %s10
  $region1: #{tpu_custom_call.1} parent=0
    #allocation2 [shape = 'u8[131072]{0}', space=vmem, size = 0x20000, scoped, tag = 'input window, operand 0, single buffered']
    #allocation3 [shape = 's32[1]{0}', space=sflag, size = 0x4, scoped, tag = 'scoped memory for tpu_custom_call.1']
    #allocation4 [shape = 's32[1]{0}', space=sflag, size = 0x4, scoped, tag = 'scoped memory for tpu_custom_call.1']
    #allocation5 [shape = 'u8[8192]{0}', space=vmem, size = 0x2000, scoped, tag = 'output window, operand 0, single buffered']
    #allocation6 [shape = 'u8[8192]{0}', space=vmem, size = 0x2000, scoped, tag = 'output window, operand 1, single buffered']
    #allocation7 [shape = 's32[1]{0}', space=sflag, size = 0x4, scoped, tag = 'scoped memory for tpu_custom_call.1']
    %14 = vsyncpa [#allocation3], 0
    %15 = vsyncpa [#allocation4], 0
    %16 = vsyncpa [#allocation7], 0
    // Predicated region
    $region2: #{tpu_custom_call.1} parent=1 // pred_check
      _
    $region3: #{tpu_custom_call.1} parent=1 // pred_check_branch
      %18 = sbr.rel (0) target = $region5
    $region4: #{tpu_custom_call.1} parent=1 // pred_region
      %s20 = ssub.s32 4096, 4096
      %21 = vsyncadd [#allocation3], %s20
      %s22 = sshll.u32 [#allocation2], 4
      %s23 = int_to_ptr.vmem [resolvable:$true] %s22
      %28 = dma.hbm_to_vmem [thread:$0]  %s0, 4096, %s23, [#allocation3], 128, 128, 8
    $region5: #{tpu_custom_call.1} parent=1 // pred_fallthru
      _
    // Predicated region
    $region6: #{tpu_custom_call.1} parent=1 // pred_check
      _
    $region7: #{tpu_custom_call.1} parent=1 // pred_check_branch
      %30 = sbr.rel (0) target = $region9
    $region8: #{tpu_custom_call.1} parent=1 // pred_region
      _
    $region9: #{tpu_custom_call.1} parent=1 // pred_fallthru
      _
    // Predicated region
    $region10: #{tpu_custom_call.1} parent=1 // pred_check
      _
    $region11: #{tpu_custom_call.1} parent=1 // pred_check_branch
      %32 = sbr.rel (0) target = $region13
    $region12: #{tpu_custom_call.1} parent=1 // pred_region
      _
    $region13: #{tpu_custom_call.1} parent=1 // pred_fallthru
      _
    // Predicated region
    $region14: #{tpu_custom_call.1} parent=1 // pred_check
      _
    $region15: #{tpu_custom_call.1} parent=1 // pred_check_branch
      %34 = sbr.rel (0) target = $region17
    $region16: #{tpu_custom_call.1} parent=1 // pred_region
      _
    $region17: #{tpu_custom_call.1} parent=1 // pred_fallthru
      _
    // Predicated region
    $region18: #{tpu_custom_call.1} parent=1 // pred_check
      _
    $region19: #{tpu_custom_call.1} parent=1 // pred_check_branch
      %36 = sbr.rel (0) target = $region21
    $region20: #{tpu_custom_call.1} parent=1 // pred_region
      _
    $region21: #{tpu_custom_call.1} parent=1 // pred_fallthru
      _
    // Predicated region
    $region22: #{tpu_custom_call.1} parent=1 // pred_check
      _
    $region23: #{tpu_custom_call.1} parent=1 // pred_check_branch
      %38 = sbr.rel (0) target = $region25
    $region24: #{tpu_custom_call.1} parent=1 // pred_region
      _
    $region25: #{tpu_custom_call.1} parent=1 // pred_fallthru
      _
    // Predicated region
    $region26: #{tpu_custom_call.1} parent=1 // pred_check
      _
    $region27: #{tpu_custom_call.1} parent=1 // pred_check_branch
      %40 = sbr.rel (0) target = $region29
    $region28: #{tpu_custom_call.1} parent=1 // pred_region
      _
    $region29: #{tpu_custom_call.1} parent=1 // pred_fallthru
      _
    // Predicated region
    $region30: #{tpu_custom_call.1} parent=1 // pred_check
      _
    $region31: #{tpu_custom_call.1} parent=1 // pred_check_branch
      %42 = sbr.rel (0) target = $region33
    $region32: #{tpu_custom_call.1} parent=1 // pred_region
      %43 = dma.done [#allocation3], 4096
    $region33: #{tpu_custom_call.1} parent=1 // pred_fallthru
      _
    %v44 = vld [vmem:[#allocation2] sm:$0xff]
    %v45 = vld [vmem:[#allocation2 + $0x8] sm:$0xff]
    %v46 = vld [vmem:[#allocation2 + $0x10] sm:$0xff]
    %v47 = vld [vmem:[#allocation2 + $0x18] sm:$0xff]
    %v48 = vld [vmem:[#allocation2 + $0x20] sm:$0xff]
    %v49 = vld [vmem:[#allocation2 + $0x28] sm:$0xff]
    %v50 = vld [vmem:[#allocation2 + $0x30] sm:$0xff]
    %v51 = vld [vmem:[#allocation2 + $0x38] sm:$0xff]
    %v52 = vld [vmem:[#allocation2 + $0x40] sm:$0xff]
    %v53 = vld [vmem:[#allocation2 + $0x48] sm:$0xff]
    %v54 = vld [vmem:[#allocation2 + $0x50] sm:$0xff]
    %v55 = vld [vmem:[#allocation2 + $0x58] sm:$0xff]
    %v56 = vld [vmem:[#allocation2 + $0x60] sm:$0xff]
    %v57 = vld [vmem:[#allocation2 + $0x68] sm:$0xff]
    %v58 = vld [vmem:[#allocation2 + $0x70] sm:$0xff]
    %v59 = vld [vmem:[#allocation2 + $0x78] sm:$0xff]
    %v60 = vld [vmem:[#allocation2 + $0x80] sm:$0xff]
    %v61 = vld [vmem:[#allocation2 + $0x88] sm:$0xff]
    %v62 = vld [vmem:[#allocation2 + $0x90] sm:$0xff]
    %v63 = vld [vmem:[#allocation2 + $0x98] sm:$0xff]
    %v64 = vld [vmem:[#allocation2 + $0xa0] sm:$0xff]
    %v65 = vld [vmem:[#allocation2 + $0xa8] sm:$0xff]
    %v66 = vld [vmem:[#allocation2 + $0xb0] sm:$0xff]
    %v67 = vld [vmem:[#allocation2 + $0xb8] sm:$0xff]
    %v68 = vld [vmem:[#allocation2 + $0xc0] sm:$0xff]
    %v69 = vld [vmem:[#allocation2 + $0xc8] sm:$0xff]
    %v70 = vld [vmem:[#allocation2 + $0xd0] sm:$0xff]
    %v71 = vld [vmem:[#allocation2 + $0xd8] sm:$0xff]
    %v72 = vld [vmem:[#allocation2 + $0xe0] sm:$0xff]
    %v73 = vld [vmem:[#allocation2 + $0xe8] sm:$0xff]
    %v74 = vld [vmem:[#allocation2 + $0xf0] sm:$0xff]
    %v75 = vld [vmem:[#allocation2 + $0xf8] sm:$0xff]
    %v76 = vld [vmem:[%s1] sm:$0xff]
    %v77 = vld [vmem:[%s1 + $0x8] sm:$0xff]
    %v78 = vld [vmem:[%s2] sm:$0xff]
    %v79 = vld [vmem:[%s2 + $0x8] sm:$0xff]
    %v80 = vld [vmem:[%s2 + $0x10] sm:$0xff]
    %v81 = vld [vmem:[%s2 + $0x18] sm:$0xff]
    %v82 = vld [vmem:[%s2 + $0x20] sm:$0xff]
    %v83 = vld [vmem:[%s2 + $0x28] sm:$0xff]
    %v84 = vld [vmem:[%s2 + $0x30] sm:$0xff]
    %v85 = vld [vmem:[%s2 + $0x38] sm:$0xff]
    %v86 = vld [vmem:[%s2 + $0x40] sm:$0xff]
    %v87 = vld [vmem:[%s2 + $0x48] sm:$0xff]
    %v88 = vld [vmem:[%s2 + $0x50] sm:$0xff]
    %v89 = vld [vmem:[%s2 + $0x58] sm:$0xff]
    %v90 = vld [vmem:[%s2 + $0x60] sm:$0xff]
    %v91 = vld [vmem:[%s2 + $0x68] sm:$0xff]
    %v92 = vld [vmem:[%s2 + $0x70] sm:$0xff]
    %v93 = vld [vmem:[%s2 + $0x78] sm:$0xff]
    %v94 = vld [vmem:[%s3] sm:$0x1]
    %v96 = vlaneseq
    %v97 = vshrl.u32 %v96, 7
    %v98 = vsub.s32 0, %v97
    %v99 = vrot.slane %v94, %v98
    %101 = vmatprep.subr.mxu0 0.0
    %102 = vmatpush1.msra.mxu0 %v93
    %103 = vmatprep.subr.mxu0 0.0
    %104 = vmatpush1.msra.mxu0 %v92
    %105 = vmatprep.subr.mxu0 0.0
    %106 = vmatpush1.msra.mxu0 %v91
    %107 = vmatprep.subr.mxu0 0.0
    %108 = vmatpush1.msra.mxu0 %v90
    %109 = vmatprep.subr.mxu0 0.0
    %110 = vmatpush1.msra.mxu0 %v89
    %111 = vmatprep.subr.mxu0 0.0
    %112 = vmatpush1.msra.mxu0 %v88
    %113 = vmatprep.subr.mxu0 0.0
    %114 = vmatpush1.msra.mxu0 %v87
    %115 = vmatprep.subr.mxu0 0.0
    %116 = vmatpush1.msra.mxu0 %v86
    %117 = vmatprep.subr.mxu0 0.0
    %118 = vmatpush1.msra.mxu0 %v85
    %119 = vmatprep.subr.mxu0 0.0
    %120 = vmatpush1.msra.mxu0 %v84
    %121 = vmatprep.subr.mxu0 0.0
    %122 = vmatpush1.msra.mxu0 %v83
    %123 = vmatprep.subr.mxu0 0.0
    %124 = vmatpush1.msra.mxu0 %v82
    %125 = vmatprep.subr.mxu0 0.0
    %126 = vmatpush1.msra.mxu0 %v81
    %127 = vmatprep.subr.mxu0 0.0
    %128 = vmatpush1.msra.mxu0 %v80
    %129 = vmatprep.subr.mxu0 0.0
    %130 = vmatpush1.msra.mxu0 %v79
    %131 = vmatprep.subr.mxu0 0.0
    %132 = vmatpush1.msra.mxu0 %v78
    %133 = vmatprep.subr.mxu0 0.0
    %134 = vmatpush2.msra.mxu0 0.0
    %135 = vmatprep.subr.mxu0 0.0
    %136 = vmatpush2.msra.mxu0 0.0
    %137 = vmatprep.subr.mxu0 0.0
    %138 = vmatpush2.msra.mxu0 0.0
    %139 = vmatprep.subr.mxu0 0.0
    %140 = vmatpush2.msra.mxu0 0.0
    %141 = vmatprep.subr.mxu0 0.0
    %142 = vmatpush2.msra.mxu0 0.0
    %143 = vmatprep.subr.mxu0 0.0
    %144 = vmatpush2.msra.mxu0 0.0
    %145 = vmatprep.subr.mxu0 0.0
    %146 = vmatpush2.msra.mxu0 0.0
    %147 = vmatprep.subr.mxu0 0.0
    %148 = vmatpush2.msra.mxu0 0.0
    %149 = vmatprep.subr.mxu0 0.0
    %150 = vmatpush2.msra.mxu0 0.0
    %151 = vmatprep.subr.mxu0 0.0
    %152 = vmatpush2.msra.mxu0 0.0
    %153 = vmatprep.subr.mxu0 0.0
    %154 = vmatpush2.msra.mxu0 0.0
    %155 = vmatprep.subr.mxu0 0.0
    %156 = vmatpush2.msra.mxu0 0.0
    %157 = vmatprep.subr.mxu0 0.0
    %158 = vmatpush2.msra.mxu0 0.0
    %159 = vmatprep.subr.mxu0 0.0
    %160 = vmatpush2.msra.mxu0 0.0
    %161 = vmatprep.subr.mxu0 0.0
    %162 = vmatpush2.msra.mxu0 0.0
    %163 = vmatprep.subr.mxu0 0.0
    %164 = vmatpush2.msra.mxu0 0.0
    %165 = vmatprep.mubr.f32.mxu0 0.0
    %166 = vmatmul.mubr.f32.gmra.mxu0 %v44
    %v167 = vpop.f32.mrf.mxu0
    %v168 = vadd.f32 %v99, %v167
    %v169 = vpop.f32.mrf.mxu0
    %170 = vmatprep.mubr.f32.mxu0 0.0
    %171 = vmatmul.mubr.f32.gmra.mxu0 %v45
    %v172 = vpop.f32.mrf.mxu0
    %v173 = vadd.f32 %v99, %v172
    %v174 = vpop.f32.mrf.mxu0
    %175 = vmatprep.mubr.f32.mxu0 0.0
    %176 = vmatmul.mubr.f32.gmra.mxu0 %v46
    %v177 = vpop.f32.mrf.mxu0
    %v178 = vadd.f32 %v99, %v177
    %v179 = vpop.f32.mrf.mxu0
    %180 = vmatprep.mubr.f32.mxu0 0.0
    %181 = vmatmul.mubr.f32.gmra.mxu0 %v47
    %v182 = vpop.f32.mrf.mxu0
    %v183 = vadd.f32 %v99, %v182
    %v184 = vpop.f32.mrf.mxu0
    %185 = vmatprep.mubr.f32.mxu0 0.0
    %186 = vmatmul.mubr.f32.gmra.mxu0 %v48
    %v187 = vpop.f32.mrf.mxu0
    %v188 = vadd.f32 %v99, %v187
    %v189 = vpop.f32.mrf.mxu0
    %190 = vmatprep.mubr.f32.mxu0 0.0
    %191 = vmatmul.mubr.f32.gmra.mxu0 %v49
    %v192 = vpop.f32.mrf.mxu0
    %v193 = vadd.f32 %v99, %v192
    %v194 = vpop.f32.mrf.mxu0
    %195 = vmatprep.mubr.f32.mxu0 0.0
    %196 = vmatmul.mubr.f32.gmra.mxu0 %v50
    %v197 = vpop.f32.mrf.mxu0
    %v198 = vadd.f32 %v99, %v197
    %v199 = vpop.f32.mrf.mxu0
    %200 = vmatprep.mubr.f32.mxu0 0.0
    %201 = vmatmul.mubr.f32.gmra.mxu0 %v51
    %v202 = vpop.f32.mrf.mxu0
    %v203 = vadd.f32 %v99, %v202
    %v204 = vpop.f32.mrf.mxu0
    %205 = vmatprep.mubr.f32.mxu0 0.0
    %206 = vmatmul.mubr.f32.gmra.mxu0 %v52
    %v207 = vpop.f32.mrf.mxu0
    %v208 = vadd.f32 %v99, %v207
    %v209 = vpop.f32.mrf.mxu0
    %210 = vmatprep.mubr.f32.mxu0 0.0
    %211 = vmatmul.mubr.f32.gmra.mxu0 %v53
    %v212 = vpop.f32.mrf.mxu0
    %v213 = vadd.f32 %v99, %v212
    %v214 = vpop.f32.mrf.mxu0
    %215 = vmatprep.mubr.f32.mxu0 0.0
    %216 = vmatmul.mubr.f32.gmra.mxu0 %v54
    %v217 = vpop.f32.mrf.mxu0
    %v218 = vadd.f32 %v99, %v217
    %v219 = vpop.f32.mrf.mxu0
    %220 = vmatprep.mubr.f32.mxu0 0.0
    %221 = vmatmul.mubr.f32.gmra.mxu0 %v55
    %v222 = vpop.f32.mrf.mxu0
    %v223 = vadd.f32 %v99, %v222
    %v224 = vpop.f32.mrf.mxu0
    %225 = vmatprep.mubr.f32.mxu0 0.0
    %226 = vmatmul.mubr.f32.gmra.mxu0 %v56
    %v227 = vpop.f32.mrf.mxu0
    %v228 = vadd.f32 %v99, %v227
    %v229 = vpop.f32.mrf.mxu0
    %230 = vmatprep.mubr.f32.mxu0 0.0
    %231 = vmatmul.mubr.f32.gmra.mxu0 %v57
    %v232 = vpop.f32.mrf.mxu0
    %v233 = vadd.f32 %v99, %v232
    %v234 = vpop.f32.mrf.mxu0
    %235 = vmatprep.mubr.f32.mxu0 0.0
    %236 = vmatmul.mubr.f32.gmra.mxu0 %v58
    %v237 = vpop.f32.mrf.mxu0
    %v238 = vadd.f32 %v99, %v237
    %v239 = vpop.f32.mrf.mxu0
    %240 = vmatprep.mubr.f32.mxu0 0.0
    %241 = vmatmul.mubr.f32.gmra.mxu0 %v59
    %v242 = vpop.f32.mrf.mxu0
    %v243 = vadd.f32 %v99, %v242
    %v244 = vpop.f32.mrf.mxu0
    %245 = vmatprep.mubr.f32.mxu0 0.0
    %246 = vmatmul.mubr.f32.gmra.mxu0 %v60
    %v247 = vpop.f32.mrf.mxu0
    %v248 = vadd.f32 %v99, %v247
    %v249 = vpop.f32.mrf.mxu0
    %250 = vmatprep.mubr.f32.mxu0 0.0
    %251 = vmatmul.mubr.f32.gmra.mxu0 %v61
    %v252 = vpop.f32.mrf.mxu0
    %v253 = vadd.f32 %v99, %v252
    %v254 = vpop.f32.mrf.mxu0
    %255 = vmatprep.mubr.f32.mxu0 0.0
    %256 = vmatmul.mubr.f32.gmra.mxu0 %v62
    %v257 = vpop.f32.mrf.mxu0
    %v258 = vadd.f32 %v99, %v257
    %v259 = vpop.f32.mrf.mxu0
    %260 = vmatprep.mubr.f32.mxu0 0.0
    %261 = vmatmul.mubr.f32.gmra.mxu0 %v63
    %v262 = vpop.f32.mrf.mxu0
    %v263 = vadd.f32 %v99, %v262
    %v264 = vpop.f32.mrf.mxu0
    %265 = vmatprep.mubr.f32.mxu0 0.0
    %266 = vmatmul.mubr.f32.gmra.mxu0 %v64
    %v267 = vpop.f32.mrf.mxu0
    %v268 = vadd.f32 %v99, %v267
    %v269 = vpop.f32.mrf.mxu0
    %270 = vmatprep.mubr.f32.mxu0 0.0
    %271 = vmatmul.mubr.f32.gmra.mxu0 %v65
    %v272 = vpop.f32.mrf.mxu0
    %v273 = vadd.f32 %v99, %v272
    %v274 = vpop.f32.mrf.mxu0
    %275 = vmatprep.mubr.f32.mxu0 0.0
    %276 = vmatmul.mubr.f32.gmra.mxu0 %v66
    %v277 = vpop.f32.mrf.mxu0
    %v278 = vadd.f32 %v99, %v277
    %v279 = vpop.f32.mrf.mxu0
    %280 = vmatprep.mubr.f32.mxu0 0.0
    %281 = vmatmul.mubr.f32.gmra.mxu0 %v67
    %v282 = vpop.f32.mrf.mxu0
    %v283 = vadd.f32 %v99, %v282
    %v284 = vpop.f32.mrf.mxu0
    %285 = vmatprep.mubr.f32.mxu0 0.0
    %286 = vmatmul.mubr.f32.gmra.mxu0 %v68
    %v287 = vpop.f32.mrf.mxu0
    %v288 = vadd.f32 %v99, %v287
    %v289 = vpop.f32.mrf.mxu0
    %290 = vmatprep.mubr.f32.mxu0 0.0
    %291 = vmatmul.mubr.f32.gmra.mxu0 %v69
    %v292 = vpop.f32.mrf.mxu0
    %v293 = vadd.f32 %v99, %v292
    %v294 = vpop.f32.mrf.mxu0
    %295 = vmatprep.mubr.f32.mxu0 0.0
    %296 = vmatmul.mubr.f32.gmra.mxu0 %v70
    %v297 = vpop.f32.mrf.mxu0
    %v298 = vadd.f32 %v99, %v297
    %v299 = vpop.f32.mrf.mxu0
    %300 = vmatprep.mubr.f32.mxu0 0.0
    %301 = vmatmul.mubr.f32.gmra.mxu0 %v71
    %v302 = vpop.f32.mrf.mxu0
    %v303 = vadd.f32 %v99, %v302
    %v304 = vpop.f32.mrf.mxu0
    %305 = vmatprep.mubr.f32.mxu0 0.0
    %306 = vmatmul.mubr.f32.gmra.mxu0 %v72
    %v307 = vpop.f32.mrf.mxu0
    %v308 = vadd.f32 %v99, %v307
    %v309 = vpop.f32.mrf.mxu0
    %310 = vmatprep.mubr.f32.mxu0 0.0
    %311 = vmatmul.mubr.f32.gmra.mxu0 %v73
    %v312 = vpop.f32.mrf.mxu0
    %v313 = vadd.f32 %v99, %v312
    %v314 = vpop.f32.mrf.mxu0
    %315 = vmatprep.mubr.f32.mxu0 0.0
    %316 = vmatmul.mubr.f32.gmra.mxu0 %v74
    %v317 = vpop.f32.mrf.mxu0
    %v318 = vadd.f32 %v99, %v317
    %v319 = vpop.f32.mrf.mxu0
    %320 = vmatprep.mubr.f32.mxu0 0.0
    %321 = vmatmul.mubr.f32.gmra.mxu0 %v75
    %v322 = vpop.f32.mrf.mxu0
    %v323 = vadd.f32 %v99, %v322
    %v324 = vpop.f32.mrf.mxu0
    %325 = vdwg.mxu0
    %v326 = vld [vmem:[%s4] sm:$0xff]
    %v327 = vld [vmem:[%s4 + $0x8] sm:$0xff]
    %v328 = vld [vmem:[%s4 + $0x10] sm:$0xff]
    %v329 = vld [vmem:[%s4 + $0x18] sm:$0xff]
    %v330 = vld [vmem:[%s5] sm:$0x1]
    %v332 = vlaneseq
    %v333 = vshrl.u32 %v332, 7
    %v334 = vsub.s32 0, %v333
    %v335 = vrot.slane %v330, %v334
    %vm337 = vcmask 261120
    %v339 = vsel %vm337, %v76, 0
    %v342 = vsel %vm337, %v77, 0
    %344 = vmatprep.subr.mxu0 0.0
    %345 = vmatpush1.msra.mxu0 0.0
    %346 = vmatprep.subr.mxu0 0.0
    %347 = vmatpush1.msra.mxu0 0.0
    %348 = vmatprep.subr.mxu0 0.0
    %349 = vmatpush1.msra.mxu0 0.0
    %350 = vmatprep.subr.mxu0 0.0
    %351 = vmatpush1.msra.mxu0 0.0
    %352 = vmatprep.subr.mxu0 0.0
    %353 = vmatpush1.msra.mxu0 0.0
    %354 = vmatprep.subr.mxu0 0.0
    %355 = vmatpush1.msra.mxu0 0.0
    %356 = vmatprep.subr.mxu0 0.0
    %357 = vmatpush1.msra.mxu0 0.0
    %358 = vmatprep.subr.mxu0 0.0
    %359 = vmatpush1.msra.mxu0 0.0
    %360 = vmatprep.subr.mxu0 0.0
    %361 = vmatpush1.msra.mxu0 0.0
    %362 = vmatprep.subr.mxu0 0.0
    %363 = vmatpush1.msra.mxu0 0.0
    %364 = vmatprep.subr.mxu0 0.0
    %365 = vmatpush1.msra.mxu0 0.0
    %366 = vmatprep.subr.mxu0 0.0
    %367 = vmatpush1.msra.mxu0 0.0
    %368 = vmatprep.subr.mxu0 0.0
    %369 = vmatpush1.msra.mxu0 %v329
    %370 = vmatprep.subr.mxu0 0.0
    %371 = vmatpush1.msra.mxu0 %v328
    %372 = vmatprep.subr.mxu0 0.0
    %373 = vmatpush1.msra.mxu0 %v327
    %374 = vmatprep.subr.mxu0 0.0
    %375 = vmatpush1.msra.mxu0 %v326
    %376 = vmatprep.subr.mxu0 0.0
    %377 = vmatpush2.msra.mxu0 0.0
    %378 = vmatprep.subr.mxu0 0.0
    %379 = vmatpush2.msra.mxu0 0.0
    %380 = vmatprep.subr.mxu0 0.0
    %381 = vmatpush2.msra.mxu0 0.0
    %382 = vmatprep.subr.mxu0 0.0
    %383 = vmatpush2.msra.mxu0 0.0
    %384 = vmatprep.subr.mxu0 0.0
    %385 = vmatpush2.msra.mxu0 0.0
    %386 = vmatprep.subr.mxu0 0.0
    %387 = vmatpush2.msra.mxu0 0.0
    %388 = vmatprep.subr.mxu0 0.0
    %389 = vmatpush2.msra.mxu0 0.0
    %390 = vmatprep.subr.mxu0 0.0
    %391 = vmatpush2.msra.mxu0 0.0
    %392 = vmatprep.subr.mxu0 0.0
    %393 = vmatpush2.msra.mxu0 0.0
    %394 = vmatprep.subr.mxu0 0.0
    %395 = vmatpush2.msra.mxu0 0.0
    %396 = vmatprep.subr.mxu0 0.0
    %397 = vmatpush2.msra.mxu0 0.0
    %398 = vmatprep.subr.mxu0 0.0
    %399 = vmatpush2.msra.mxu0 0.0
    %400 = vmatprep.subr.mxu0 0.0
    %401 = vmatpush2.msra.mxu0 0.0
    %402 = vmatprep.subr.mxu0 0.0
    %403 = vmatpush2.msra.mxu0 0.0
    %404 = vmatprep.subr.mxu0 0.0
    %405 = vmatpush2.msra.mxu0 0.0
    %406 = vmatprep.subr.mxu0 0.0
    %407 = vmatpush2.msra.mxu0 0.0
    %408 = vmatprep.mubr.f32.mxu0 0.0
    %409 = vmatmul.mubr.f32.gmra.mxu0 %v339
    %v410 = vpop.f32.mrf.mxu0
    %v411 = vadd.f32 %v335, %v410
    %v412 = vpop.f32.mrf.mxu0
    %413 = vmatprep.mubr.f32.mxu0 0.0
    %414 = vmatmul.mubr.f32.gmra.mxu0 %v342
    %v415 = vpop.f32.mrf.mxu0
    %v416 = vadd.f32 %v335, %v415
    %v417 = vpop.f32.mrf.mxu0
    %418 = vdwg.mxu0
    %v421 = vcombine.high %v411, %v411
    %v423 = vunpack.c.l.s4 1966171168
    %v424 = vunpack.c.0.s8 %v423
    %v425 = vlaneseq
    %v426 = vshrl.u32 %v425, 7
    %v427 = vsub.s32 %v424, %v426
    %v428 = vrot.slane %v411, %v427
    %v430 = vunpack.c.l.s4 1966171168
    %v431 = vunpack.c.0.s8 %v430
    %v432 = vlaneseq
    %v433 = vshrl.u32 %v432, 7
    %v434 = vsub.s32 %v431, %v433
    %v435 = vrot.slane %v421, %v434
    %v436 = vcombine.high %v428, %v428
    %v437 = vcombine.high %v435, %v435
    %v439 = vunpack.c.l.s4 1966171168
    %v440 = vunpack.c.0.s8 %v439
    %v441 = vlaneseq
    %v442 = vshrl.u32 %v441, 7
    %v443 = vsub.s32 %v440, %v442
    %v444 = vrot.slane %v428, %v443
    %v446 = vunpack.c.l.s4 1966171168
    %v447 = vunpack.c.0.s8 %v446
    %v448 = vlaneseq
    %v449 = vshrl.u32 %v448, 7
    %v450 = vsub.s32 %v447, %v449
    %v451 = vrot.slane %v435, %v450
    %v453 = vunpack.c.l.s4 1966171168
    %v454 = vunpack.c.0.s8 %v453
    %v455 = vlaneseq
    %v456 = vshrl.u32 %v455, 7
    %v457 = vsub.s32 %v454, %v456
    %v458 = vrot.slane %v436, %v457
    %v460 = vunpack.c.l.s4 1966171168
    %v461 = vunpack.c.0.s8 %v460
    %v462 = vlaneseq
    %v463 = vshrl.u32 %v462, 7
    %v464 = vsub.s32 %v461, %v463
    %v465 = vrot.slane %v437, %v464
    %v466 = vcombine.high %v444, %v444
    %v467 = vcombine.high %v451, %v451
    %v468 = vcombine.high %v458, %v458
    %v469 = vcombine.high %v465, %v465
    %v470 = vcombine.high %v416, %v416
    %v472 = vunpack.c.l.s4 1966171168
    %v473 = vunpack.c.0.s8 %v472
    %v474 = vlaneseq
    %v475 = vshrl.u32 %v474, 7
    %v476 = vsub.s32 %v473, %v475
    %v477 = vrot.slane %v416, %v476
    %v479 = vunpack.c.l.s4 1966171168
    %v480 = vunpack.c.0.s8 %v479
    %v481 = vlaneseq
    %v482 = vshrl.u32 %v481, 7
    %v483 = vsub.s32 %v480, %v482
    %v484 = vrot.slane %v470, %v483
    %v485 = vcombine.high %v477, %v477
    %v486 = vcombine.high %v484, %v484
    %v488 = vunpack.c.l.s4 1966171168
    %v489 = vunpack.c.0.s8 %v488
    %v490 = vlaneseq
    %v491 = vshrl.u32 %v490, 7
    %v492 = vsub.s32 %v489, %v491
    %v493 = vrot.slane %v477, %v492
    %v495 = vunpack.c.l.s4 1966171168
    %v496 = vunpack.c.0.s8 %v495
    %v497 = vlaneseq
    %v498 = vshrl.u32 %v497, 7
    %v499 = vsub.s32 %v496, %v498
    %v500 = vrot.slane %v484, %v499
    %v502 = vunpack.c.l.s4 1966171168
    %v503 = vunpack.c.0.s8 %v502
    %v504 = vlaneseq
    %v505 = vshrl.u32 %v504, 7
    %v506 = vsub.s32 %v503, %v505
    %v507 = vrot.slane %v485, %v506
    %v509 = vunpack.c.l.s4 1966171168
    %v510 = vunpack.c.0.s8 %v509
    %v511 = vlaneseq
    %v512 = vshrl.u32 %v511, 7
    %v513 = vsub.s32 %v510, %v512
    %v514 = vrot.slane %v486, %v513
    %v515 = vcombine.high %v493, %v493
    %v516 = vcombine.high %v500, %v500
    %v517 = vcombine.high %v507, %v507
    %v518 = vcombine.high %v514, %v514
    %v519 = vlaneseq
    %v520 = vshrl.u32 %v519, 7
    %v521 = vsub.s32 0, %v520
    %v522 = vrot.slane %v444, %v521
    %v523 = vlaneseq
    %v524 = vshrl.u32 %v523, 7
    %v525 = vsub.s32 0, %v524
    %v526 = vrot.slane %v458, %v525
    %v527 = vlaneseq
    %v528 = vshrl.u32 %v527, 7
    %v529 = vsub.s32 0, %v528
    %v530 = vrot.slane %v466, %v529
    %v531 = vlaneseq
    %v532 = vshrl.u32 %v531, 7
    %v533 = vsub.s32 0, %v532
    %v534 = vrot.slane %v468, %v533
    %v535 = vlaneseq
    %v536 = vshrl.u32 %v535, 7
    %v537 = vsub.s32 0, %v536
    %v538 = vrot.slane %v451, %v537
    %v539 = vlaneseq
    %v540 = vshrl.u32 %v539, 7
    %v541 = vsub.s32 0, %v540
    %v542 = vrot.slane %v465, %v541
    %v543 = vlaneseq
    %v544 = vshrl.u32 %v543, 7
    %v545 = vsub.s32 0, %v544
    %v546 = vrot.slane %v467, %v545
    %v547 = vlaneseq
    %v548 = vshrl.u32 %v547, 7
    %v549 = vsub.s32 0, %v548
    %v550 = vrot.slane %v469, %v549
    %v551 = vlaneseq
    %v552 = vshrl.u32 %v551, 7
    %v553 = vsub.s32 0, %v552
    %v554 = vrot.slane %v493, %v553
    %v555 = vlaneseq
    %v556 = vshrl.u32 %v555, 7
    %v557 = vsub.s32 0, %v556
    %v558 = vrot.slane %v507, %v557
    %v559 = vlaneseq
    %v560 = vshrl.u32 %v559, 7
    %v561 = vsub.s32 0, %v560
    %v562 = vrot.slane %v515, %v561
    %v563 = vlaneseq
    %v564 = vshrl.u32 %v563, 7
    %v565 = vsub.s32 0, %v564
    %v566 = vrot.slane %v517, %v565
    %v567 = vlaneseq
    %v568 = vshrl.u32 %v567, 7
    %v569 = vsub.s32 0, %v568
    %v570 = vrot.slane %v500, %v569
    %v571 = vlaneseq
    %v572 = vshrl.u32 %v571, 7
    %v573 = vsub.s32 0, %v572
    %v574 = vrot.slane %v514, %v573
    %v575 = vlaneseq
    %v576 = vshrl.u32 %v575, 7
    %v577 = vsub.s32 0, %v576
    %v578 = vrot.slane %v516, %v577
    %v579 = vlaneseq
    %v580 = vshrl.u32 %v579, 7
    %v581 = vsub.s32 0, %v580
    %v582 = vrot.slane %v518, %v581
    %v599 = vadd.f32 %v168, %v522
    %v600 = vadd.f32 %v173, %v522
    %v601 = vadd.f32 %v178, %v526
    %v602 = vadd.f32 %v183, %v526
    %v603 = vadd.f32 %v188, %v530
    %v604 = vadd.f32 %v193, %v530
    %v605 = vadd.f32 %v198, %v534
    %v606 = vadd.f32 %v203, %v534
    %v607 = vadd.f32 %v208, %v538
    %v608 = vadd.f32 %v213, %v538
    %v609 = vadd.f32 %v218, %v542
    %v610 = vadd.f32 %v223, %v542
    %v611 = vadd.f32 %v228, %v546
    %v612 = vadd.f32 %v233, %v546
    %v613 = vadd.f32 %v238, %v550
    %v614 = vadd.f32 %v243, %v550
    %v615 = vadd.f32 %v248, %v554
    %v616 = vadd.f32 %v253, %v554
    %v617 = vadd.f32 %v258, %v558
    %v618 = vadd.f32 %v263, %v558
    %v619 = vadd.f32 %v268, %v562
    %v620 = vadd.f32 %v273, %v562
    %v621 = vadd.f32 %v278, %v566
    %v622 = vadd.f32 %v283, %v566
    %v623 = vadd.f32 %v288, %v570
    %v624 = vadd.f32 %v293, %v570
    %v625 = vadd.f32 %v298, %v574
    %v626 = vadd.f32 %v303, %v574
    %v627 = vadd.f32 %v308, %v578
    %v628 = vadd.f32 %v313, %v578
    %v629 = vadd.f32 %v318, %v582
    %v630 = vadd.f32 %v323, %v582
    %v631 = vmax.f32 %v599, 0.0
    %v632 = vmax.f32 %v600, 0.0
    %v633 = vmax.f32 %v601, 0.0
    %v634 = vmax.f32 %v602, 0.0
    %v635 = vmax.f32 %v603, 0.0
    %v636 = vmax.f32 %v604, 0.0
    %v637 = vmax.f32 %v605, 0.0
    %v638 = vmax.f32 %v606, 0.0
    %v639 = vmax.f32 %v607, 0.0
    %v640 = vmax.f32 %v608, 0.0
    %v641 = vmax.f32 %v609, 0.0
    %v642 = vmax.f32 %v610, 0.0
    %v643 = vmax.f32 %v611, 0.0
    %v644 = vmax.f32 %v612, 0.0
    %v645 = vmax.f32 %v613, 0.0
    %v646 = vmax.f32 %v614, 0.0
    %v647 = vmax.f32 %v615, 0.0
    %v648 = vmax.f32 %v616, 0.0
    %v649 = vmax.f32 %v617, 0.0
    %v650 = vmax.f32 %v618, 0.0
    %v651 = vmax.f32 %v619, 0.0
    %v652 = vmax.f32 %v620, 0.0
    %v653 = vmax.f32 %v621, 0.0
    %v654 = vmax.f32 %v622, 0.0
    %v655 = vmax.f32 %v623, 0.0
    %v656 = vmax.f32 %v624, 0.0
    %v657 = vmax.f32 %v625, 0.0
    %v658 = vmax.f32 %v626, 0.0
    %v659 = vmax.f32 %v627, 0.0
    %v660 = vmax.f32 %v628, 0.0
    %v661 = vmax.f32 %v629, 0.0
    %v662 = vmax.f32 %v630, 0.0
    %v663 = vld [vmem:[%s6] sm:$0x1]
    %v665 = vlaneseq
    %v666 = vshrl.u32 %v665, 7
    %v667 = vsub.s32 0, %v666
    %v668 = vrot.slane %v663, %v667
    %v670 = vmul.f32 %v631, %v668
    %v671 = vmul.f32 %v632, %v668
    %v672 = vmul.f32 %v633, %v668
    %v673 = vmul.f32 %v634, %v668
    %v674 = vmul.f32 %v635, %v668
    %v675 = vmul.f32 %v636, %v668
    %v676 = vmul.f32 %v637, %v668
    %v677 = vmul.f32 %v638, %v668
    %v678 = vmul.f32 %v639, %v668
    %v679 = vmul.f32 %v640, %v668
    %v680 = vmul.f32 %v641, %v668
    %v681 = vmul.f32 %v642, %v668
    %v682 = vmul.f32 %v643, %v668
    %v683 = vmul.f32 %v644, %v668
    %v684 = vmul.f32 %v645, %v668
    %v685 = vmul.f32 %v646, %v668
    %v686 = vmul.f32 %v647, %v668
    %v687 = vmul.f32 %v648, %v668
    %v688 = vmul.f32 %v649, %v668
    %v689 = vmul.f32 %v650, %v668
    %v690 = vmul.f32 %v651, %v668
    %v691 = vmul.f32 %v652, %v668
    %v692 = vmul.f32 %v653, %v668
    %v693 = vmul.f32 %v654, %v668
    %v694 = vmul.f32 %v655, %v668
    %v695 = vmul.f32 %v656, %v668
    %v696 = vmul.f32 %v657, %v668
    %v697 = vmul.f32 %v658, %v668
    %v698 = vmul.f32 %v659, %v668
    %v699 = vmul.f32 %v660, %v668
    %v700 = vmul.f32 %v661, %v668
    %v701 = vmul.f32 %v662, %v668
    %v702 = vsel %vm337, %v670, 0.0
    %703 = vadd.xlane.f32.xlu0 %v702
    %v704 = vpop.xlane.xlu0 %703
    %v705 = vsel %vm337, %v671, 0.0
    %706 = vadd.xlane.f32.xlu0 %v705
    %v707 = vpop.xlane.xlu0 %706
    %v708 = vsel %vm337, %v672, 0.0
    %709 = vadd.xlane.f32.xlu0 %v708
    %v710 = vpop.xlane.xlu0 %709
    %v711 = vsel %vm337, %v673, 0.0
    %712 = vadd.xlane.f32.xlu0 %v711
    %v713 = vpop.xlane.xlu0 %712
    %v714 = vsel %vm337, %v674, 0.0
    %715 = vadd.xlane.f32.xlu0 %v714
    %v716 = vpop.xlane.xlu0 %715
    %v717 = vsel %vm337, %v675, 0.0
    %718 = vadd.xlane.f32.xlu0 %v717
    %v719 = vpop.xlane.xlu0 %718
    %v720 = vsel %vm337, %v676, 0.0
    %721 = vadd.xlane.f32.xlu0 %v720
    %v722 = vpop.xlane.xlu0 %721
    %v723 = vsel %vm337, %v677, 0.0
    %724 = vadd.xlane.f32.xlu0 %v723
    %v725 = vpop.xlane.xlu0 %724
    %v726 = vsel %vm337, %v678, 0.0
    %727 = vadd.xlane.f32.xlu0 %v726
    %v728 = vpop.xlane.xlu0 %727
    %v729 = vsel %vm337, %v679, 0.0
    %730 = vadd.xlane.f32.xlu0 %v729
    %v731 = vpop.xlane.xlu0 %730
    %v732 = vsel %vm337, %v680, 0.0
    %733 = vadd.xlane.f32.xlu0 %v732
    %v734 = vpop.xlane.xlu0 %733
    %v735 = vsel %vm337, %v681, 0.0
    %736 = vadd.xlane.f32.xlu0 %v735
    %v737 = vpop.xlane.xlu0 %736
    %v738 = vsel %vm337, %v682, 0.0
    %739 = vadd.xlane.f32.xlu0 %v738
    %v740 = vpop.xlane.xlu0 %739
    %v741 = vsel %vm337, %v683, 0.0
    %742 = vadd.xlane.f32.xlu0 %v741
    %v743 = vpop.xlane.xlu0 %742
    %v744 = vsel %vm337, %v684, 0.0
    %745 = vadd.xlane.f32.xlu0 %v744
    %v746 = vpop.xlane.xlu0 %745
    %v747 = vsel %vm337, %v685, 0.0
    %748 = vadd.xlane.f32.xlu0 %v747
    %v749 = vpop.xlane.xlu0 %748
    %v750 = vsel %vm337, %v686, 0.0
    %751 = vadd.xlane.f32.xlu0 %v750
    %v752 = vpop.xlane.xlu0 %751
    %v753 = vsel %vm337, %v687, 0.0
    %754 = vadd.xlane.f32.xlu0 %v753
    %v755 = vpop.xlane.xlu0 %754
    %v756 = vsel %vm337, %v688, 0.0
    %757 = vadd.xlane.f32.xlu0 %v756
    %v758 = vpop.xlane.xlu0 %757
    %v759 = vsel %vm337, %v689, 0.0
    %760 = vadd.xlane.f32.xlu0 %v759
    %v761 = vpop.xlane.xlu0 %760
    %v762 = vsel %vm337, %v690, 0.0
    %763 = vadd.xlane.f32.xlu0 %v762
    %v764 = vpop.xlane.xlu0 %763
    %v765 = vsel %vm337, %v691, 0.0
    %766 = vadd.xlane.f32.xlu0 %v765
    %v767 = vpop.xlane.xlu0 %766
    %v768 = vsel %vm337, %v692, 0.0
    %769 = vadd.xlane.f32.xlu0 %v768
    %v770 = vpop.xlane.xlu0 %769
    %v771 = vsel %vm337, %v693, 0.0
    %772 = vadd.xlane.f32.xlu0 %v771
    %v773 = vpop.xlane.xlu0 %772
    %v774 = vsel %vm337, %v694, 0.0
    %775 = vadd.xlane.f32.xlu0 %v774
    %v776 = vpop.xlane.xlu0 %775
    %v777 = vsel %vm337, %v695, 0.0
    %778 = vadd.xlane.f32.xlu0 %v777
    %v779 = vpop.xlane.xlu0 %778
    %v780 = vsel %vm337, %v696, 0.0
    %781 = vadd.xlane.f32.xlu0 %v780
    %v782 = vpop.xlane.xlu0 %781
    %v783 = vsel %vm337, %v697, 0.0
    %784 = vadd.xlane.f32.xlu0 %v783
    %v785 = vpop.xlane.xlu0 %784
    %v786 = vsel %vm337, %v698, 0.0
    %787 = vadd.xlane.f32.xlu0 %v786
    %v788 = vpop.xlane.xlu0 %787
    %v789 = vsel %vm337, %v699, 0.0
    %790 = vadd.xlane.f32.xlu0 %v789
    %v791 = vpop.xlane.xlu0 %790
    %v792 = vsel %vm337, %v700, 0.0
    %793 = vadd.xlane.f32.xlu0 %v792
    %v794 = vpop.xlane.xlu0 %793
    %v795 = vsel %vm337, %v701, 0.0
    %796 = vadd.xlane.f32.xlu0 %v795
    %v797 = vpop.xlane.xlu0 %796
    %v830 = vlaneseq
    %v831 = vand.u32 %v830, 127
    %v832 = vlaneseq
    %v833 = vshrl.u32 %v832, 7
    %v834 = vsub.s32 %v831, %v833
    %v835 = vrot.slane %v704, %v834
    %v836 = vadd.s32 %v831, 4294967288
    %v837 = vlaneseq
    %v838 = vshrl.u32 %v837, 7
    %v839 = vsub.s32 %v836, %v838
    %v840 = vrot.slane %v707, %v839
    %vm841 = vcmask 130112
    %v842 = vsel %vm841, %v840, %v835
    %v843 = vlaneseq
    %v844 = vshrl.u32 %v843, 7
    %v845 = vsub.s32 %v831, %v844
    %v846 = vrot.slane %v710, %v845
    %v847 = vlaneseq
    %v848 = vshrl.u32 %v847, 7
    %v849 = vsub.s32 %v836, %v848
    %v850 = vrot.slane %v713, %v849
    %v851 = vsel %vm841, %v850, %v846
    %v852 = vlaneseq
    %v853 = vshrl.u32 %v852, 7
    %v854 = vsub.s32 %v831, %v853
    %v855 = vrot.slane %v716, %v854
    %v856 = vlaneseq
    %v857 = vshrl.u32 %v856, 7
    %v858 = vsub.s32 %v836, %v857
    %v859 = vrot.slane %v719, %v858
    %v860 = vsel %vm841, %v859, %v855
    %v861 = vlaneseq
    %v862 = vshrl.u32 %v861, 7
    %v863 = vsub.s32 %v831, %v862
    %v864 = vrot.slane %v722, %v863
    %v865 = vlaneseq
    %v866 = vshrl.u32 %v865, 7
    %v867 = vsub.s32 %v836, %v866
    %v868 = vrot.slane %v725, %v867
    %v869 = vsel %vm841, %v868, %v864
    %v870 = vlaneseq
    %v871 = vshrl.u32 %v870, 7
    %v872 = vsub.s32 %v831, %v871
    %v873 = vrot.slane %v728, %v872
    %v874 = vlaneseq
    %v875 = vshrl.u32 %v874, 7
    %v876 = vsub.s32 %v836, %v875
    %v877 = vrot.slane %v731, %v876
    %v878 = vsel %vm841, %v877, %v873
    %v879 = vlaneseq
    %v880 = vshrl.u32 %v879, 7
    %v881 = vsub.s32 %v831, %v880
    %v882 = vrot.slane %v734, %v881
    %v883 = vlaneseq
    %v884 = vshrl.u32 %v883, 7
    %v885 = vsub.s32 %v836, %v884
    %v886 = vrot.slane %v737, %v885
    %v887 = vsel %vm841, %v886, %v882
    %v888 = vlaneseq
    %v889 = vshrl.u32 %v888, 7
    %v890 = vsub.s32 %v831, %v889
    %v891 = vrot.slane %v740, %v890
    %v892 = vlaneseq
    %v893 = vshrl.u32 %v892, 7
    %v894 = vsub.s32 %v836, %v893
    %v895 = vrot.slane %v743, %v894
    %v896 = vsel %vm841, %v895, %v891
    %v897 = vlaneseq
    %v898 = vshrl.u32 %v897, 7
    %v899 = vsub.s32 %v831, %v898
    %v900 = vrot.slane %v746, %v899
    %v901 = vlaneseq
    %v902 = vshrl.u32 %v901, 7
    %v903 = vsub.s32 %v836, %v902
    %v904 = vrot.slane %v749, %v903
    %v905 = vsel %vm841, %v904, %v900
    %v906 = vlaneseq
    %v907 = vshrl.u32 %v906, 7
    %v908 = vsub.s32 %v831, %v907
    %v909 = vrot.slane %v752, %v908
    %v910 = vlaneseq
    %v911 = vshrl.u32 %v910, 7
    %v912 = vsub.s32 %v836, %v911
    %v913 = vrot.slane %v755, %v912
    %v914 = vsel %vm841, %v913, %v909
    %v915 = vlaneseq
    %v916 = vshrl.u32 %v915, 7
    %v917 = vsub.s32 %v831, %v916
    %v918 = vrot.slane %v758, %v917
    %v919 = vlaneseq
    %v920 = vshrl.u32 %v919, 7
    %v921 = vsub.s32 %v836, %v920
    %v922 = vrot.slane %v761, %v921
    %v923 = vsel %vm841, %v922, %v918
    %v924 = vlaneseq
    %v925 = vshrl.u32 %v924, 7
    %v926 = vsub.s32 %v831, %v925
    %v927 = vrot.slane %v764, %v926
    %v928 = vlaneseq
    %v929 = vshrl.u32 %v928, 7
    %v930 = vsub.s32 %v836, %v929
    %v931 = vrot.slane %v767, %v930
    %v932 = vsel %vm841, %v931, %v927
    %v933 = vlaneseq
    %v934 = vshrl.u32 %v933, 7
    %v935 = vsub.s32 %v831, %v934
    %v936 = vrot.slane %v770, %v935
    %v937 = vlaneseq
    %v938 = vshrl.u32 %v937, 7
    %v939 = vsub.s32 %v836, %v938
    %v940 = vrot.slane %v773, %v939
    %v941 = vsel %vm841, %v940, %v936
    %v942 = vlaneseq
    %v943 = vshrl.u32 %v942, 7
    %v944 = vsub.s32 %v831, %v943
    %v945 = vrot.slane %v776, %v944
    %v946 = vlaneseq
    %v947 = vshrl.u32 %v946, 7
    %v948 = vsub.s32 %v836, %v947
    %v949 = vrot.slane %v779, %v948
    %v950 = vsel %vm841, %v949, %v945
    %v951 = vlaneseq
    %v952 = vshrl.u32 %v951, 7
    %v953 = vsub.s32 %v831, %v952
    %v954 = vrot.slane %v782, %v953
    %v955 = vlaneseq
    %v956 = vshrl.u32 %v955, 7
    %v957 = vsub.s32 %v836, %v956
    %v958 = vrot.slane %v785, %v957
    %v959 = vsel %vm841, %v958, %v954
    %v960 = vlaneseq
    %v961 = vshrl.u32 %v960, 7
    %v962 = vsub.s32 %v831, %v961
    %v963 = vrot.slane %v788, %v962
    %v964 = vlaneseq
    %v965 = vshrl.u32 %v964, 7
    %v966 = vsub.s32 %v836, %v965
    %v967 = vrot.slane %v791, %v966
    %v968 = vsel %vm841, %v967, %v963
    %v969 = vlaneseq
    %v970 = vshrl.u32 %v969, 7
    %v971 = vsub.s32 %v831, %v970
    %v972 = vrot.slane %v794, %v971
    %v973 = vlaneseq
    %v974 = vshrl.u32 %v973, 7
    %v975 = vsub.s32 %v836, %v974
    %v976 = vrot.slane %v797, %v975
    %v977 = vsel %vm841, %v976, %v972
    %vm978 = vcmask 1041409
    %v979 = vsel %vm978, %v851, %v842
    %vm980 = vcmask 1042434
    %v981 = vsel %vm980, %v860, %v979
    %vm982 = vcmask 1043459
    %v983 = vsel %vm982, %v869, %v981
    %vm984 = vcmask 1044484
    %v985 = vsel %vm984, %v878, %v983
    %vm986 = vcmask 1045509
    %v987 = vsel %vm986, %v887, %v985
    %vm988 = vcmask 1046534
    %v989 = vsel %vm988, %v896, %v987
    %vm990 = vcmask 1047559
    %v991 = vsel %vm990, %v905, %v989
    %v992 = vsel %vm978, %v923, %v914
    %v993 = vsel %vm980, %v932, %v992
    %v994 = vsel %vm982, %v941, %v993
    %v995 = vsel %vm984, %v950, %v994
    %v996 = vsel %vm986, %v959, %v995
    %v997 = vsel %vm988, %v968, %v996
    %v998 = vsel %vm990, %v977, %v997
    %vm1001 = vcmask 130048
    %v1002 = vsel %vm1001, %v991, -inf
    %1003 = vmax.xlane.f32.xlu0 %v1002
    %v1004 = vpop.xlane.xlu0 %1003
    %v1005 = vsel %vm1001, %v998, -inf
    %1006 = vmax.xlane.f32.xlu0 %v1005
    %v1007 = vpop.xlane.xlu0 %1006
    %v1010 = vlaneseq
    %v1011 = vshrl.u32 %v1010, 7
    %v1012 = vsub.s32 0, %v1011
    %v1013 = vrot.slane %v1004, %v1012
    %v1014 = vlaneseq
    %v1015 = vshrl.u32 %v1014, 7
    %v1016 = vsub.s32 1, %v1015
    %v1017 = vrot.slane %v1004, %v1016
    %v1018 = vlaneseq
    %v1019 = vshrl.u32 %v1018, 7
    %v1020 = vsub.s32 2, %v1019
    %v1021 = vrot.slane %v1004, %v1020
    %v1022 = vlaneseq
    %v1023 = vshrl.u32 %v1022, 7
    %v1024 = vsub.s32 3, %v1023
    %v1025 = vrot.slane %v1004, %v1024
    %v1026 = vlaneseq
    %v1027 = vshrl.u32 %v1026, 7
    %v1028 = vsub.s32 4, %v1027
    %v1029 = vrot.slane %v1004, %v1028
    %v1030 = vlaneseq
    %v1031 = vshrl.u32 %v1030, 7
    %v1032 = vsub.s32 5, %v1031
    %v1033 = vrot.slane %v1004, %v1032
    %v1034 = vlaneseq
    %v1035 = vshrl.u32 %v1034, 7
    %v1036 = vsub.s32 6, %v1035
    %v1037 = vrot.slane %v1004, %v1036
    %v1038 = vlaneseq
    %v1039 = vshrl.u32 %v1038, 7
    %v1040 = vsub.s32 7, %v1039
    %v1041 = vrot.slane %v1004, %v1040
    %v1042 = vlaneseq
    %v1043 = vshrl.u32 %v1042, 7
    %v1044 = vsub.s32 0, %v1043
    %v1045 = vrot.slane %v1007, %v1044
    %v1046 = vlaneseq
    %v1047 = vshrl.u32 %v1046, 7
    %v1048 = vsub.s32 1, %v1047
    %v1049 = vrot.slane %v1007, %v1048
    %v1050 = vlaneseq
    %v1051 = vshrl.u32 %v1050, 7
    %v1052 = vsub.s32 2, %v1051
    %v1053 = vrot.slane %v1007, %v1052
    %v1054 = vlaneseq
    %v1055 = vshrl.u32 %v1054, 7
    %v1056 = vsub.s32 3, %v1055
    %v1057 = vrot.slane %v1007, %v1056
    %v1058 = vlaneseq
    %v1059 = vshrl.u32 %v1058, 7
    %v1060 = vsub.s32 4, %v1059
    %v1061 = vrot.slane %v1007, %v1060
    %v1062 = vlaneseq
    %v1063 = vshrl.u32 %v1062, 7
    %v1064 = vsub.s32 5, %v1063
    %v1065 = vrot.slane %v1007, %v1064
    %v1066 = vlaneseq
    %v1067 = vshrl.u32 %v1066, 7
    %v1068 = vsub.s32 6, %v1067
    %v1069 = vrot.slane %v1007, %v1068
    %v1070 = vlaneseq
    %v1071 = vshrl.u32 %v1070, 7
    %v1072 = vsub.s32 7, %v1071
    %v1073 = vrot.slane %v1007, %v1072
    %v1090 = vsub.f32 %v704, %v1013
    %v1091 = vsub.f32 %v707, %v1013
    %v1092 = vsub.f32 %v710, %v1017
    %v1093 = vsub.f32 %v713, %v1017
    %v1094 = vsub.f32 %v716, %v1021
    %v1095 = vsub.f32 %v719, %v1021
    %v1096 = vsub.f32 %v722, %v1025
    %v1097 = vsub.f32 %v725, %v1025
    %v1098 = vsub.f32 %v728, %v1029
    %v1099 = vsub.f32 %v731, %v1029
    %v1100 = vsub.f32 %v734, %v1033
    %v1101 = vsub.f32 %v737, %v1033
    %v1102 = vsub.f32 %v740, %v1037
    %v1103 = vsub.f32 %v743, %v1037
    %v1104 = vsub.f32 %v746, %v1041
    %v1105 = vsub.f32 %v749, %v1041
    %v1106 = vsub.f32 %v752, %v1045
    %v1107 = vsub.f32 %v755, %v1045
    %v1108 = vsub.f32 %v758, %v1049
    %v1109 = vsub.f32 %v761, %v1049
    %v1110 = vsub.f32 %v764, %v1053
    %v1111 = vsub.f32 %v767, %v1053
    %v1112 = vsub.f32 %v770, %v1057
    %v1113 = vsub.f32 %v773, %v1057
    %v1114 = vsub.f32 %v776, %v1061
    %v1115 = vsub.f32 %v779, %v1061
    %v1116 = vsub.f32 %v782, %v1065
    %v1117 = vsub.f32 %v785, %v1065
    %v1118 = vsub.f32 %v788, %v1069
    %v1119 = vsub.f32 %v791, %v1069
    %v1120 = vsub.f32 %v794, %v1073
    %v1121 = vsub.f32 %v797, %v1073
    %v1122 = vmul.f32 %v1090, 1.442695
    %v1123 = vpow.pop %v1122
    %v1124 = vmul.f32 %v1091, 1.442695
    %v1125 = vpow.pop %v1124
    %v1126 = vmul.f32 %v1092, 1.442695
    %v1127 = vpow.pop %v1126
    %v1128 = vmul.f32 %v1093, 1.442695
    %v1129 = vpow.pop %v1128
    %v1130 = vmul.f32 %v1094, 1.442695
    %v1131 = vpow.pop %v1130
    %v1132 = vmul.f32 %v1095, 1.442695
    %v1133 = vpow.pop %v1132
    %v1134 = vmul.f32 %v1096, 1.442695
    %v1135 = vpow.pop %v1134
    %v1136 = vmul.f32 %v1097, 1.442695
    %v1137 = vpow.pop %v1136
    %v1138 = vmul.f32 %v1098, 1.442695
    %v1139 = vpow.pop %v1138
    %v1140 = vmul.f32 %v1099, 1.442695
    %v1141 = vpow.pop %v1140
    %v1142 = vmul.f32 %v1100, 1.442695
    %v1143 = vpow.pop %v1142
    %v1144 = vmul.f32 %v1101, 1.442695
    %v1145 = vpow.pop %v1144
    %v1146 = vmul.f32 %v1102, 1.442695
    %v1147 = vpow.pop %v1146
    %v1148 = vmul.f32 %v1103, 1.442695
    %v1149 = vpow.pop %v1148
    %v1150 = vmul.f32 %v1104, 1.442695
    %v1151 = vpow.pop %v1150
    %v1152 = vmul.f32 %v1105, 1.442695
    %v1153 = vpow.pop %v1152
    %v1154 = vmul.f32 %v1106, 1.442695
    %v1155 = vpow.pop %v1154
    %v1156 = vmul.f32 %v1107, 1.442695
    %v1157 = vpow.pop %v1156
    %v1158 = vmul.f32 %v1108, 1.442695
    %v1159 = vpow.pop %v1158
    %v1160 = vmul.f32 %v1109, 1.442695
    %v1161 = vpow.pop %v1160
    %v1162 = vmul.f32 %v1110, 1.442695
    %v1163 = vpow.pop %v1162
    %v1164 = vmul.f32 %v1111, 1.442695
    %v1165 = vpow.pop %v1164
    %v1166 = vmul.f32 %v1112, 1.442695
    %v1167 = vpow.pop %v1166
    %v1168 = vmul.f32 %v1113, 1.442695
    %v1169 = vpow.pop %v1168
    %v1170 = vmul.f32 %v1114, 1.442695
    %v1171 = vpow.pop %v1170
    %v1172 = vmul.f32 %v1115, 1.442695
    %v1173 = vpow.pop %v1172
    %v1174 = vmul.f32 %v1116, 1.442695
    %v1175 = vpow.pop %v1174
    %v1176 = vmul.f32 %v1117, 1.442695
    %v1177 = vpow.pop %v1176
    %v1178 = vmul.f32 %v1118, 1.442695
    %v1179 = vpow.pop %v1178
    %v1180 = vmul.f32 %v1119, 1.442695
    %v1181 = vpow.pop %v1180
    %v1182 = vmul.f32 %v1120, 1.442695
    %v1183 = vpow.pop %v1182
    %v1184 = vmul.f32 %v1121, 1.442695
    %v1185 = vpow.pop %v1184
    %1218 = vset.pattern.permute.xlu0 0
    %1219 = vperm.xlu0 %1218, %v1123
    %v1220 = vpop.permute.xlu0 %1219
    %1221 = vset.pattern.permute.xlu0 0
    %1222 = vperm.xlu0 %1221, %v1125
    %v1223 = vpop.permute.xlu0 %1222
    %1224 = vset.pattern.permute.xlu0 0
    %1225 = vperm.xlu0 %1224, %v1127
    %v1226 = vpop.permute.xlu0 %1225
    %1227 = vset.pattern.permute.xlu0 0
    %1228 = vperm.xlu0 %1227, %v1129
    %v1229 = vpop.permute.xlu0 %1228
    %1230 = vset.pattern.permute.xlu0 0
    %1231 = vperm.xlu0 %1230, %v1131
    %v1232 = vpop.permute.xlu0 %1231
    %1233 = vset.pattern.permute.xlu0 0
    %1234 = vperm.xlu0 %1233, %v1133
    %v1235 = vpop.permute.xlu0 %1234
    %1236 = vset.pattern.permute.xlu0 0
    %1237 = vperm.xlu0 %1236, %v1135
    %v1238 = vpop.permute.xlu0 %1237
    %1239 = vset.pattern.permute.xlu0 0
    %1240 = vperm.xlu0 %1239, %v1137
    %v1241 = vpop.permute.xlu0 %1240
    %1242 = vset.pattern.permute.xlu0 0
    %1243 = vperm.xlu0 %1242, %v1139
    %v1244 = vpop.permute.xlu0 %1243
    %1245 = vset.pattern.permute.xlu0 0
    %1246 = vperm.xlu0 %1245, %v1141
    %v1247 = vpop.permute.xlu0 %1246
    %1248 = vset.pattern.permute.xlu0 0
    %1249 = vperm.xlu0 %1248, %v1143
    %v1250 = vpop.permute.xlu0 %1249
    %1251 = vset.pattern.permute.xlu0 0
    %1252 = vperm.xlu0 %1251, %v1145
    %v1253 = vpop.permute.xlu0 %1252
    %1254 = vset.pattern.permute.xlu0 0
    %1255 = vperm.xlu0 %1254, %v1147
    %v1256 = vpop.permute.xlu0 %1255
    %1257 = vset.pattern.permute.xlu0 0
    %1258 = vperm.xlu0 %1257, %v1149
    %v1259 = vpop.permute.xlu0 %1258
    %1260 = vset.pattern.permute.xlu0 0
    %1261 = vperm.xlu0 %1260, %v1151
    %v1262 = vpop.permute.xlu0 %1261
    %1263 = vset.pattern.permute.xlu0 0
    %1264 = vperm.xlu0 %1263, %v1153
    %v1265 = vpop.permute.xlu0 %1264
    %1266 = vset.pattern.permute.xlu0 0
    %1267 = vperm.xlu0 %1266, %v1155
    %v1268 = vpop.permute.xlu0 %1267
    %1269 = vset.pattern.permute.xlu0 0
    %1270 = vperm.xlu0 %1269, %v1157
    %v1271 = vpop.permute.xlu0 %1270
    %1272 = vset.pattern.permute.xlu0 0
    %1273 = vperm.xlu0 %1272, %v1159
    %v1274 = vpop.permute.xlu0 %1273
    %1275 = vset.pattern.permute.xlu0 0
    %1276 = vperm.xlu0 %1275, %v1161
    %v1277 = vpop.permute.xlu0 %1276
    %1278 = vset.pattern.permute.xlu0 0
    %1279 = vperm.xlu0 %1278, %v1163
    %v1280 = vpop.permute.xlu0 %1279
    %1281 = vset.pattern.permute.xlu0 0
    %1282 = vperm.xlu0 %1281, %v1165
    %v1283 = vpop.permute.xlu0 %1282
    %1284 = vset.pattern.permute.xlu0 0
    %1285 = vperm.xlu0 %1284, %v1167
    %v1286 = vpop.permute.xlu0 %1285
    %1287 = vset.pattern.permute.xlu0 0
    %1288 = vperm.xlu0 %1287, %v1169
    %v1289 = vpop.permute.xlu0 %1288
    %1290 = vset.pattern.permute.xlu0 0
    %1291 = vperm.xlu0 %1290, %v1171
    %v1292 = vpop.permute.xlu0 %1291
    %1293 = vset.pattern.permute.xlu0 0
    %1294 = vperm.xlu0 %1293, %v1173
    %v1295 = vpop.permute.xlu0 %1294
    %1296 = vset.pattern.permute.xlu0 0
    %1297 = vperm.xlu0 %1296, %v1175
    %v1298 = vpop.permute.xlu0 %1297
    %1299 = vset.pattern.permute.xlu0 0
    %1300 = vperm.xlu0 %1299, %v1177
    %v1301 = vpop.permute.xlu0 %1300
    %1302 = vset.pattern.permute.xlu0 0
    %1303 = vperm.xlu0 %1302, %v1179
    %v1304 = vpop.permute.xlu0 %1303
    %1305 = vset.pattern.permute.xlu0 0
    %1306 = vperm.xlu0 %1305, %v1181
    %v1307 = vpop.permute.xlu0 %1306
    %1308 = vset.pattern.permute.xlu0 0
    %1309 = vperm.xlu0 %1308, %v1183
    %v1310 = vpop.permute.xlu0 %1309
    %1311 = vset.pattern.permute.xlu0 0
    %1312 = vperm.xlu0 %1311, %v1185
    %v1313 = vpop.permute.xlu0 %1312
    %v1314 = vlaneseq
    %v1315 = vshrl.u32 %v1314, 7
    %v1316 = vsub.s32 %v831, %v1315
    %v1317 = vrot.slane %v1220, %v1316
    %v1318 = vlaneseq
    %v1319 = vshrl.u32 %v1318, 7
    %v1320 = vsub.s32 %v836, %v1319
    %v1321 = vrot.slane %v1223, %v1320
    %v1322 = vsel %vm841, %v1321, %v1317
    %v1323 = vlaneseq
    %v1324 = vshrl.u32 %v1323, 7
    %v1325 = vsub.s32 %v831, %v1324
    %v1326 = vrot.slane %v1226, %v1325
    %v1327 = vlaneseq
    %v1328 = vshrl.u32 %v1327, 7
    %v1329 = vsub.s32 %v836, %v1328
    %v1330 = vrot.slane %v1229, %v1329
    %v1331 = vsel %vm841, %v1330, %v1326
    %v1332 = vlaneseq
    %v1333 = vshrl.u32 %v1332, 7
    %v1334 = vsub.s32 %v831, %v1333
    %v1335 = vrot.slane %v1232, %v1334
    %v1336 = vlaneseq
    %v1337 = vshrl.u32 %v1336, 7
    %v1338 = vsub.s32 %v836, %v1337
    %v1339 = vrot.slane %v1235, %v1338
    %v1340 = vsel %vm841, %v1339, %v1335
    %v1341 = vlaneseq
    %v1342 = vshrl.u32 %v1341, 7
    %v1343 = vsub.s32 %v831, %v1342
    %v1344 = vrot.slane %v1238, %v1343
    %v1345 = vlaneseq
    %v1346 = vshrl.u32 %v1345, 7
    %v1347 = vsub.s32 %v836, %v1346
    %v1348 = vrot.slane %v1241, %v1347
    %v1349 = vsel %vm841, %v1348, %v1344
    %v1350 = vlaneseq
    %v1351 = vshrl.u32 %v1350, 7
    %v1352 = vsub.s32 %v831, %v1351
    %v1353 = vrot.slane %v1244, %v1352
    %v1354 = vlaneseq
    %v1355 = vshrl.u32 %v1354, 7
    %v1356 = vsub.s32 %v836, %v1355
    %v1357 = vrot.slane %v1247, %v1356
    %v1358 = vsel %vm841, %v1357, %v1353
    %v1359 = vlaneseq
    %v1360 = vshrl.u32 %v1359, 7
    %v1361 = vsub.s32 %v831, %v1360
    %v1362 = vrot.slane %v1250, %v1361
    %v1363 = vlaneseq
    %v1364 = vshrl.u32 %v1363, 7
    %v1365 = vsub.s32 %v836, %v1364
    %v1366 = vrot.slane %v1253, %v1365
    %v1367 = vsel %vm841, %v1366, %v1362
    %v1368 = vlaneseq
    %v1369 = vshrl.u32 %v1368, 7
    %v1370 = vsub.s32 %v831, %v1369
    %v1371 = vrot.slane %v1256, %v1370
    %v1372 = vlaneseq
    %v1373 = vshrl.u32 %v1372, 7
    %v1374 = vsub.s32 %v836, %v1373
    %v1375 = vrot.slane %v1259, %v1374
    %v1376 = vsel %vm841, %v1375, %v1371
    %v1377 = vlaneseq
    %v1378 = vshrl.u32 %v1377, 7
    %v1379 = vsub.s32 %v831, %v1378
    %v1380 = vrot.slane %v1262, %v1379
    %v1381 = vlaneseq
    %v1382 = vshrl.u32 %v1381, 7
    %v1383 = vsub.s32 %v836, %v1382
    %v1384 = vrot.slane %v1265, %v1383
    %v1385 = vsel %vm841, %v1384, %v1380
    %v1386 = vlaneseq
    %v1387 = vshrl.u32 %v1386, 7
    %v1388 = vsub.s32 %v831, %v1387
    %v1389 = vrot.slane %v1268, %v1388
    %v1390 = vlaneseq
    %v1391 = vshrl.u32 %v1390, 7
    %v1392 = vsub.s32 %v836, %v1391
    %v1393 = vrot.slane %v1271, %v1392
    %v1394 = vsel %vm841, %v1393, %v1389
    %v1395 = vlaneseq
    %v1396 = vshrl.u32 %v1395, 7
    %v1397 = vsub.s32 %v831, %v1396
    %v1398 = vrot.slane %v1274, %v1397
    %v1399 = vlaneseq
    %v1400 = vshrl.u32 %v1399, 7
    %v1401 = vsub.s32 %v836, %v1400
    %v1402 = vrot.slane %v1277, %v1401
    %v1403 = vsel %vm841, %v1402, %v1398
    %v1404 = vlaneseq
    %v1405 = vshrl.u32 %v1404, 7
    %v1406 = vsub.s32 %v831, %v1405
    %v1407 = vrot.slane %v1280, %v1406
    %v1408 = vlaneseq
    %v1409 = vshrl.u32 %v1408, 7
    %v1410 = vsub.s32 %v836, %v1409
    %v1411 = vrot.slane %v1283, %v1410
    %v1412 = vsel %vm841, %v1411, %v1407
    %v1413 = vlaneseq
    %v1414 = vshrl.u32 %v1413, 7
    %v1415 = vsub.s32 %v831, %v1414
    %v1416 = vrot.slane %v1286, %v1415
    %v1417 = vlaneseq
    %v1418 = vshrl.u32 %v1417, 7
    %v1419 = vsub.s32 %v836, %v1418
    %v1420 = vrot.slane %v1289, %v1419
    %v1421 = vsel %vm841, %v1420, %v1416
    %v1422 = vlaneseq
    %v1423 = vshrl.u32 %v1422, 7
    %v1424 = vsub.s32 %v831, %v1423
    %v1425 = vrot.slane %v1292, %v1424
    %v1426 = vlaneseq
    %v1427 = vshrl.u32 %v1426, 7
    %v1428 = vsub.s32 %v836, %v1427
    %v1429 = vrot.slane %v1295, %v1428
    %v1430 = vsel %vm841, %v1429, %v1425
    %v1431 = vlaneseq
    %v1432 = vshrl.u32 %v1431, 7
    %v1433 = vsub.s32 %v831, %v1432
    %v1434 = vrot.slane %v1298, %v1433
    %v1435 = vlaneseq
    %v1436 = vshrl.u32 %v1435, 7
    %v1437 = vsub.s32 %v836, %v1436
    %v1438 = vrot.slane %v1301, %v1437
    %v1439 = vsel %vm841, %v1438, %v1434
    %v1440 = vlaneseq
    %v1441 = vshrl.u32 %v1440, 7
    %v1442 = vsub.s32 %v831, %v1441
    %v1443 = vrot.slane %v1304, %v1442
    %v1444 = vlaneseq
    %v1445 = vshrl.u32 %v1444, 7
    %v1446 = vsub.s32 %v836, %v1445
    %v1447 = vrot.slane %v1307, %v1446
    %v1448 = vsel %vm841, %v1447, %v1443
    %v1449 = vlaneseq
    %v1450 = vshrl.u32 %v1449, 7
    %v1451 = vsub.s32 %v831, %v1450
    %v1452 = vrot.slane %v1310, %v1451
    %v1453 = vlaneseq
    %v1454 = vshrl.u32 %v1453, 7
    %v1455 = vsub.s32 %v836, %v1454
    %v1456 = vrot.slane %v1313, %v1455
    %v1457 = vsel %vm841, %v1456, %v1452
    %v1458 = vsel %vm978, %v1331, %v1322
    %v1459 = vsel %vm980, %v1340, %v1458
    %v1460 = vsel %vm982, %v1349, %v1459
    %v1461 = vsel %vm984, %v1358, %v1460
    %v1462 = vsel %vm986, %v1367, %v1461
    %v1463 = vsel %vm988, %v1376, %v1462
    %v1464 = vsel %vm990, %v1385, %v1463
    %v1465 = vsel %vm978, %v1403, %v1394
    %v1466 = vsel %vm980, %v1412, %v1465
    %v1467 = vsel %vm982, %v1421, %v1466
    %v1468 = vsel %vm984, %v1430, %v1467
    %v1469 = vsel %vm986, %v1439, %v1468
    %v1470 = vsel %vm988, %v1448, %v1469
    %v1471 = vsel %vm990, %v1457, %v1470
    %v1474 = vsel %vm1001, %v1464, 0.0
    %1475 = vadd.xlane.f32.xlu0 %v1474
    %v1476 = vpop.xlane.xlu0 %1475
    %v1477 = vsel %vm1001, %v1471, 0.0
    %1478 = vadd.xlane.f32.xlu0 %v1477
    %v1479 = vpop.xlane.xlu0 %1478
    %v1480 = vrcp.pop %v1476
    %v1481 = vrcp.pop %v1479
    %v1482 = vmul.f32 %v1476, %v1480
    %v1483 = vmul.f32 %v1479, %v1481
    %v1484 = vsub.f32 2.0, %v1482
    %v1485 = vsub.f32 2.0, %v1483
    %v1486 = vmul.f32 %v1480, %v1484
    %v1487 = vmul.f32 %v1481, %v1485
    %v1490 = vlaneseq
    %v1491 = vshrl.u32 %v1490, 7
    %v1492 = vsub.s32 0, %v1491
    %v1493 = vrot.slane %v1486, %v1492
    %v1494 = vlaneseq
    %v1495 = vshrl.u32 %v1494, 7
    %v1496 = vsub.s32 1, %v1495
    %v1497 = vrot.slane %v1486, %v1496
    %v1498 = vlaneseq
    %v1499 = vshrl.u32 %v1498, 7
    %v1500 = vsub.s32 2, %v1499
    %v1501 = vrot.slane %v1486, %v1500
    %v1502 = vlaneseq
    %v1503 = vshrl.u32 %v1502, 7
    %v1504 = vsub.s32 3, %v1503
    %v1505 = vrot.slane %v1486, %v1504
    %v1506 = vlaneseq
    %v1507 = vshrl.u32 %v1506, 7
    %v1508 = vsub.s32 4, %v1507
    %v1509 = vrot.slane %v1486, %v1508
    %v1510 = vlaneseq
    %v1511 = vshrl.u32 %v1510, 7
    %v1512 = vsub.s32 5, %v1511
    %v1513 = vrot.slane %v1486, %v1512
    %v1514 = vlaneseq
    %v1515 = vshrl.u32 %v1514, 7
    %v1516 = vsub.s32 6, %v1515
    %v1517 = vrot.slane %v1486, %v1516
    %v1518 = vlaneseq
    %v1519 = vshrl.u32 %v1518, 7
    %v1520 = vsub.s32 7, %v1519
    %v1521 = vrot.slane %v1486, %v1520
    %v1522 = vlaneseq
    %v1523 = vshrl.u32 %v1522, 7
    %v1524 = vsub.s32 0, %v1523
    %v1525 = vrot.slane %v1487, %v1524
    %v1526 = vlaneseq
    %v1527 = vshrl.u32 %v1526, 7
    %v1528 = vsub.s32 1, %v1527
    %v1529 = vrot.slane %v1487, %v1528
    %v1530 = vlaneseq
    %v1531 = vshrl.u32 %v1530, 7
    %v1532 = vsub.s32 2, %v1531
    %v1533 = vrot.slane %v1487, %v1532
    %v1534 = vlaneseq
    %v1535 = vshrl.u32 %v1534, 7
    %v1536 = vsub.s32 3, %v1535
    %v1537 = vrot.slane %v1487, %v1536
    %v1538 = vlaneseq
    %v1539 = vshrl.u32 %v1538, 7
    %v1540 = vsub.s32 4, %v1539
    %v1541 = vrot.slane %v1487, %v1540
    %v1542 = vlaneseq
    %v1543 = vshrl.u32 %v1542, 7
    %v1544 = vsub.s32 5, %v1543
    %v1545 = vrot.slane %v1487, %v1544
    %v1546 = vlaneseq
    %v1547 = vshrl.u32 %v1546, 7
    %v1548 = vsub.s32 6, %v1547
    %v1549 = vrot.slane %v1487, %v1548
    %v1550 = vlaneseq
    %v1551 = vshrl.u32 %v1550, 7
    %v1552 = vsub.s32 7, %v1551
    %v1553 = vrot.slane %v1487, %v1552
    %v1570 = vmul.f32 %v1123, %v1493
    %v1571 = vmul.f32 %v1125, %v1493
    %v1572 = vmul.f32 %v1127, %v1497
    %v1573 = vmul.f32 %v1129, %v1497
    %v1574 = vmul.f32 %v1131, %v1501
    %v1575 = vmul.f32 %v1133, %v1501
    %v1576 = vmul.f32 %v1135, %v1505
    %v1577 = vmul.f32 %v1137, %v1505
    %v1578 = vmul.f32 %v1139, %v1509
    %v1579 = vmul.f32 %v1141, %v1509
    %v1580 = vmul.f32 %v1143, %v1513
    %v1581 = vmul.f32 %v1145, %v1513
    %v1582 = vmul.f32 %v1147, %v1517
    %v1583 = vmul.f32 %v1149, %v1517
    %v1584 = vmul.f32 %v1151, %v1521
    %v1585 = vmul.f32 %v1153, %v1521
    %v1586 = vmul.f32 %v1155, %v1525
    %v1587 = vmul.f32 %v1157, %v1525
    %v1588 = vmul.f32 %v1159, %v1529
    %v1589 = vmul.f32 %v1161, %v1529
    %v1590 = vmul.f32 %v1163, %v1533
    %v1591 = vmul.f32 %v1165, %v1533
    %v1592 = vmul.f32 %v1167, %v1537
    %v1593 = vmul.f32 %v1169, %v1537
    %v1594 = vmul.f32 %v1171, %v1541
    %v1595 = vmul.f32 %v1173, %v1541
    %v1596 = vmul.f32 %v1175, %v1545
    %v1597 = vmul.f32 %v1177, %v1545
    %v1598 = vmul.f32 %v1179, %v1549
    %v1599 = vmul.f32 %v1181, %v1549
    %v1600 = vmul.f32 %v1183, %v1553
    %v1601 = vmul.f32 %v1185, %v1553
    %1603 = vset.pattern.permute.xlu0 0
    %1604 = vperm.xlu0 %1603, %v1570
    %v1605 = vpop.permute.xlu0 %1604
    %1608 = vset.pattern.permute.xlu0 0
    %1609 = vperm.xlu0 %1608, %v1571
    %v1610 = vpop.permute.xlu0 %1609
    %1613 = vset.pattern.permute.xlu0 0
    %1614 = vperm.xlu0 %1613, %v1572
    %v1615 = vpop.permute.xlu0 %1614
    %1618 = vset.pattern.permute.xlu0 0
    %1619 = vperm.xlu0 %1618, %v1573
    %v1620 = vpop.permute.xlu0 %1619
    %1623 = vset.pattern.permute.xlu0 0
    %1624 = vperm.xlu0 %1623, %v1574
    %v1625 = vpop.permute.xlu0 %1624
    %1628 = vset.pattern.permute.xlu0 0
    %1629 = vperm.xlu0 %1628, %v1575
    %v1630 = vpop.permute.xlu0 %1629
    %1633 = vset.pattern.permute.xlu0 0
    %1634 = vperm.xlu0 %1633, %v1576
    %v1635 = vpop.permute.xlu0 %1634
    %1638 = vset.pattern.permute.xlu0 0
    %1639 = vperm.xlu0 %1638, %v1577
    %v1640 = vpop.permute.xlu0 %1639
    %1643 = vset.pattern.permute.xlu0 0
    %1644 = vperm.xlu0 %1643, %v1578
    %v1645 = vpop.permute.xlu0 %1644
    %1648 = vset.pattern.permute.xlu0 0
    %1649 = vperm.xlu0 %1648, %v1579
    %v1650 = vpop.permute.xlu0 %1649
    %1653 = vset.pattern.permute.xlu0 0
    %1654 = vperm.xlu0 %1653, %v1580
    %v1655 = vpop.permute.xlu0 %1654
    %1658 = vset.pattern.permute.xlu0 0
    %1659 = vperm.xlu0 %1658, %v1581
    %v1660 = vpop.permute.xlu0 %1659
    %1663 = vset.pattern.permute.xlu0 0
    %1664 = vperm.xlu0 %1663, %v1582
    %v1665 = vpop.permute.xlu0 %1664
    %1668 = vset.pattern.permute.xlu0 0
    %1669 = vperm.xlu0 %1668, %v1583
    %v1670 = vpop.permute.xlu0 %1669
    %1673 = vset.pattern.permute.xlu0 0
    %1674 = vperm.xlu0 %1673, %v1584
    %v1675 = vpop.permute.xlu0 %1674
    %1678 = vset.pattern.permute.xlu0 0
    %1679 = vperm.xlu0 %1678, %v1585
    %v1680 = vpop.permute.xlu0 %1679
    %1683 = vset.pattern.permute.xlu0 0
    %1684 = vperm.xlu0 %1683, %v1586
    %v1685 = vpop.permute.xlu0 %1684
    %1688 = vset.pattern.permute.xlu0 0
    %1689 = vperm.xlu0 %1688, %v1587
    %v1690 = vpop.permute.xlu0 %1689
    %1693 = vset.pattern.permute.xlu0 0
    %1694 = vperm.xlu0 %1693, %v1588
    %v1695 = vpop.permute.xlu0 %1694
    %1698 = vset.pattern.permute.xlu0 0
    %1699 = vperm.xlu0 %1698, %v1589
    %v1700 = vpop.permute.xlu0 %1699
    %1703 = vset.pattern.permute.xlu0 0
    %1704 = vperm.xlu0 %1703, %v1590
    %v1705 = vpop.permute.xlu0 %1704
    %1708 = vset.pattern.permute.xlu0 0
    %1709 = vperm.xlu0 %1708, %v1591
    %v1710 = vpop.permute.xlu0 %1709
    %1713 = vset.pattern.permute.xlu0 0
    %1714 = vperm.xlu0 %1713, %v1592
    %v1715 = vpop.permute.xlu0 %1714
    %1718 = vset.pattern.permute.xlu0 0
    %1719 = vperm.xlu0 %1718, %v1593
    %v1720 = vpop.permute.xlu0 %1719
    %1723 = vset.pattern.permute.xlu0 0
    %1724 = vperm.xlu0 %1723, %v1594
    %v1725 = vpop.permute.xlu0 %1724
    %1728 = vset.pattern.permute.xlu0 0
    %1729 = vperm.xlu0 %1728, %v1595
    %v1730 = vpop.permute.xlu0 %1729
    %1733 = vset.pattern.permute.xlu0 0
    %1734 = vperm.xlu0 %1733, %v1596
    %v1735 = vpop.permute.xlu0 %1734
    %1738 = vset.pattern.permute.xlu0 0
    %1739 = vperm.xlu0 %1738, %v1597
    %v1740 = vpop.permute.xlu0 %1739
    %1743 = vset.pattern.permute.xlu0 0
    %1744 = vperm.xlu0 %1743, %v1598
    %v1745 = vpop.permute.xlu0 %1744
    %1748 = vset.pattern.permute.xlu0 0
    %1749 = vperm.xlu0 %1748, %v1599
    %v1750 = vpop.permute.xlu0 %1749
    %1753 = vset.pattern.permute.xlu0 0
    %1754 = vperm.xlu0 %1753, %v1600
    %v1755 = vpop.permute.xlu0 %1754
    %1758 = vset.pattern.permute.xlu0 0
    %1759 = vperm.xlu0 %1758, %v1601
    %v1760 = vpop.permute.xlu0 %1759
    %v1762 = vmul.f32 %v44, %v1605
    %v1763 = vmul.f32 %v45, %v1610
    %v1764 = vmul.f32 %v46, %v1615
    %v1765 = vmul.f32 %v47, %v1620
    %v1766 = vmul.f32 %v48, %v1625
    %v1767 = vmul.f32 %v49, %v1630
    %v1768 = vmul.f32 %v50, %v1635
    %v1769 = vmul.f32 %v51, %v1640
    %v1770 = vmul.f32 %v52, %v1645
    %v1771 = vmul.f32 %v53, %v1650
    %v1772 = vmul.f32 %v54, %v1655
    %v1773 = vmul.f32 %v55, %v1660
    %v1774 = vmul.f32 %v56, %v1665
    %v1775 = vmul.f32 %v57, %v1670
    %v1776 = vmul.f32 %v58, %v1675
    %v1777 = vmul.f32 %v59, %v1680
    %v1778 = vmul.f32 %v60, %v1685
    %v1779 = vmul.f32 %v61, %v1690
    %v1780 = vmul.f32 %v62, %v1695
    %v1781 = vmul.f32 %v63, %v1700
    %v1782 = vmul.f32 %v64, %v1705
    %v1783 = vmul.f32 %v65, %v1710
    %v1784 = vmul.f32 %v66, %v1715
    %v1785 = vmul.f32 %v67, %v1720
    %v1786 = vmul.f32 %v68, %v1725
    %v1787 = vmul.f32 %v69, %v1730
    %v1788 = vmul.f32 %v70, %v1735
    %v1789 = vmul.f32 %v71, %v1740
    %v1790 = vmul.f32 %v72, %v1745
    %v1791 = vmul.f32 %v73, %v1750
    %v1792 = vmul.f32 %v74, %v1755
    %v1793 = vmul.f32 %v75, %v1760
    %v1794 = vadd.f32 %v1762, %v1763
    %v1795 = vrot.slane %v1794, 4
    %v1796 = vadd.f32 %v1794, %v1795
    %v1797 = vrot.slane %v1796, 2
    %v1798 = vadd.f32 %v1796, %v1797
    %v1799 = vrot.slane %v1798, 1
    %v1800 = vadd.f32 %v1798, %v1799
    %v1801 = vadd.f32 %v1764, %v1765
    %v1802 = vrot.slane %v1801, 4
    %v1803 = vadd.f32 %v1801, %v1802
    %v1804 = vrot.slane %v1803, 2
    %v1805 = vadd.f32 %v1803, %v1804
    %v1806 = vrot.slane %v1805, 1
    %v1807 = vadd.f32 %v1805, %v1806
    %v1808 = vadd.f32 %v1766, %v1767
    %v1809 = vrot.slane %v1808, 4
    %v1810 = vadd.f32 %v1808, %v1809
    %v1811 = vrot.slane %v1810, 2
    %v1812 = vadd.f32 %v1810, %v1811
    %v1813 = vrot.slane %v1812, 1
    %v1814 = vadd.f32 %v1812, %v1813
    %v1815 = vadd.f32 %v1768, %v1769
    %v1816 = vrot.slane %v1815, 4
    %v1817 = vadd.f32 %v1815, %v1816
    %v1818 = vrot.slane %v1817, 2
    %v1819 = vadd.f32 %v1817, %v1818
    %v1820 = vrot.slane %v1819, 1
    %v1821 = vadd.f32 %v1819, %v1820
    %v1822 = vadd.f32 %v1770, %v1771
    %v1823 = vrot.slane %v1822, 4
    %v1824 = vadd.f32 %v1822, %v1823
    %v1825 = vrot.slane %v1824, 2
    %v1826 = vadd.f32 %v1824, %v1825
    %v1827 = vrot.slane %v1826, 1
    %v1828 = vadd.f32 %v1826, %v1827
    %v1829 = vadd.f32 %v1772, %v1773
    %v1830 = vrot.slane %v1829, 4
    %v1831 = vadd.f32 %v1829, %v1830
    %v1832 = vrot.slane %v1831, 2
    %v1833 = vadd.f32 %v1831, %v1832
    %v1834 = vrot.slane %v1833, 1
    %v1835 = vadd.f32 %v1833, %v1834
    %v1836 = vadd.f32 %v1774, %v1775
    %v1837 = vrot.slane %v1836, 4
    %v1838 = vadd.f32 %v1836, %v1837
    %v1839 = vrot.slane %v1838, 2
    %v1840 = vadd.f32 %v1838, %v1839
    %v1841 = vrot.slane %v1840, 1
    %v1842 = vadd.f32 %v1840, %v1841
    %v1843 = vadd.f32 %v1776, %v1777
    %v1844 = vrot.slane %v1843, 4
    %v1845 = vadd.f32 %v1843, %v1844
    %v1846 = vrot.slane %v1845, 2
    %v1847 = vadd.f32 %v1845, %v1846
    %v1848 = vrot.slane %v1847, 1
    %v1849 = vadd.f32 %v1847, %v1848
    %v1850 = vadd.f32 %v1778, %v1779
    %v1851 = vrot.slane %v1850, 4
    %v1852 = vadd.f32 %v1850, %v1851
    %v1853 = vrot.slane %v1852, 2
    %v1854 = vadd.f32 %v1852, %v1853
    %v1855 = vrot.slane %v1854, 1
    %v1856 = vadd.f32 %v1854, %v1855
    %v1857 = vadd.f32 %v1780, %v1781
    %v1858 = vrot.slane %v1857, 4
    %v1859 = vadd.f32 %v1857, %v1858
    %v1860 = vrot.slane %v1859, 2
    %v1861 = vadd.f32 %v1859, %v1860
    %v1862 = vrot.slane %v1861, 1
    %v1863 = vadd.f32 %v1861, %v1862
    %v1864 = vadd.f32 %v1782, %v1783
    %v1865 = vrot.slane %v1864, 4
    %v1866 = vadd.f32 %v1864, %v1865
    %v1867 = vrot.slane %v1866, 2
    %v1868 = vadd.f32 %v1866, %v1867
    %v1869 = vrot.slane %v1868, 1
    %v1870 = vadd.f32 %v1868, %v1869
    %v1871 = vadd.f32 %v1784, %v1785
    %v1872 = vrot.slane %v1871, 4
    %v1873 = vadd.f32 %v1871, %v1872
    %v1874 = vrot.slane %v1873, 2
    %v1875 = vadd.f32 %v1873, %v1874
    %v1876 = vrot.slane %v1875, 1
    %v1877 = vadd.f32 %v1875, %v1876
    %v1878 = vadd.f32 %v1786, %v1787
    %v1879 = vrot.slane %v1878, 4
    %v1880 = vadd.f32 %v1878, %v1879
    %v1881 = vrot.slane %v1880, 2
    %v1882 = vadd.f32 %v1880, %v1881
    %v1883 = vrot.slane %v1882, 1
    %v1884 = vadd.f32 %v1882, %v1883
    %v1885 = vadd.f32 %v1788, %v1789
    %v1886 = vrot.slane %v1885, 4
    %v1887 = vadd.f32 %v1885, %v1886
    %v1888 = vrot.slane %v1887, 2
    %v1889 = vadd.f32 %v1887, %v1888
    %v1890 = vrot.slane %v1889, 1
    %v1891 = vadd.f32 %v1889, %v1890
    %v1892 = vadd.f32 %v1790, %v1791
    %v1893 = vrot.slane %v1892, 4
    %v1894 = vadd.f32 %v1892, %v1893
    %v1895 = vrot.slane %v1894, 2
    %v1896 = vadd.f32 %v1894, %v1895
    %v1897 = vrot.slane %v1896, 1
    %v1898 = vadd.f32 %v1896, %v1897
    %v1899 = vadd.f32 %v1792, %v1793
    %v1900 = vrot.slane %v1899, 4
    %v1901 = vadd.f32 %v1899, %v1900
    %v1902 = vrot.slane %v1901, 2
    %v1903 = vadd.f32 %v1901, %v1902
    %v1904 = vrot.slane %v1903, 1
    %v1905 = vadd.f32 %v1903, %v1904
    %v1922 = vsel %vm978, %v1807, %v1800
    %v1923 = vsel %vm980, %v1814, %v1922
    %v1924 = vsel %vm982, %v1821, %v1923
    %v1925 = vsel %vm984, %v1828, %v1924
    %v1926 = vsel %vm986, %v1835, %v1925
    %v1927 = vsel %vm988, %v1842, %v1926
    %v1928 = vsel %vm990, %v1849, %v1927
    %v1929 = vsel %vm978, %v1863, %v1856
    %v1930 = vsel %vm980, %v1870, %v1929
    %v1931 = vsel %vm982, %v1877, %v1930
    %v1932 = vsel %vm984, %v1884, %v1931
    %v1933 = vsel %vm986, %v1891, %v1932
    %v1934 = vsel %vm988, %v1898, %v1933
    %v1935 = vsel %vm990, %v1905, %v1934
    %1938 = vst [vmem:[#allocation5] sm:$0xff] %v1928
    %1939 = vst [vmem:[#allocation5 + $0x8] sm:$0xff] %v1935
    %v1940 = vlaneseq
    %v1941 = vshrl.u32 %v1940, 7
    %v1942 = vsub.s32 %v831, %v1941
    %v1943 = vrot.slane %v1605, %v1942
    %v1944 = vlaneseq
    %v1945 = vshrl.u32 %v1944, 7
    %v1946 = vsub.s32 %v836, %v1945
    %v1947 = vrot.slane %v1610, %v1946
    %v1948 = vsel %vm841, %v1947, %v1943
    %v1949 = vlaneseq
    %v1950 = vshrl.u32 %v1949, 7
    %v1951 = vsub.s32 %v831, %v1950
    %v1952 = vrot.slane %v1615, %v1951
    %v1953 = vlaneseq
    %v1954 = vshrl.u32 %v1953, 7
    %v1955 = vsub.s32 %v836, %v1954
    %v1956 = vrot.slane %v1620, %v1955
    %v1957 = vsel %vm841, %v1956, %v1952
    %v1958 = vlaneseq
    %v1959 = vshrl.u32 %v1958, 7
    %v1960 = vsub.s32 %v831, %v1959
    %v1961 = vrot.slane %v1625, %v1960
    %v1962 = vlaneseq
    %v1963 = vshrl.u32 %v1962, 7
    %v1964 = vsub.s32 %v836, %v1963
    %v1965 = vrot.slane %v1630, %v1964
    %v1966 = vsel %vm841, %v1965, %v1961
    %v1967 = vlaneseq
    %v1968 = vshrl.u32 %v1967, 7
    %v1969 = vsub.s32 %v831, %v1968
    %v1970 = vrot.slane %v1635, %v1969
    %v1971 = vlaneseq
    %v1972 = vshrl.u32 %v1971, 7
    %v1973 = vsub.s32 %v836, %v1972
    %v1974 = vrot.slane %v1640, %v1973
    %v1975 = vsel %vm841, %v1974, %v1970
    %v1976 = vlaneseq
    %v1977 = vshrl.u32 %v1976, 7
    %v1978 = vsub.s32 %v831, %v1977
    %v1979 = vrot.slane %v1645, %v1978
    %v1980 = vlaneseq
    %v1981 = vshrl.u32 %v1980, 7
    %v1982 = vsub.s32 %v836, %v1981
    %v1983 = vrot.slane %v1650, %v1982
    %v1984 = vsel %vm841, %v1983, %v1979
    %v1985 = vlaneseq
    %v1986 = vshrl.u32 %v1985, 7
    %v1987 = vsub.s32 %v831, %v1986
    %v1988 = vrot.slane %v1655, %v1987
    %v1989 = vlaneseq
    %v1990 = vshrl.u32 %v1989, 7
    %v1991 = vsub.s32 %v836, %v1990
    %v1992 = vrot.slane %v1660, %v1991
    %v1993 = vsel %vm841, %v1992, %v1988
    %v1994 = vlaneseq
    %v1995 = vshrl.u32 %v1994, 7
    %v1996 = vsub.s32 %v831, %v1995
    %v1997 = vrot.slane %v1665, %v1996
    %v1998 = vlaneseq
    %v1999 = vshrl.u32 %v1998, 7
    %v2000 = vsub.s32 %v836, %v1999
    %v2001 = vrot.slane %v1670, %v2000
    %v2002 = vsel %vm841, %v2001, %v1997
    %v2003 = vlaneseq
    %v2004 = vshrl.u32 %v2003, 7
    %v2005 = vsub.s32 %v831, %v2004
    %v2006 = vrot.slane %v1675, %v2005
    %v2007 = vlaneseq
    %v2008 = vshrl.u32 %v2007, 7
    %v2009 = vsub.s32 %v836, %v2008
    %v2010 = vrot.slane %v1680, %v2009
    %v2011 = vsel %vm841, %v2010, %v2006
    %v2012 = vlaneseq
    %v2013 = vshrl.u32 %v2012, 7
    %v2014 = vsub.s32 %v831, %v2013
    %v2015 = vrot.slane %v1685, %v2014
    %v2016 = vlaneseq
    %v2017 = vshrl.u32 %v2016, 7
    %v2018 = vsub.s32 %v836, %v2017
    %v2019 = vrot.slane %v1690, %v2018
    %v2020 = vsel %vm841, %v2019, %v2015
    %v2021 = vlaneseq
    %v2022 = vshrl.u32 %v2021, 7
    %v2023 = vsub.s32 %v831, %v2022
    %v2024 = vrot.slane %v1695, %v2023
    %v2025 = vlaneseq
    %v2026 = vshrl.u32 %v2025, 7
    %v2027 = vsub.s32 %v836, %v2026
    %v2028 = vrot.slane %v1700, %v2027
    %v2029 = vsel %vm841, %v2028, %v2024
    %v2030 = vlaneseq
    %v2031 = vshrl.u32 %v2030, 7
    %v2032 = vsub.s32 %v831, %v2031
    %v2033 = vrot.slane %v1705, %v2032
    %v2034 = vlaneseq
    %v2035 = vshrl.u32 %v2034, 7
    %v2036 = vsub.s32 %v836, %v2035
    %v2037 = vrot.slane %v1710, %v2036
    %v2038 = vsel %vm841, %v2037, %v2033
    %v2039 = vlaneseq
    %v2040 = vshrl.u32 %v2039, 7
    %v2041 = vsub.s32 %v831, %v2040
    %v2042 = vrot.slane %v1715, %v2041
    %v2043 = vlaneseq
    %v2044 = vshrl.u32 %v2043, 7
    %v2045 = vsub.s32 %v836, %v2044
    %v2046 = vrot.slane %v1720, %v2045
    %v2047 = vsel %vm841, %v2046, %v2042
    %v2048 = vlaneseq
    %v2049 = vshrl.u32 %v2048, 7
    %v2050 = vsub.s32 %v831, %v2049
    %v2051 = vrot.slane %v1725, %v2050
    %v2052 = vlaneseq
    %v2053 = vshrl.u32 %v2052, 7
    %v2054 = vsub.s32 %v836, %v2053
    %v2055 = vrot.slane %v1730, %v2054
    %v2056 = vsel %vm841, %v2055, %v2051
    %v2057 = vlaneseq
    %v2058 = vshrl.u32 %v2057, 7
    %v2059 = vsub.s32 %v831, %v2058
    %v2060 = vrot.slane %v1735, %v2059
    %v2061 = vlaneseq
    %v2062 = vshrl.u32 %v2061, 7
    %v2063 = vsub.s32 %v836, %v2062
    %v2064 = vrot.slane %v1740, %v2063
    %v2065 = vsel %vm841, %v2064, %v2060
    %v2066 = vlaneseq
    %v2067 = vshrl.u32 %v2066, 7
    %v2068 = vsub.s32 %v831, %v2067
    %v2069 = vrot.slane %v1745, %v2068
    %v2070 = vlaneseq
    %v2071 = vshrl.u32 %v2070, 7
    %v2072 = vsub.s32 %v836, %v2071
    %v2073 = vrot.slane %v1750, %v2072
    %v2074 = vsel %vm841, %v2073, %v2069
    %v2075 = vlaneseq
    %v2076 = vshrl.u32 %v2075, 7
    %v2077 = vsub.s32 %v831, %v2076
    %v2078 = vrot.slane %v1755, %v2077
    %v2079 = vlaneseq
    %v2080 = vshrl.u32 %v2079, 7
    %v2081 = vsub.s32 %v836, %v2080
    %v2082 = vrot.slane %v1760, %v2081
    %v2083 = vsel %vm841, %v2082, %v2078
    %v2084 = vsel %vm978, %v1957, %v1948
    %v2085 = vsel %vm980, %v1966, %v2084
    %v2086 = vsel %vm982, %v1975, %v2085
    %v2087 = vsel %vm984, %v1984, %v2086
    %v2088 = vsel %vm986, %v1993, %v2087
    %v2089 = vsel %vm988, %v2002, %v2088
    %v2090 = vsel %vm990, %v2011, %v2089
    %v2091 = vsel %vm978, %v2029, %v2020
    %v2092 = vsel %vm980, %v2038, %v2091
    %v2093 = vsel %vm982, %v2047, %v2092
    %v2094 = vsel %vm984, %v2056, %v2093
    %v2095 = vsel %vm986, %v2065, %v2094
    %v2096 = vsel %vm988, %v2074, %v2095
    %v2097 = vsel %vm990, %v2083, %v2096
    %2100 = vst.msk [vmem:[#allocation6] sm:$0xff] %vm1001, %v2090
    %2101 = vst.msk [vmem:[#allocation6 + $0x8] sm:$0xff] %vm1001, %v2097
    // Predicated region
    $region34: #{tpu_custom_call.1} parent=1 // pred_check
      _
    $region35: #{tpu_custom_call.1} parent=1 // pred_check_branch
      %2103 = sbr.rel (0) target = $region37
    $region36: #{tpu_custom_call.1} parent=1 // pred_region
      %s2105 = ssub.s32 256, 256
      %2106 = vsyncadd [#allocation4], %s2105
      %s2107 = sshll.u32 [#allocation5], 4
      %s2108 = int_to_ptr.vmem [resolvable:$true] %s2107
      %2113 = dma.vmem_to_hbm [thread:$0]  %s2108, 256, %s7, [#allocation4], 128, 128, 8
    $region37: #{tpu_custom_call.1} parent=1 // pred_fallthru
      _
    // Predicated region
    $region38: #{tpu_custom_call.1} parent=1 // pred_check
      _
    $region39: #{tpu_custom_call.1} parent=1 // pred_check_branch
      %2115 = sbr.rel (0) target = $region41
    $region40: #{tpu_custom_call.1} parent=1 // pred_region
      %s2117 = ssub.s32 256, 256
      %2118 = vsyncadd [#allocation7], %s2117
      %s2119 = sshll.u32 [#allocation6], 4
      %s2120 = int_to_ptr.vmem [resolvable:$true] %s2119
      %2125 = dma.vmem_to_hbm [thread:$0]  %s2120, 256, %s8, [#allocation7], 128, 128, 8
    $region41: #{tpu_custom_call.1} parent=1 // pred_fallthru
      _
    // Predicated region
    $region42: #{tpu_custom_call.1} parent=1 // pred_check
      _
    $region43: #{tpu_custom_call.1} parent=1 // pred_check_branch
      %2127 = sbr.rel (0) target = $region45
    $region44: #{tpu_custom_call.1} parent=1 // pred_region
      %2128 = dma.done [#allocation4], 256
    $region45: #{tpu_custom_call.1} parent=1 // pred_fallthru
      _
    // Predicated region
    $region46: #{tpu_custom_call.1} parent=1 // pred_check
      _
    $region47: #{tpu_custom_call.1} parent=1 // pred_check_branch
      %2130 = sbr.rel (0) target = $region49
    $region48: #{tpu_custom_call.1} parent=1 // pred_region
      %2131 = dma.done [#allocation7], 256
    $region49: #{tpu_custom_call.1} parent=1 // pred_fallthru
      _
    %2132 = vsyncpa [#allocation3], 1
    %2133 = vsyncpa [#allocation4], 1
    %2134 = vsyncpa [#allocation7], 1

</llo_original>
